<compile_context>
chip_gen: v5e
topology: v5e:2x2
jax: 0.10.0
libtpu: 0.0.40
codegen_flags: <defaults>
</compile_context>

<pallas_src>
import functools

import jax
import jax.numpy as jnp
from jax.experimental import pallas as pl
from jax.experimental.pallas import tpu as pltpu


# ---------------------------------------------------------------------------
# Fused Pallas kernel: conv (implicit GEMM) + train-mode BN + ReLU
# ---------------------------------------------------------------------------
def _conv_bn_relu_kernel(x_ref, w_ref, bias_ref, gamma_ref, beta_ref, o_ref,
                         sum_ref, sumsq_ref, *, ksize, inv_m, eps):
    phase = pl.program_id(0)        # 0 = batch-stats pass, 1 = normalize/store pass
    tile = pl.program_id(1)         # output-row tile

    N, Hp, Wp, Cin = x_ref.shape
    _, th, Wo, Cout = o_ref.shape
    m_tile = N * th * Wo

    h_start = pl.multiple_of(tile * th, th)

    # Implicit-GEMM convolution: accumulate the k*k taps on the MXU in f32.
    acc = jnp.zeros((m_tile, Cout), jnp.float32)
    for kh in range(ksize):
        for kw in range(ksize):
            win = x_ref[:, pl.ds(h_start + kh, th), kw:kw + Wo, :]   # (N, th, Wo, Cin) bf16
            a = win.reshape(m_tile, Cin)
            acc = acc + jnp.dot(a, w_ref[kh * ksize + kw],
                                preferred_element_type=jnp.float32)
    acc = acc + bias_ref[...]                                        # conv bias (f32)

    @pl.when(jnp.logical_and(phase == 0, tile == 0))
    def _init_stats():
        sum_ref[...] = jnp.zeros_like(sum_ref)
        sumsq_ref[...] = jnp.zeros_like(sumsq_ref)

    @pl.when(phase == 0)
    def _accumulate_stats():
        sum_ref[...] += jnp.sum(acc, axis=0, keepdims=True)
        sumsq_ref[...] += jnp.sum(acc * acc, axis=0, keepdims=True)

    @pl.when(phase == 1)
    def _normalize_and_store():
        mean = sum_ref[...] * inv_m
        var = sumsq_ref[...] * inv_m - mean * mean      # biased var, like torch BN train
        scale = gamma_ref[...] * jax.lax.rsqrt(var + eps)
        shift = beta_ref[...] - mean * scale
        y = jnp.maximum(acc * scale + shift, 0.0)
        o_ref[...] = y.reshape(N, th, Wo, Cout).astype(o_ref.dtype)


def _largest_divisor_at_most(n, target):
    for d in range(min(n, target), 0, -1):
        if n % d == 0:
            return d
    return 1


# ---------------------------------------------------------------------------
# Wrapper: layout prep (NCHW->NHWC, spatial pad, bf16, channel padding) + pallas_call
# ---------------------------------------------------------------------------
def basic_conv2d_forward(x_nchw, params, *, stride=1, padding=0, eps=1e-5,
                         row_tile=8):
    """BasicConv2d forward: Conv2d -> BatchNorm2d (batch stats) -> ReLU.

    x_nchw: (N, Cin, H, W) float32.  Returns (N, Cout, Ho, Wo) float32.
    """
    w = params["w"]                                  # (Cout, Cin, k, k) torch layout
    Cout, Cin, k, k2 = w.shape
    assert k == k2, "only square kernels supported"
    if stride != 1:
        # TODO(synk): stride > 1 needs strided in-kernel windows; not needed for the
        # canonical BasicConv2d(kernel_size=3, padding=1) configuration.
        raise NotImplementedError("stride != 1 not implemented")

    N, cx, H, W = x_nchw.shape
    assert cx == Cin
    Ho = H + 2 * padding - k + 1
    Wo = W + 2 * padding - k + 1
    Hp, Wp = H + 2 * padding, W + 2 * padding

    # NCHW -> NHWC, spatial zero-pad, bf16 for the MXU (f32 accumulation in-kernel).
    x = jnp.transpose(x_nchw, (0, 2, 3, 1)).astype(jnp.bfloat16)
    if padding:
        x = jnp.pad(x, ((0, 0), (padding, padding), (padding, padding), (0, 0)))

    # Lane-dense output: pad Cout up to a multiple of 128 (stripped after the call).
    cout_p = ((Cout + 127) // 128) * 128
    pad_c = cout_p - Cout
    w_taps = jnp.transpose(w, (2, 3, 1, 0)).reshape(k * k, Cin, Cout)
    w_taps = jnp.pad(w_taps, ((0, 0), (0, 0), (0, pad_c))).astype(jnp.bfloat16)
    bias = jnp.pad(params["b"].reshape(1, Cout), ((0, 0), (0, pad_c))).astype(jnp.float32)
    gamma = jnp.pad(params["gamma"].reshape(1, Cout), ((0, 0), (0, pad_c))).astype(jnp.float32)
    beta = jnp.pad(params["beta"].reshape(1, Cout), ((0, 0), (0, pad_c))).astype(jnp.float32)

    th = _largest_divisor_at_most(Ho, row_tile)      # output-row tile
    n_tiles = Ho // th
    inv_m = 1.0 / float(N * Ho * Wo)

    kernel = functools.partial(_conv_bn_relu_kernel, ksize=k, inv_m=inv_m, eps=eps)

    out = pl.pallas_call(
        kernel,
        out_shape=jax.ShapeDtypeStruct((N, Ho, Wo, cout_p), jnp.float32),
        grid=(2, n_tiles),                           # (phase, row tile)
        in_specs=[
            # Whole padded activation and weights stay VMEM-resident across the grid.
            pl.BlockSpec((N, Hp, Wp, Cin), lambda p, t: (0, 0, 0, 0)),
            pl.BlockSpec((k * k, Cin, cout_p), lambda p, t: (0, 0, 0)),
            pl.BlockSpec((1, cout_p), lambda p, t: (0, 0)),   # bias
            pl.BlockSpec((1, cout_p), lambda p, t: (0, 0)),   # gamma
            pl.BlockSpec((1, cout_p), lambda p, t: (0, 0)),   # beta
        ],
        # Phase 0 parks the (never-written) output on block 0 -> no spurious
        # write-backs; phase 1 walks the row tiles.
        out_specs=pl.BlockSpec((N, th, Wo, cout_p), lambda p, t: (0, p * t, 0, 0)),
        scratch_shapes=[pltpu.VMEM((1, cout_p), jnp.float32),   # per-channel sum
                        pltpu.VMEM((1, cout_p), jnp.float32)],  # per-channel sum of squares
        compiler_params=pltpu.CompilerParams(
            # Phase 1 depends on phase-0 statistics in per-core scratch -> sequential.
            dimension_semantics=("arbitrary", "arbitrary"),
            vmem_limit_bytes=32 * 1024 * 1024,
        ),
    )(x, w_taps, bias, gamma, beta)

    out = out[..., :Cout]                            # strip channel padding
    return jnp.transpose(out, (0, 3, 1, 2))          # NHWC -> NCHW


# ---------------------------------------------------------------------------
# Deterministic parameter init (shapes per BasicConv2d.__init__) + pure-JAX reference
# ---------------------------------------------------------------------------
def init_basic_conv2d_params(key, cin, cout, k):
    kw_, kb_, kg_, kbt = jax.random.split(key, 4)
    fan_in = float(cin * k * k)
    w = jax.random.normal(kw_, (cout, cin, k, k), jnp.float32) / jnp.sqrt(fan_in)
    bound = fan_in ** -0.5
    b = jax.random.uniform(kb_, (cout,), jnp.float32, -bound, bound)
    gamma = 1.0 + 0.1 * jax.random.normal(kg_, (cout,), jnp.float32)
    beta = 0.1 * jax.random.normal(kbt, (cout,), jnp.float32)
    return {"w": w, "b": b, "gamma": gamma, "beta": beta}


def reference_forward(x_nchw, params, *, padding, eps=1e-5):
    # Mirrors the kernel's bf16 rounding of conv inputs; conv/BN math in f32.
    x = x_nchw.astype(jnp.bfloat16).astype(jnp.float32)
    w = params["w"].astype(jnp.bfloat16).astype(jnp.float32)
    y = jax.lax.conv_general_dilated(
        x, w, window_strides=(1, 1),
        padding=[(padding, padding), (padding, padding)],
        dimension_numbers=("NCHW", "OIHW", "NCHW"),
        precision=jax.lax.Precision.HIGHEST)
    y = y + params["b"].reshape(1, -1, 1, 1)
    mean = jnp.mean(y, axis=(0, 2, 3), keepdims=True)
    var = jnp.mean((y - mean) ** 2, axis=(0, 2, 3), keepdims=True)
    y = (y - mean) * jax.lax.rsqrt(var + eps)
    y = y * params["gamma"].reshape(1, -1, 1, 1) + params["beta"].reshape(1, -1, 1, 1)
    return jnp.maximum(y, 0.0)


if __name__ == "__main__":
    key = jax.random.PRNGKey(0)
    pkey, xkey = jax.random.split(key)

    cin, cout, ksize, padding = 4, 32, 3, 1
    params = init_basic_conv2d_params(pkey, cin, cout, ksize)
    x = jax.random.normal(xkey, (2, cin, 16, 16), jnp.float32)

    out = jax.block_until_ready(basic_conv2d_forward(x, params, padding=padding))
    assert out.shape == (2, cout, 16, 16), out.shape
    assert bool(jnp.all(jnp.isfinite(out)))

    ref = jax.block_until_ready(reference_forward(x, params, padding=padding))
    assert bool(jnp.allclose(out, ref, atol=2e-2, rtol=2e-2)), \
        float(jnp.max(jnp.abs(out - ref)))

    print("KERNEL_OK")
</pallas_src>

<mosaic_0001>
module attributes {stable_mosaic.version = 11 : i64} {
  func.func @_conv_bn_relu_kernel(%arg0: i32, %arg1: i32, %arg2: memref<2x18x18x4xbf16, #tpu.memory_space<vmem>>, %arg3: memref<9x4x128xbf16, #tpu.memory_space<vmem>>, %arg4: memref<1x128xf32, #tpu.memory_space<vmem>>, %arg5: memref<1x128xf32, #tpu.memory_space<vmem>>, %arg6: memref<1x128xf32, #tpu.memory_space<vmem>>, %arg7: memref<2x8x16x128xf32, #tpu.memory_space<vmem>>, %arg8: memref<1x128xf32, #tpu.memory_space<vmem>>, %arg9: memref<1x128xf32, #tpu.memory_space<vmem>>) attributes {dimension_semantics = [#tpu.dimension_semantics<arbitrary>, #tpu.dimension_semantics<arbitrary>], iteration_bounds = array<i64: 2, 2>, scalar_prefetch = 0 : i64, scratch_operands = 2 : i64, tpu.core_type = #tpu.core_type<tc>, window_params = [{pipeline_mode = #tpu.pipeline_mode<synchronous>, transform_indices = @transform_0, window_bounds = array<i64: 2, 18, 18, 4>}, {pipeline_mode = #tpu.pipeline_mode<synchronous>, transform_indices = @transform_1, window_bounds = array<i64: 9, 4, 128>}, {pipeline_mode = #tpu.pipeline_mode<synchronous>, transform_indices = @transform_2, window_bounds = array<i64: 1, 128>}, {pipeline_mode = #tpu.pipeline_mode<synchronous>, transform_indices = @transform_3, window_bounds = array<i64: 1, 128>}, {pipeline_mode = #tpu.pipeline_mode<synchronous>, transform_indices = @transform_4, window_bounds = array<i64: 1, 128>}, {transform_indices = @transform_5, window_bounds = array<i64: 2, 8, 16, 128>}]} {
    %c8_i32 = arith.constant 8 : i32
    %0 = arith.muli %arg1, %c8_i32 : i32
    %1 = tpu.assume_multiple %0, 8 : i32
    %cst = arith.constant 0.000000e+00 : f32
    %2 = vector.broadcast %cst : f32 to vector<256x128xf32>
    %c0_i32 = arith.constant 0 : i32
    %3 = arith.addi %1, %c0_i32 : i32
    %c0 = arith.constant 0 : index
    %4 = arith.index_cast %3 : i32 to index
    %c0_0 = arith.constant 0 : index
    %c0_1 = arith.constant 0 : index
    %5 = vector.load %arg2[%c0, %4, %c0_0, %c0_1] : memref<2x18x18x4xbf16, #tpu.memory_space<vmem>>, vector<2x8x16x4xbf16>
    %6 = vector.shape_cast %5 : vector<2x8x16x4xbf16> to vector<256x4xbf16>
    %c0_2 = arith.constant 0 : index
    %c0_3 = arith.constant 0 : index
    %c0_4 = arith.constant 0 : index
    %7 = vector.load %arg3[%c0_2, %c0_3, %c0_4] : memref<9x4x128xbf16, #tpu.memory_space<vmem>>, vector<1x4x128xbf16>
    %8 = vector.shape_cast %7 : vector<1x4x128xbf16> to vector<4x128xbf16>
    %cst_5 = arith.constant dense<0.000000e+00> : vector<256x128xf32>
    %9 = tpu.matmul %6, %8, %cst_5 {dimension_numbers = #tpu.dot_dimension_numbers<[1], [0], [0], [1], [0, 0, 1, 1], [], []>} : vector<256x4xbf16>, vector<4x128xbf16>, vector<256x128xf32> -> vector<256x128xf32>
    %10 = arith.addf %2, %9 : vector<256x128xf32>
    %c0_i32_6 = arith.constant 0 : i32
    %11 = arith.addi %1, %c0_i32_6 : i32
    %c0_7 = arith.constant 0 : index
    %12 = arith.index_cast %11 : i32 to index
    %c1 = arith.constant 1 : index
    %c0_8 = arith.constant 0 : index
    %13 = vector.load %arg2[%c0_7, %12, %c1, %c0_8] : memref<2x18x18x4xbf16, #tpu.memory_space<vmem>>, vector<2x8x16x4xbf16>
    %14 = vector.shape_cast %13 : vector<2x8x16x4xbf16> to vector<256x4xbf16>
    %c1_9 = arith.constant 1 : index
    %c0_10 = arith.constant 0 : index
    %c0_11 = arith.constant 0 : index
    %15 = vector.load %arg3[%c1_9, %c0_10, %c0_11] : memref<9x4x128xbf16, #tpu.memory_space<vmem>>, vector<1x4x128xbf16>
    %16 = vector.shape_cast %15 : vector<1x4x128xbf16> to vector<4x128xbf16>
    %cst_12 = arith.constant dense<0.000000e+00> : vector<256x128xf32>
    %17 = tpu.matmul %14, %16, %cst_12 {dimension_numbers = #tpu.dot_dimension_numbers<[1], [0], [0], [1], [0, 0, 1, 1], [], []>} : vector<256x4xbf16>, vector<4x128xbf16>, vector<256x128xf32> -> vector<256x128xf32>
    %18 = arith.addf %10, %17 : vector<256x128xf32>
    %c0_i32_13 = arith.constant 0 : i32
    %19 = arith.addi %1, %c0_i32_13 : i32
    %c0_14 = arith.constant 0 : index
    %20 = arith.index_cast %19 : i32 to index
    %c2 = arith.constant 2 : index
    %c0_15 = arith.constant 0 : index
    %21 = vector.load %arg2[%c0_14, %20, %c2, %c0_15] : memref<2x18x18x4xbf16, #tpu.memory_space<vmem>>, vector<2x8x16x4xbf16>
    %22 = vector.shape_cast %21 : vector<2x8x16x4xbf16> to vector<256x4xbf16>
    %c2_16 = arith.constant 2 : index
    %c0_17 = arith.constant 0 : index
    %c0_18 = arith.constant 0 : index
    %23 = vector.load %arg3[%c2_16, %c0_17, %c0_18] : memref<9x4x128xbf16, #tpu.memory_space<vmem>>, vector<1x4x128xbf16>
    %24 = vector.shape_cast %23 : vector<1x4x128xbf16> to vector<4x128xbf16>
    %cst_19 = arith.constant dense<0.000000e+00> : vector<256x128xf32>
    %25 = tpu.matmul %22, %24, %cst_19 {dimension_numbers = #tpu.dot_dimension_numbers<[1], [0], [0], [1], [0, 0, 1, 1], [], []>} : vector<256x4xbf16>, vector<4x128xbf16>, vector<256x128xf32> -> vector<256x128xf32>
    %26 = arith.addf %18, %25 : vector<256x128xf32>
    %c1_i32 = arith.constant 1 : i32
    %27 = arith.addi %1, %c1_i32 : i32
    %c0_20 = arith.constant 0 : index
    %28 = arith.index_cast %27 : i32 to index
    %c0_21 = arith.constant 0 : index
    %c0_22 = arith.constant 0 : index
    %29 = vector.load %arg2[%c0_20, %28, %c0_21, %c0_22] : memref<2x18x18x4xbf16, #tpu.memory_space<vmem>>, vector<2x8x16x4xbf16>
    %30 = vector.shape_cast %29 : vector<2x8x16x4xbf16> to vector<256x4xbf16>
    %c3 = arith.constant 3 : index
    %c0_23 = arith.constant 0 : index
    %c0_24 = arith.constant 0 : index
    %31 = vector.load %arg3[%c3, %c0_23, %c0_24] : memref<9x4x128xbf16, #tpu.memory_space<vmem>>, vector<1x4x128xbf16>
    %32 = vector.shape_cast %31 : vector<1x4x128xbf16> to vector<4x128xbf16>
    %cst_25 = arith.constant dense<0.000000e+00> : vector<256x128xf32>
    %33 = tpu.matmul %30, %32, %cst_25 {dimension_numbers = #tpu.dot_dimension_numbers<[1], [0], [0], [1], [0, 0, 1, 1], [], []>} : vector<256x4xbf16>, vector<4x128xbf16>, vector<256x128xf32> -> vector<256x128xf32>
    %34 = arith.addf %26, %33 : vector<256x128xf32>
    %c1_i32_26 = arith.constant 1 : i32
    %35 = arith.addi %1, %c1_i32_26 : i32
    %c0_27 = arith.constant 0 : index
    %36 = arith.index_cast %35 : i32 to index
    %c1_28 = arith.constant 1 : index
    %c0_29 = arith.constant 0 : index
    %37 = vector.load %arg2[%c0_27, %36, %c1_28, %c0_29] : memref<2x18x18x4xbf16, #tpu.memory_space<vmem>>, vector<2x8x16x4xbf16>
    %38 = vector.shape_cast %37 : vector<2x8x16x4xbf16> to vector<256x4xbf16>
    %c4 = arith.constant 4 : index
    %c0_30 = arith.constant 0 : index
    %c0_31 = arith.constant 0 : index
    %39 = vector.load %arg3[%c4, %c0_30, %c0_31] : memref<9x4x128xbf16, #tpu.memory_space<vmem>>, vector<1x4x128xbf16>
    %40 = vector.shape_cast %39 : vector<1x4x128xbf16> to vector<4x128xbf16>
    %cst_32 = arith.constant dense<0.000000e+00> : vector<256x128xf32>
    %41 = tpu.matmul %38, %40, %cst_32 {dimension_numbers = #tpu.dot_dimension_numbers<[1], [0], [0], [1], [0, 0, 1, 1], [], []>} : vector<256x4xbf16>, vector<4x128xbf16>, vector<256x128xf32> -> vector<256x128xf32>
    %42 = arith.addf %34, %41 : vector<256x128xf32>
    %c1_i32_33 = arith.constant 1 : i32
    %43 = arith.addi %1, %c1_i32_33 : i32
    %c0_34 = arith.constant 0 : index
    %44 = arith.index_cast %43 : i32 to index
    %c2_35 = arith.constant 2 : index
    %c0_36 = arith.constant 0 : index
    %45 = vector.load %arg2[%c0_34, %44, %c2_35, %c0_36] : memref<2x18x18x4xbf16, #tpu.memory_space<vmem>>, vector<2x8x16x4xbf16>
    %46 = vector.shape_cast %45 : vector<2x8x16x4xbf16> to vector<256x4xbf16>
    %c5 = arith.constant 5 : index
    %c0_37 = arith.constant 0 : index
    %c0_38 = arith.constant 0 : index
    %47 = vector.load %arg3[%c5, %c0_37, %c0_38] : memref<9x4x128xbf16, #tpu.memory_space<vmem>>, vector<1x4x128xbf16>
    %48 = vector.shape_cast %47 : vector<1x4x128xbf16> to vector<4x128xbf16>
    %cst_39 = arith.constant dense<0.000000e+00> : vector<256x128xf32>
    %49 = tpu.matmul %46, %48, %cst_39 {dimension_numbers = #tpu.dot_dimension_numbers<[1], [0], [0], [1], [0, 0, 1, 1], [], []>} : vector<256x4xbf16>, vector<4x128xbf16>, vector<256x128xf32> -> vector<256x128xf32>
    %50 = arith.addf %42, %49 : vector<256x128xf32>
    %c2_i32 = arith.constant 2 : i32
    %51 = arith.addi %1, %c2_i32 : i32
    %c0_40 = arith.constant 0 : index
    %52 = arith.index_cast %51 : i32 to index
    %c0_41 = arith.constant 0 : index
    %c0_42 = arith.constant 0 : index
    %53 = vector.load %arg2[%c0_40, %52, %c0_41, %c0_42] : memref<2x18x18x4xbf16, #tpu.memory_space<vmem>>, vector<2x8x16x4xbf16>
    %54 = vector.shape_cast %53 : vector<2x8x16x4xbf16> to vector<256x4xbf16>
    %c6 = arith.constant 6 : index
    %c0_43 = arith.constant 0 : index
    %c0_44 = arith.constant 0 : index
    %55 = vector.load %arg3[%c6, %c0_43, %c0_44] : memref<9x4x128xbf16, #tpu.memory_space<vmem>>, vector<1x4x128xbf16>
    %56 = vector.shape_cast %55 : vector<1x4x128xbf16> to vector<4x128xbf16>
    %cst_45 = arith.constant dense<0.000000e+00> : vector<256x128xf32>
    %57 = tpu.matmul %54, %56, %cst_45 {dimension_numbers = #tpu.dot_dimension_numbers<[1], [0], [0], [1], [0, 0, 1, 1], [], []>} : vector<256x4xbf16>, vector<4x128xbf16>, vector<256x128xf32> -> vector<256x128xf32>
    %58 = arith.addf %50, %57 : vector<256x128xf32>
    %c2_i32_46 = arith.constant 2 : i32
    %59 = arith.addi %1, %c2_i32_46 : i32
    %c0_47 = arith.constant 0 : index
    %60 = arith.index_cast %59 : i32 to index
    %c1_48 = arith.constant 1 : index
    %c0_49 = arith.constant 0 : index
    %61 = vector.load %arg2[%c0_47, %60, %c1_48, %c0_49] : memref<2x18x18x4xbf16, #tpu.memory_space<vmem>>, vector<2x8x16x4xbf16>
    %62 = vector.shape_cast %61 : vector<2x8x16x4xbf16> to vector<256x4xbf16>
    %c7 = arith.constant 7 : index
    %c0_50 = arith.constant 0 : index
    %c0_51 = arith.constant 0 : index
    %63 = vector.load %arg3[%c7, %c0_50, %c0_51] : memref<9x4x128xbf16, #tpu.memory_space<vmem>>, vector<1x4x128xbf16>
    %64 = vector.shape_cast %63 : vector<1x4x128xbf16> to vector<4x128xbf16>
    %cst_52 = arith.constant dense<0.000000e+00> : vector<256x128xf32>
    %65 = tpu.matmul %62, %64, %cst_52 {dimension_numbers = #tpu.dot_dimension_numbers<[1], [0], [0], [1], [0, 0, 1, 1], [], []>} : vector<256x4xbf16>, vector<4x128xbf16>, vector<256x128xf32> -> vector<256x128xf32>
    %66 = arith.addf %58, %65 : vector<256x128xf32>
    %c2_i32_53 = arith.constant 2 : i32
    %67 = arith.addi %1, %c2_i32_53 : i32
    %c0_54 = arith.constant 0 : index
    %68 = arith.index_cast %67 : i32 to index
    %c2_55 = arith.constant 2 : index
    %c0_56 = arith.constant 0 : index
    %69 = vector.load %arg2[%c0_54, %68, %c2_55, %c0_56] : memref<2x18x18x4xbf16, #tpu.memory_space<vmem>>, vector<2x8x16x4xbf16>
    %70 = vector.shape_cast %69 : vector<2x8x16x4xbf16> to vector<256x4xbf16>
    %c8 = arith.constant 8 : index
    %c0_57 = arith.constant 0 : index
    %c0_58 = arith.constant 0 : index
    %71 = vector.load %arg3[%c8, %c0_57, %c0_58] : memref<9x4x128xbf16, #tpu.memory_space<vmem>>, vector<1x4x128xbf16>
    %72 = vector.shape_cast %71 : vector<1x4x128xbf16> to vector<4x128xbf16>
    %cst_59 = arith.constant dense<0.000000e+00> : vector<256x128xf32>
    %73 = tpu.matmul %70, %72, %cst_59 {dimension_numbers = #tpu.dot_dimension_numbers<[1], [0], [0], [1], [0, 0, 1, 1], [], []>} : vector<256x4xbf16>, vector<4x128xbf16>, vector<256x128xf32> -> vector<256x128xf32>
    %74 = arith.addf %66, %73 : vector<256x128xf32>
    %c0_60 = arith.constant 0 : index
    %c0_61 = arith.constant 0 : index
    %75 = vector.load %arg4[%c0_60, %c0_61] : memref<1x128xf32, #tpu.memory_space<vmem>>, vector<1x128xf32>
    %76 = vector.broadcast %75 : vector<1x128xf32> to vector<256x128xf32>
    %77 = arith.addf %74, %76 : vector<256x128xf32>
    %c0_i32_62 = arith.constant 0 : i32
    %78 = arith.cmpi eq, %arg0, %c0_i32_62 : i32
    %c0_i32_63 = arith.constant 0 : i32
    %79 = arith.cmpi eq, %arg1, %c0_i32_63 : i32
    %80 = arith.andi %78, %79 : i1
    %81 = arith.extui %80 : i1 to i32
    %c0_i32_64 = arith.constant 0 : i32
    %82 = arith.cmpi ne, %81, %c0_i32_64 : i32
    scf.if %82 {
      %cst_69 = arith.constant 0.000000e+00 : f32
      %89 = vector.broadcast %cst_69 : f32 to vector<1x128xf32>
      %c0_70 = arith.constant 0 : index
      %c0_71 = arith.constant 0 : index
      %90 = vector.load %arg8[%c0_70, %c0_71] : memref<1x128xf32, #tpu.memory_space<vmem>>, vector<1x128xf32>
      tpu.vector_store %arg8[%c0_70, %c0_71], %89 {strides = array<i32>} : memref<1x128xf32, #tpu.memory_space<vmem>>, vector<1x128xf32>,
      %cst_72 = arith.constant 0.000000e+00 : f32
      %91 = vector.broadcast %cst_72 : f32 to vector<1x128xf32>
      %c0_73 = arith.constant 0 : index
      %c0_74 = arith.constant 0 : index
      %92 = vector.load %arg9[%c0_73, %c0_74] : memref<1x128xf32, #tpu.memory_space<vmem>>, vector<1x128xf32>
      tpu.vector_store %arg9[%c0_73, %c0_74], %91 {strides = array<i32>} : memref<1x128xf32, #tpu.memory_space<vmem>>, vector<1x128xf32>,
    } else {
    }
    %c0_i32_65 = arith.constant 0 : i32
    %83 = arith.cmpi eq, %arg0, %c0_i32_65 : i32
    %84 = arith.extui %83 : i1 to i32
    %c0_i32_66 = arith.constant 0 : i32
    %85 = arith.cmpi ne, %84, %c0_i32_66 : i32
    scf.if %85 {
      %c0_69 = arith.constant 0 : index
      %c0_70 = arith.constant 0 : index
      %89 = vector.load %arg8[%c0_69, %c0_70] : memref<1x128xf32, #tpu.memory_space<vmem>>, vector<1x128xf32>
      %cst_71 = arith.constant dense<0.000000e+00> : vector<128xf32>
      %90 = vector.multi_reduction <add>, %77, %cst_71 [0] : vector<256x128xf32> to vector<128xf32>
      %91 = vector.shape_cast %90 : vector<128xf32> to vector<1x128xf32>
      %92 = arith.addf %89, %91 : vector<1x128xf32>
      %c0_72 = arith.constant 0 : index
      %c0_73 = arith.constant 0 : index
      %93 = vector.load %arg8[%c0_72, %c0_73] : memref<1x128xf32, #tpu.memory_space<vmem>>, vector<1x128xf32>
      tpu.vector_store %arg8[%c0_72, %c0_73], %92 {strides = array<i32>} : memref<1x128xf32, #tpu.memory_space<vmem>>, vector<1x128xf32>,
      %c0_74 = arith.constant 0 : index
      %c0_75 = arith.constant 0 : index
      %94 = vector.load %arg9[%c0_74, %c0_75] : memref<1x128xf32, #tpu.memory_space<vmem>>, vector<1x128xf32>
      %95 = arith.mulf %77, %77 : vector<256x128xf32>
      %cst_76 = arith.constant dense<0.000000e+00> : vector<128xf32>
      %96 = vector.multi_reduction <add>, %95, %cst_76 [0] : vector<256x128xf32> to vector<128xf32>
      %97 = vector.shape_cast %96 : vector<128xf32> to vector<1x128xf32>
      %98 = arith.addf %94, %97 : vector<1x128xf32>
      %c0_77 = arith.constant 0 : index
      %c0_78 = arith.constant 0 : index
      %99 = vector.load %arg9[%c0_77, %c0_78] : memref<1x128xf32, #tpu.memory_space<vmem>>, vector<1x128xf32>
      tpu.vector_store %arg9[%c0_77, %c0_78], %98 {strides = array<i32>} : memref<1x128xf32, #tpu.memory_space<vmem>>, vector<1x128xf32>,
    } else {
    }
    %c1_i32_67 = arith.constant 1 : i32
    %86 = arith.cmpi eq, %arg0, %c1_i32_67 : i32
    %87 = arith.extui %86 : i1 to i32
    %c0_i32_68 = arith.constant 0 : i32
    %88 = arith.cmpi ne, %87, %c0_i32_68 : i32
    scf.if %88 {
      %c0_69 = arith.constant 0 : index
      %c0_70 = arith.constant 0 : index
      %89 = vector.load %arg8[%c0_69, %c0_70] : memref<1x128xf32, #tpu.memory_space<vmem>>, vector<1x128xf32>
      %cst_71 = arith.constant 0.001953125 : f32
      %90 = vector.broadcast %cst_71 : f32 to vector<1x128xf32>
      %91 = arith.mulf %89, %90 : vector<1x128xf32>
      %c0_72 = arith.constant 0 : index
      %c0_73 = arith.constant 0 : index
      %92 = vector.load %arg9[%c0_72, %c0_73] : memref<1x128xf32, #tpu.memory_space<vmem>>, vector<1x128xf32>
      %cst_74 = arith.constant 0.001953125 : f32
      %93 = vector.broadcast %cst_74 : f32 to vector<1x128xf32>
      %94 = arith.mulf %92, %93 : vector<1x128xf32>
      %95 = arith.mulf %91, %91 : vector<1x128xf32>
      %96 = arith.subf %94, %95 : vector<1x128xf32>
      %c0_75 = arith.constant 0 : index
      %c0_76 = arith.constant 0 : index
      %97 = vector.load %arg5[%c0_75, %c0_76] : memref<1x128xf32, #tpu.memory_space<vmem>>, vector<1x128xf32>
      %cst_77 = arith.constant 9.99999974E-6 : f32
      %98 = vector.broadcast %cst_77 : f32 to vector<1x128xf32>
      %99 = arith.addf %96, %98 : vector<1x128xf32>
      %100 = math.rsqrt %99 : vector<1x128xf32>
      %101 = arith.mulf %97, %100 : vector<1x128xf32>
      %c0_78 = arith.constant 0 : index
      %c0_79 = arith.constant 0 : index
      %102 = vector.load %arg6[%c0_78, %c0_79] : memref<1x128xf32, #tpu.memory_space<vmem>>, vector<1x128xf32>
      %103 = arith.mulf %91, %101 : vector<1x128xf32>
      %104 = arith.subf %102, %103 : vector<1x128xf32>
      %105 = vector.broadcast %101 : vector<1x128xf32> to vector<256x128xf32>
      %106 = arith.mulf %77, %105 : vector<256x128xf32>
      %107 = vector.broadcast %104 : vector<1x128xf32> to vector<256x128xf32>
      %108 = arith.addf %106, %107 : vector<256x128xf32>
      %cst_80 = arith.constant 0.000000e+00 : f32
      %109 = vector.broadcast %cst_80 : f32 to vector<256x128xf32>
      %110 = arith.maximumf %108, %109 : vector<256x128xf32>
      %111 = vector.shape_cast %110 : vector<256x128xf32> to vector<2x8x16x128xf32>
      %c0_81 = arith.constant 0 : index
      %c0_82 = arith.constant 0 : index
      %c0_83 = arith.constant 0 : index
      %c0_84 = arith.constant 0 : index
      %112 = vector.load %arg7[%c0_81, %c0_82, %c0_83, %c0_84] : memref<2x8x16x128xf32, #tpu.memory_space<vmem>>, vector<2x8x16x128xf32>
      tpu.vector_store %arg7[%c0_81, %c0_82, %c0_83, %c0_84], %111 {strides = array<i32>} : memref<2x8x16x128xf32, #tpu.memory_space<vmem>>, vector<2x8x16x128xf32>,
    } else {
    }
    return
  }
  func.func @transform_0(%arg0: i32, %arg1: i32) -> (i32, i32, i32, i32) {
    %c0_i32 = arith.constant 0 : i32
    %c0_i32_0 = arith.constant 0 : i32
    %c0_i32_1 = arith.constant 0 : i32
    %c0_i32_2 = arith.constant 0 : i32
    %c0_i32_3 = arith.constant 0 : i32
    return %c0_i32, %c0_i32_0, %c0_i32_1, %c0_i32_2 : i32, i32, i32, i32
  }
  func.func @transform_1(%arg0: i32, %arg1: i32) -> (i32, i32, i32) {
    %c0_i32 = arith.constant 0 : i32
    %c0_i32_0 = arith.constant 0 : i32
    %c0_i32_1 = arith.constant 0 : i32
    %c0_i32_2 = arith.constant 0 : i32
    return %c0_i32, %c0_i32_0, %c0_i32_1 : i32, i32, i32
  }
  func.func @transform_2(%arg0: i32, %arg1: i32) -> (i32, i32) {
    %c0_i32 = arith.constant 0 : i32
    %c0_i32_0 = arith.constant 0 : i32
    %c0_i32_1 = arith.constant 0 : i32
    return %c0_i32, %c0_i32_0 : i32, i32
  }
  func.func @transform_3(%arg0: i32, %arg1: i32) -> (i32, i32) {
    %c0_i32 = arith.constant 0 : i32
    %c0_i32_0 = arith.constant 0 : i32
    %c0_i32_1 = arith.constant 0 : i32
    return %c0_i32, %c0_i32_0 : i32, i32
  }
  func.func @transform_4(%arg0: i32, %arg1: i32) -> (i32, i32) {
    %c0_i32 = arith.constant 0 : i32
    %c0_i32_0 = arith.constant 0 : i32
    %c0_i32_1 = arith.constant 0 : i32
    return %c0_i32, %c0_i32_0 : i32, i32
  }
  func.func @transform_5(%arg0: i32, %arg1: i32) -> (i32, i32, i32, i32) {
    %0 = arith.muli %arg0, %arg1 : i32
    %c0_i32 = arith.constant 0 : i32
    %c0_i32_0 = arith.constant 0 : i32
    %c0_i32_1 = arith.constant 0 : i32
    %c0_i32_2 = arith.constant 0 : i32
    return %c0_i32, %0, %c0_i32_0, %c0_i32_1 : i32, i32, i32, i32
  }
}

</mosaic_0001>

<llo_original>
// kernel: tpu_custom_call.1
$region0: #{tpu_custom_call.1}
  #allocation0 [shape = 'u32[]', space=smem, size = 0x4, offset = 0x4, fixed_abs, tag = 'smem constant byte address 0x4 - core index']
  #allocation1 [shape = 'u32[72,128]{1,0:T(1,128)}', space=vmem, size = 0x9000, scoped, tag = 'internal scratch']
  #allocation2 [shape = 'f32[1,128]{1,0:T(1,128)}', space=vmem, size = 0x200, scoped, tag = 'scratch operand']
  #allocation3 [shape = 'f32[1,128]{1,0:T(1,128)}', space=vmem, size = 0x200, scoped, tag = 'scratch operand']
  #allocation6 [shape = 's32[]', space=sflag, size = 0x4, offset = 0, fixed_abs, tag = 'sflag constant byte address 0x0 - dummy sync flag']
  %s0 = inlined_call_operand.vmem [shape: bf16[2,18,18,4], index: 0, kind: input, shape index: {}]
  %s1 = inlined_call_operand.vmem [shape: bf16[9,4,128], index: 1, kind: input, shape index: {}]
  %s2 = inlined_call_operand.vmem [shape: f32[1,128], index: 2, kind: input, shape index: {}]
  %s3 = inlined_call_operand.vmem [shape: f32[1,128], index: 3, kind: input, shape index: {}]
  %s4 = inlined_call_operand.vmem [shape: f32[1,128], index: 4, kind: input, shape index: {}]
  %s5 = inlined_call_operand.hbm [shape: f32[2,16,16,128], index: 5, kind: output, shape index: {}]
  %s6 = sld [smem:[#allocation0]]
  $region65: #{tpu_custom_call.1} parent=0
    _
  %s8 = ssub.s32 1, %s6
  %s9 = scalar_select 0, %s8, %s6
  $region1: #{tpu_custom_call.1} parent=0
    #allocation4 [shape = 'u8[262144]{0}', space=vmem, size = 0x40000, scoped, tag = 'output window, operand 0']
    #allocation5 [shape = 's32[2]{0}', space=sflag, size = 0x8, scoped, tag = 'scoped memory for tpu_custom_call.1']
    %10 = vsyncpa [#allocation5], 0
    %s11 = scalar_lea.sflag [#allocation5], 1
    %12 = vsyncpa %s11, 0
    loop: start=0, step=1, limit=6
    $region2: #{tpu_custom_call.1} parent=1 // loop_pre_header
      _
    $region3: #{tpu_custom_call.1} parent=1 // loop_header
      %s14 = sphi 0, %s18
      %p15 = scmp.ge.s32.totalorder %s14, 6
      %s21 = sphi 0, %s33
      %s22 = sphi 0, %s29
      %s23 = sphi 0, %s21
      %s24 = sphi 0, %s22
      %s25 = sphi 0, %s23
      %s26 = sphi 0, %s24
      %s34 = sphi 0, %s34
      %s36 = sphi 0, %s34
      %s37 = sphi 0, %s36
      %s51 = sphi 0, %s37
      %s55 = sphi 0, %s55
      %s57 = sphi 0, %s55
      %s58 = sphi 0, %s57
      %s72 = sphi 0, %s58
      %s76 = sphi 0, %s76
      %s78 = sphi 0, %s76
      %s79 = sphi 0, %s78
      %s93 = sphi 0, %s79
      %s97 = sphi 0, %s97
      %s99 = sphi 0, %s97
      %s100 = sphi 0, %s99
      %s114 = sphi 0, %s100
      %s118 = sphi 0, %s118
      %s120 = sphi 0, %s118
      %s121 = sphi 0, %s120
      %s135 = sphi 0, %s121
      %s143 = sphi 0, %s145
      %s146 = sphi 0, %s143
      %s147 = sphi 0, %s146
      %s163 = sphi 0, %s147
    $region4: #{tpu_custom_call.1} parent=1 // loop_header_branch
      %17 = sbr.rel (%p15) target = $region8
    $region5: #{tpu_custom_call.1} parent=1 // loop_body
      %s19 = ssub.s32 %s14, 1
      %s20 = ssub.s32 %s14, 2
      %s27 = sadd.s32 1, %s22
      %p28 = scmp.ge.s32.totalorder %s27, 2
      %s29 = scalar_select %p28, 0, %s27
      %s30 = sadd.s32 1, %s21
      %s31 = scalar_select %p28, %s30, %s21
      %p32 = scmp.ge.s32.totalorder %s31, 2
      %s33 = scalar_select %p32, 0, %s31
      %s35 = sadd.s32 %s34, 1
      %p38 = scmp.eq.s32.totalorder %s14, 3
      %p39 = scmp.ne.s32.totalorder %s34, %s36
      %p40 = scmp.eq.s32.totalorder %s14, 0
      %p41 = por %p39, %p40
      %p42 = scmp.ne.s32.totalorder %s34, %s36
      %p43 = scmp.eq.s32.totalorder %s19, 3
      %p44 = por %p42, %p43
      %p45 = scmp.ne.s32.totalorder %s36, %s37
      %p46 = scmp.eq.s32.totalorder %s19, 0
      %p47 = por %p45, %p46
      %p48 = scmp.ne.s32.totalorder %s36, %s37
      %p49 = scmp.eq.s32.totalorder %s20, 3
      %p50 = por %p48, %p49
      %p52 = scmp.ne.s32.totalorder %s37, %s51
      %p53 = scmp.eq.s32.totalorder %s20, 0
      %p54 = por %p52, %p53
      %s56 = sadd.s32 %s55, 1
      %p59 = scmp.eq.s32.totalorder %s14, 3
      %p60 = scmp.ne.s32.totalorder %s55, %s57
      %p61 = scmp.eq.s32.totalorder %s14, 0
      %p62 = por %p60, %p61
      %p63 = scmp.ne.s32.totalorder %s55, %s57
      %p64 = scmp.eq.s32.totalorder %s19, 3
      %p65 = por %p63, %p64
      %p66 = scmp.ne.s32.totalorder %s57, %s58
      %p67 = scmp.eq.s32.totalorder %s19, 0
      %p68 = por %p66, %p67
      %p69 = scmp.ne.s32.totalorder %s57, %s58
      %p70 = scmp.eq.s32.totalorder %s20, 3
      %p71 = por %p69, %p70
      %p73 = scmp.ne.s32.totalorder %s58, %s72
      %p74 = scmp.eq.s32.totalorder %s20, 0
      %p75 = por %p73, %p74
      %s77 = sadd.s32 %s76, 1
      %p80 = scmp.eq.s32.totalorder %s14, 3
      %p81 = scmp.ne.s32.totalorder %s76, %s78
      %p82 = scmp.eq.s32.totalorder %s14, 0
      %p83 = por %p81, %p82
      %p84 = scmp.ne.s32.totalorder %s76, %s78
      %p85 = scmp.eq.s32.totalorder %s19, 3
      %p86 = por %p84, %p85
      %p87 = scmp.ne.s32.totalorder %s78, %s79
      %p88 = scmp.eq.s32.totalorder %s19, 0
      %p89 = por %p87, %p88
      %p90 = scmp.ne.s32.totalorder %s78, %s79
      %p91 = scmp.eq.s32.totalorder %s20, 3
      %p92 = por %p90, %p91
      %p94 = scmp.ne.s32.totalorder %s79, %s93
      %p95 = scmp.eq.s32.totalorder %s20, 0
      %p96 = por %p94, %p95
      %s98 = sadd.s32 %s97, 1
      %p101 = scmp.eq.s32.totalorder %s14, 3
      %p102 = scmp.ne.s32.totalorder %s97, %s99
      %p103 = scmp.eq.s32.totalorder %s14, 0
      %p104 = por %p102, %p103
      %p105 = scmp.ne.s32.totalorder %s97, %s99
      %p106 = scmp.eq.s32.totalorder %s19, 3
      %p107 = por %p105, %p106
      %p108 = scmp.ne.s32.totalorder %s99, %s100
      %p109 = scmp.eq.s32.totalorder %s19, 0
      %p110 = por %p108, %p109
      %p111 = scmp.ne.s32.totalorder %s99, %s100
      %p112 = scmp.eq.s32.totalorder %s20, 3
      %p113 = por %p111, %p112
      %p115 = scmp.ne.s32.totalorder %s100, %s114
      %p116 = scmp.eq.s32.totalorder %s20, 0
      %p117 = por %p115, %p116
      %s119 = sadd.s32 %s118, 1
      %p122 = scmp.eq.s32.totalorder %s14, 3
      %p123 = scmp.ne.s32.totalorder %s118, %s120
      %p124 = scmp.eq.s32.totalorder %s14, 0
      %p125 = por %p123, %p124
      %p126 = scmp.ne.s32.totalorder %s118, %s120
      %p127 = scmp.eq.s32.totalorder %s19, 3
      %p128 = por %p126, %p127
      %p129 = scmp.ne.s32.totalorder %s120, %s121
      %p130 = scmp.eq.s32.totalorder %s19, 0
      %p131 = por %p129, %p130
      %p132 = scmp.ne.s32.totalorder %s120, %s121
      %p133 = scmp.eq.s32.totalorder %s20, 3
      %p134 = por %p132, %p133
      %p136 = scmp.ne.s32.totalorder %s121, %s135
      %p137 = scmp.eq.s32.totalorder %s20, 0
      %p138 = por %p136, %p137
      %s139 = smul.u32 %s21, %s22
      %s140 = smul.u32 %s33, %s29
      %s141 = ssub.s32 %s139, %s140
      %p142 = scmp.eq.s32.totalorder %s141, 0
      %s144 = sadd.s32 %s143, 1
      %s145 = scalar_select %p142, %s143, %s144
      %p148 = pneg %p142
      %p149 = scmp.eq.s32.totalorder %s14, 3
      %p150 = por %p148, %p149
      %p151 = scmp.ne.s32.totalorder %s143, %s146
      %p152 = scmp.eq.s32.totalorder %s14, 0
      %p153 = por %p151, %p152
      %p154 = scmp.ne.s32.totalorder %s143, %s146
      %p155 = scmp.eq.s32.totalorder %s19, 3
      %p156 = por %p154, %p155
      %p157 = scmp.ne.s32.totalorder %s146, %s147
      %p158 = scmp.eq.s32.totalorder %s19, 0
      %p159 = por %p157, %p158
      %p160 = scmp.ne.s32.totalorder %s146, %s147
      %p161 = scmp.eq.s32.totalorder %s20, 3
      %p162 = por %p160, %p161
      %p164 = scmp.ne.s32.totalorder %s147, %s163
      %p165 = scmp.eq.s32.totalorder %s20, 0
      %p166 = por %p164, %p165
      %p167 = scmp.le.s32.totalorder 1, %s14
      %p168 = scmp.lt.s32.totalorder %s14, 5
      %p169 = pnand %p167, %p168
      %p170 = pneg %p169
      // Predicated region
      $region9: #{tpu_custom_call.1} parent=5 // pred_check
        _
      $region10: #{tpu_custom_call.1} parent=5 // pred_check_branch
        %172 = sbr.rel (%p169) target = $region12
      $region11: #{tpu_custom_call.1} parent=5 // pred_region
        %s173 = ssub.s32 %s14, 1
        // Predicated region
        $region13: #{tpu_custom_call.1} parent=11 // pred_check
          %p174 = pneg %p47
        $region14: #{tpu_custom_call.1} parent=11 // pred_check_branch
          %176 = sbr.rel (%p174) target = $region16
        $region15: #{tpu_custom_call.1} parent=11 // pred_region
          _
        $region16: #{tpu_custom_call.1} parent=11 // pred_fallthru
          _
        // Predicated region
        $region17: #{tpu_custom_call.1} parent=11 // pred_check
          %p177 = pneg %p68
        $region18: #{tpu_custom_call.1} parent=11 // pred_check_branch
          %179 = sbr.rel (%p177) target = $region20
        $region19: #{tpu_custom_call.1} parent=11 // pred_region
          _
        $region20: #{tpu_custom_call.1} parent=11 // pred_fallthru
          _
        // Predicated region
        $region21: #{tpu_custom_call.1} parent=11 // pred_check
          %p180 = pneg %p89
        $region22: #{tpu_custom_call.1} parent=11 // pred_check_branch
          %182 = sbr.rel (%p180) target = $region24
        $region23: #{tpu_custom_call.1} parent=11 // pred_region
          _
        $region24: #{tpu_custom_call.1} parent=11 // pred_fallthru
          _
        // Predicated region
        $region25: #{tpu_custom_call.1} parent=11 // pred_check
          %p183 = pneg %p110
        $region26: #{tpu_custom_call.1} parent=11 // pred_check_branch
          %185 = sbr.rel (%p183) target = $region28
        $region27: #{tpu_custom_call.1} parent=11 // pred_region
          _
        $region28: #{tpu_custom_call.1} parent=11 // pred_fallthru
          _
        // Predicated region
        $region29: #{tpu_custom_call.1} parent=11 // pred_check
          %p186 = pneg %p131
        $region30: #{tpu_custom_call.1} parent=11 // pred_check_branch
          %188 = sbr.rel (%p186) target = $region32
        $region31: #{tpu_custom_call.1} parent=11 // pred_region
          _
        $region32: #{tpu_custom_call.1} parent=11 // pred_fallthru
          _
      $region12: #{tpu_custom_call.1} parent=5 // pred_fallthru
        _
      %p189 = scmp.lt.s32.totalorder %s14, 4
      // Predicated region
      $region33: #{tpu_custom_call.1} parent=5 // pred_check
        %p190 = pneg %p189
      $region34: #{tpu_custom_call.1} parent=5 // pred_check_branch
        %192 = sbr.rel (%p190) target = $region36
      $region35: #{tpu_custom_call.1} parent=5 // pred_region
        _
      $region36: #{tpu_custom_call.1} parent=5 // pred_fallthru
        _
      %p193 = scmp.le.s32.totalorder 1, %s14
      %p194 = scmp.lt.s32.totalorder %s14, 5
      %p195 = pnand %p193, %p194
      %p196 = pneg %p195
      // Predicated region
      $region37: #{tpu_custom_call.1} parent=5 // pred_check
        _
      $region38: #{tpu_custom_call.1} parent=5 // pred_check_branch
        %198 = sbr.rel (%p195) target = $region40
      $region39: #{tpu_custom_call.1} parent=5 // pred_region
        %s199 = ssub.s32 %s14, 1
        %p200 = pneg %p47
        %p201 = pneg %p44
        %p202 = pneg %p68
        %p203 = pneg %p65
        %p204 = pneg %p89
        %p205 = pneg %p86
        %p206 = pneg %p110
        %p207 = pneg %p107
        %p208 = pneg %p131
        %p209 = pneg %p128
        %p210 = pneg %p159
        %p211 = pneg %p156
        %s212 = sand.u32 %s146, 1
        %s213 = scalar_lea.sflag [#allocation5], %s212
        %s214 = sand.u32 %s146, 1
        %s215 = smul.addr %s214, 256
        %s216 = scalar_lea.vmem [#allocation4], %s215
        %s217 = smul.u32 %s23, %s24
        %s218 = smul.u32 8, %s217
        %s220 = smul.u32 %s24, 8
        %s221 = smul.u32 %s220, 3
        %s222 = smul.addr %s221, 4
        %s223 = scalar_lea.vmem %s0, %s222
        %v224 = vld [vmem:[%s223] sm:$0xf]
        %v225 = vld [vmem:[%s223 + $0x4] sm:$0xf]
        %v226 = vld [vmem:[%s223 + $0xc] sm:$0xf]
        %v227 = vld [vmem:[%s223 + $0x10] sm:$0xf]
        %v228 = vld [vmem:[%s223 + $0x18] sm:$0xf]
        %v229 = vld [vmem:[%s223 + $0x1c] sm:$0xf]
        %v230 = vld [vmem:[%s223 + $0x24] sm:$0xf]
        %v231 = vld [vmem:[%s223 + $0x28] sm:$0xf]
        %v232 = vld [vmem:[%s223 + $0x30] sm:$0xf]
        %v233 = vld [vmem:[%s223 + $0x34] sm:$0xf]
        %v234 = vld [vmem:[%s223 + $0x3c] sm:$0xf]
        %v235 = vld [vmem:[%s223 + $0x40] sm:$0xf]
        %v236 = vld [vmem:[%s223 + $0x48] sm:$0xf]
        %v237 = vld [vmem:[%s223 + $0x4c] sm:$0xf]
        %v238 = vld [vmem:[%s223 + $0x54] sm:$0xf]
        %v239 = vld [vmem:[%s223 + $0x58] sm:$0xf]
        %v240 = vld [vmem:[%s223 + $0xd8] sm:$0xf]
        %v241 = vld [vmem:[%s223 + $0xdc] sm:$0xf]
        %v242 = vld [vmem:[%s223 + $0xe4] sm:$0xf]
        %v243 = vld [vmem:[%s223 + $0xe8] sm:$0xf]
        %v244 = vld [vmem:[%s223 + $0xf0] sm:$0xf]
        %v245 = vld [vmem:[%s223 + $0xf4] sm:$0xf]
        %v246 = vld [vmem:[%s223 + $0xfc] sm:$0xf]
        %v247 = vld [vmem:[%s223 + $0x100] sm:$0xf]
        %v248 = vld [vmem:[%s223 + $0x108] sm:$0xf]
        %v249 = vld [vmem:[%s223 + $0x10c] sm:$0xf]
        %v250 = vld [vmem:[%s223 + $0x114] sm:$0xf]
        %v251 = vld [vmem:[%s223 + $0x118] sm:$0xf]
        %v252 = vld [vmem:[%s223 + $0x120] sm:$0xf]
        %v253 = vld [vmem:[%s223 + $0x124] sm:$0xf]
        %v254 = vld [vmem:[%s223 + $0x12c] sm:$0xf]
        %v255 = vld [vmem:[%s223 + $0x130] sm:$0xf]
        %v256 = vld [vmem:[%s1] sm:$0x3]
        %v257 = vld [vmem:[%s223 + $0x8] sm:$0x1]
        %v258 = vld [vmem:[%s223 + $0x14] sm:$0x1]
        %v259 = vld [vmem:[%s223 + $0x20] sm:$0x1]
        %v260 = vld [vmem:[%s223 + $0x2c] sm:$0x1]
        %v261 = vld [vmem:[%s223 + $0x38] sm:$0x1]
        %v262 = vld [vmem:[%s223 + $0x44] sm:$0x1]
        %v263 = vld [vmem:[%s223 + $0x50] sm:$0x1]
        %v264 = vld [vmem:[%s223 + $0x5c] sm:$0x1]
        %v265 = vld [vmem:[%s223 + $0xe0] sm:$0x1]
        %v266 = vld [vmem:[%s223 + $0xec] sm:$0x1]
        %v267 = vld [vmem:[%s223 + $0xf8] sm:$0x1]
        %v268 = vld [vmem:[%s223 + $0x104] sm:$0x1]
        %v269 = vld [vmem:[%s223 + $0x110] sm:$0x1]
        %v270 = vld [vmem:[%s223 + $0x11c] sm:$0x1]
        %v271 = vld [vmem:[%s223 + $0x128] sm:$0x1]
        %v272 = vld [vmem:[%s223 + $0x134] sm:$0x1]
        %vm273 = vsmask.f32 3328
        %vm274 = vsmask.f32 7440
        %vm275 = vmor %vm273, %vm274
        %v277 = vshrl.u32 %v224, 16
        %v279 = vrot.slane %v277, 4
        %v280 = vshll.u32 %v224, 16
        %v282 = vrot.slane %v280, 5
        %v283 = vor.u32 %v279, %v282
        %v284 = vrot.slane %v283, 4
        %v286 = vshll.u32 %v225, 16
        %v288 = vrot.slane %v286, 5
        %v289 = vsel %vm275, %v284, %v288
        %v290 = vshrl.u32 %v225, 16
        %v292 = vrot.slane %v290, 4
        %v293 = vor.u32 %v292, %v288
        %v294 = vrot.slane %v293, 4
        %v296 = vshll.u32 %v257, 16
        %v298 = vrot.slane %v296, 5
        %v299 = vsel %vm275, %v294, %v298
        %v301 = vshrl.u32 %v226, 16
        %v303 = vrot.slane %v301, 4
        %v304 = vshll.u32 %v226, 16
        %v306 = vrot.slane %v304, 5
        %v307 = vor.u32 %v303, %v306
        %v308 = vrot.slane %v307, 4
        %v310 = vshll.u32 %v227, 16
        %v312 = vrot.slane %v310, 5
        %v313 = vsel %vm275, %v308, %v312
        %v314 = vshrl.u32 %v227, 16
        %v316 = vrot.slane %v314, 4
        %v317 = vor.u32 %v316, %v312
        %v318 = vrot.slane %v317, 4
        %v320 = vshll.u32 %v258, 16
        %v322 = vrot.slane %v320, 5
        %v323 = vsel %vm275, %v318, %v322
        %v325 = vshrl.u32 %v228, 16
        %v327 = vrot.slane %v325, 4
        %v328 = vshll.u32 %v228, 16
        %v330 = vrot.slane %v328, 5
        %v331 = vor.u32 %v327, %v330
        %v332 = vrot.slane %v331, 4
        %v334 = vshll.u32 %v229, 16
        %v336 = vrot.slane %v334, 5
        %v337 = vsel %vm275, %v332, %v336
        %v338 = vshrl.u32 %v229, 16
        %v340 = vrot.slane %v338, 4
        %v341 = vor.u32 %v340, %v336
        %v342 = vrot.slane %v341, 4
        %v344 = vshll.u32 %v259, 16
        %v346 = vrot.slane %v344, 5
        %v347 = vsel %vm275, %v342, %v346
        %v349 = vshrl.u32 %v230, 16
        %v351 = vrot.slane %v349, 4
        %v352 = vshll.u32 %v230, 16
        %v354 = vrot.slane %v352, 5
        %v355 = vor.u32 %v351, %v354
        %v356 = vrot.slane %v355, 4
        %v358 = vshll.u32 %v231, 16
        %v360 = vrot.slane %v358, 5
        %v361 = vsel %vm275, %v356, %v360
        %v362 = vshrl.u32 %v231, 16
        %v364 = vrot.slane %v362, 4
        %v365 = vor.u32 %v364, %v360
        %v366 = vrot.slane %v365, 4
        %v368 = vshll.u32 %v260, 16
        %v370 = vrot.slane %v368, 5
        %v371 = vsel %vm275, %v366, %v370
        %v373 = vshrl.u32 %v232, 16
        %v375 = vrot.slane %v373, 4
        %v376 = vshll.u32 %v232, 16
        %v378 = vrot.slane %v376, 5
        %v379 = vor.u32 %v375, %v378
        %v380 = vrot.slane %v379, 4
        %v382 = vshll.u32 %v233, 16
        %v384 = vrot.slane %v382, 5
        %v385 = vsel %vm275, %v380, %v384
        %v386 = vshrl.u32 %v233, 16
        %v388 = vrot.slane %v386, 4
        %v389 = vor.u32 %v388, %v384
        %v390 = vrot.slane %v389, 4
        %v392 = vshll.u32 %v261, 16
        %v394 = vrot.slane %v392, 5
        %v395 = vsel %vm275, %v390, %v394
        %v397 = vshrl.u32 %v234, 16
        %v399 = vrot.slane %v397, 4
        %v400 = vshll.u32 %v234, 16
        %v402 = vrot.slane %v400, 5
        %v403 = vor.u32 %v399, %v402
        %v404 = vrot.slane %v403, 4
        %v406 = vshll.u32 %v235, 16
        %v408 = vrot.slane %v406, 5
        %v409 = vsel %vm275, %v404, %v408
        %v410 = vshrl.u32 %v235, 16
        %v412 = vrot.slane %v410, 4
        %v413 = vor.u32 %v412, %v408
        %v414 = vrot.slane %v413, 4
        %v416 = vshll.u32 %v262, 16
        %v418 = vrot.slane %v416, 5
        %v419 = vsel %vm275, %v414, %v418
        %v421 = vshrl.u32 %v236, 16
        %v423 = vrot.slane %v421, 4
        %v424 = vshll.u32 %v236, 16
        %v426 = vrot.slane %v424, 5
        %v427 = vor.u32 %v423, %v426
        %v428 = vrot.slane %v427, 4
        %v430 = vshll.u32 %v237, 16
        %v432 = vrot.slane %v430, 5
        %v433 = vsel %vm275, %v428, %v432
        %v434 = vshrl.u32 %v237, 16
        %v436 = vrot.slane %v434, 4
        %v437 = vor.u32 %v436, %v432
        %v438 = vrot.slane %v437, 4
        %v440 = vshll.u32 %v263, 16
        %v442 = vrot.slane %v440, 5
        %v443 = vsel %vm275, %v438, %v442
        %v445 = vshrl.u32 %v238, 16
        %v447 = vrot.slane %v445, 4
        %v448 = vshll.u32 %v238, 16
        %v450 = vrot.slane %v448, 5
        %v451 = vor.u32 %v447, %v450
        %v452 = vrot.slane %v451, 4
        %v454 = vshll.u32 %v239, 16
        %v456 = vrot.slane %v454, 5
        %v457 = vsel %vm275, %v452, %v456
        %v458 = vshrl.u32 %v239, 16
        %v460 = vrot.slane %v458, 4
        %v461 = vor.u32 %v460, %v456
        %v462 = vrot.slane %v461, 4
        %v464 = vshll.u32 %v264, 16
        %v466 = vrot.slane %v464, 5
        %v467 = vsel %vm275, %v462, %v466
        %v469 = vshrl.u32 %v240, 16
        %v471 = vrot.slane %v469, 4
        %v472 = vshll.u32 %v240, 16
        %v474 = vrot.slane %v472, 5
        %v475 = vor.u32 %v471, %v474
        %v476 = vrot.slane %v475, 4
        %v478 = vshll.u32 %v241, 16
        %v480 = vrot.slane %v478, 5
        %v481 = vsel %vm275, %v476, %v480
        %v482 = vshrl.u32 %v241, 16
        %v484 = vrot.slane %v482, 4
        %v485 = vor.u32 %v484, %v480
        %v486 = vrot.slane %v485, 4
        %v488 = vshll.u32 %v265, 16
        %v490 = vrot.slane %v488, 5
        %v491 = vsel %vm275, %v486, %v490
        %v493 = vshrl.u32 %v242, 16
        %v495 = vrot.slane %v493, 4
        %v496 = vshll.u32 %v242, 16
        %v498 = vrot.slane %v496, 5
        %v499 = vor.u32 %v495, %v498
        %v500 = vrot.slane %v499, 4
        %v502 = vshll.u32 %v243, 16
        %v504 = vrot.slane %v502, 5
        %v505 = vsel %vm275, %v500, %v504
        %v506 = vshrl.u32 %v243, 16
        %v508 = vrot.slane %v506, 4
        %v509 = vor.u32 %v508, %v504
        %v510 = vrot.slane %v509, 4
        %v512 = vshll.u32 %v266, 16
        %v514 = vrot.slane %v512, 5
        %v515 = vsel %vm275, %v510, %v514
        %v517 = vshrl.u32 %v244, 16
        %v519 = vrot.slane %v517, 4
        %v520 = vshll.u32 %v244, 16
        %v522 = vrot.slane %v520, 5
        %v523 = vor.u32 %v519, %v522
        %v524 = vrot.slane %v523, 4
        %v526 = vshll.u32 %v245, 16
        %v528 = vrot.slane %v526, 5
        %v529 = vsel %vm275, %v524, %v528
        %v530 = vshrl.u32 %v245, 16
        %v532 = vrot.slane %v530, 4
        %v533 = vor.u32 %v532, %v528
        %v534 = vrot.slane %v533, 4
        %v536 = vshll.u32 %v267, 16
        %v538 = vrot.slane %v536, 5
        %v539 = vsel %vm275, %v534, %v538
        %v541 = vshrl.u32 %v246, 16
        %v543 = vrot.slane %v541, 4
        %v544 = vshll.u32 %v246, 16
        %v546 = vrot.slane %v544, 5
        %v547 = vor.u32 %v543, %v546
        %v548 = vrot.slane %v547, 4
        %v550 = vshll.u32 %v247, 16
        %v552 = vrot.slane %v550, 5
        %v553 = vsel %vm275, %v548, %v552
        %v554 = vshrl.u32 %v247, 16
        %v556 = vrot.slane %v554, 4
        %v557 = vor.u32 %v556, %v552
        %v558 = vrot.slane %v557, 4
        %v560 = vshll.u32 %v268, 16
        %v562 = vrot.slane %v560, 5
        %v563 = vsel %vm275, %v558, %v562
        %v565 = vshrl.u32 %v248, 16
        %v567 = vrot.slane %v565, 4
        %v568 = vshll.u32 %v248, 16
        %v570 = vrot.slane %v568, 5
        %v571 = vor.u32 %v567, %v570
        %v572 = vrot.slane %v571, 4
        %v574 = vshll.u32 %v249, 16
        %v576 = vrot.slane %v574, 5
        %v577 = vsel %vm275, %v572, %v576
        %v578 = vshrl.u32 %v249, 16
        %v580 = vrot.slane %v578, 4
        %v581 = vor.u32 %v580, %v576
        %v582 = vrot.slane %v581, 4
        %v584 = vshll.u32 %v269, 16
        %v586 = vrot.slane %v584, 5
        %v587 = vsel %vm275, %v582, %v586
        %v589 = vshrl.u32 %v250, 16
        %v591 = vrot.slane %v589, 4
        %v592 = vshll.u32 %v250, 16
        %v594 = vrot.slane %v592, 5
        %v595 = vor.u32 %v591, %v594
        %v596 = vrot.slane %v595, 4
        %v598 = vshll.u32 %v251, 16
        %v600 = vrot.slane %v598, 5
        %v601 = vsel %vm275, %v596, %v600
        %v602 = vshrl.u32 %v251, 16
        %v604 = vrot.slane %v602, 4
        %v605 = vor.u32 %v604, %v600
        %v606 = vrot.slane %v605, 4
        %v608 = vshll.u32 %v270, 16
        %v610 = vrot.slane %v608, 5
        %v611 = vsel %vm275, %v606, %v610
        %v613 = vshrl.u32 %v252, 16
        %v615 = vrot.slane %v613, 4
        %v616 = vshll.u32 %v252, 16
        %v618 = vrot.slane %v616, 5
        %v619 = vor.u32 %v615, %v618
        %v620 = vrot.slane %v619, 4
        %v622 = vshll.u32 %v253, 16
        %v624 = vrot.slane %v622, 5
        %v625 = vsel %vm275, %v620, %v624
        %v626 = vshrl.u32 %v253, 16
        %v628 = vrot.slane %v626, 4
        %v629 = vor.u32 %v628, %v624
        %v630 = vrot.slane %v629, 4
        %v632 = vshll.u32 %v271, 16
        %v634 = vrot.slane %v632, 5
        %v635 = vsel %vm275, %v630, %v634
        %v637 = vshrl.u32 %v254, 16
        %v639 = vrot.slane %v637, 4
        %v640 = vshll.u32 %v254, 16
        %v642 = vrot.slane %v640, 5
        %v643 = vor.u32 %v639, %v642
        %v644 = vrot.slane %v643, 4
        %v646 = vshll.u32 %v255, 16
        %v648 = vrot.slane %v646, 5
        %v649 = vsel %vm275, %v644, %v648
        %v650 = vshrl.u32 %v255, 16
        %v652 = vrot.slane %v650, 4
        %v653 = vor.u32 %v652, %v648
        %v654 = vrot.slane %v653, 4
        %v656 = vshll.u32 %v272, 16
        %v658 = vrot.slane %v656, 5
        %v659 = vsel %vm275, %v654, %v658
        %s660 = scalar_lea.vmem %s1, 2
        %v661 = vld [vmem:[%s660] sm:$0x3]
        %v662 = vunpack.c.l.b16 %v289
        %v663 = vunpack.c.l.b16 %v299
        %v664 = vunpack.c.l.b16 %v313
        %v665 = vunpack.c.l.b16 %v323
        %v666 = vunpack.c.l.b16 %v337
        %v667 = vunpack.c.l.b16 %v347
        %v668 = vunpack.c.l.b16 %v361
        %v669 = vunpack.c.l.b16 %v371
        %v670 = vunpack.c.l.b16 %v385
        %v671 = vunpack.c.l.b16 %v395
        %v672 = vunpack.c.l.b16 %v409
        %v673 = vunpack.c.l.b16 %v419
        %v674 = vunpack.c.l.b16 %v433
        %v675 = vunpack.c.l.b16 %v443
        %v676 = vunpack.c.l.b16 %v457
        %v677 = vunpack.c.l.b16 %v467
        %v678 = vunpack.c.l.b16 %v481
        %v679 = vunpack.c.l.b16 %v491
        %v680 = vunpack.c.l.b16 %v505
        %v681 = vunpack.c.l.b16 %v515
        %v682 = vunpack.c.l.b16 %v529
        %v683 = vunpack.c.l.b16 %v539
        %v684 = vunpack.c.l.b16 %v553
        %v685 = vunpack.c.l.b16 %v563
        %v686 = vunpack.c.l.b16 %v577
        %v687 = vunpack.c.l.b16 %v587
        %v688 = vunpack.c.l.b16 %v601
        %v689 = vunpack.c.l.b16 %v611
        %v690 = vunpack.c.l.b16 %v625
        %v691 = vunpack.c.l.b16 %v635
        %v692 = vunpack.c.l.b16 %v649
        %v693 = vunpack.c.l.b16 %v659
        %v694 = vpack.c.b16 %v663, %v662
        %v695 = vpack.c.b16 %v665, %v664
        %v696 = vpack.c.b16 %v667, %v666
        %v697 = vpack.c.b16 %v669, %v668
        %v698 = vpack.c.b16 %v671, %v670
        %v699 = vpack.c.b16 %v673, %v672
        %v700 = vpack.c.b16 %v675, %v674
        %v701 = vpack.c.b16 %v677, %v676
        %v702 = vpack.c.b16 %v679, %v678
        %v703 = vpack.c.b16 %v681, %v680
        %v704 = vpack.c.b16 %v683, %v682
        %v705 = vpack.c.b16 %v685, %v684
        %v706 = vpack.c.b16 %v687, %v686
        %v707 = vpack.c.b16 %v689, %v688
        %v708 = vpack.c.b16 %v691, %v690
        %v709 = vpack.c.b16 %v693, %v692
        %vm710 = vcmask 31744
        %v712 = vsel %vm710, %v694, 0
        %v715 = vsel %vm710, %v695, 0
        %v718 = vsel %vm710, %v696, 0
        %v721 = vsel %vm710, %v697, 0
        %v724 = vsel %vm710, %v698, 0
        %v727 = vsel %vm710, %v699, 0
        %v730 = vsel %vm710, %v700, 0
        %v733 = vsel %vm710, %v701, 0
        %v736 = vsel %vm710, %v702, 0
        %v739 = vsel %vm710, %v703, 0
        %v742 = vsel %vm710, %v704, 0
        %v745 = vsel %vm710, %v705, 0
        %v748 = vsel %vm710, %v706, 0
        %v751 = vsel %vm710, %v707, 0
        %v754 = vsel %vm710, %v708, 0
        %v757 = vsel %vm710, %v709, 0
        %vm759 = vcmask 1041408
        %v761 = vsel %vm759, %v661, 0
        %763 = vmatpush.bf16.msra.mxu0 0
        %764 = vmatpush.bf16.msra.mxu0 0
        %765 = vmatpush.bf16.msra.mxu0 0
        %766 = vmatpush.bf16.msra.mxu0 0
        %767 = vmatpush.bf16.msra.mxu0 0
        %768 = vmatpush.bf16.msra.mxu0 0
        %769 = vmatpush.bf16.msra.mxu0 0
        %770 = vmatpush.bf16.msra.mxu0 %v761
        %771 = vmatmul.bf16.gmra.mxu0 %v712
        %v772 = vpop.f32.mrf.mxu0
        %v773 = vadd.f32 0.0, %v772
        %v774 = vpop.f32.mrf.mxu0
        %v775 = vadd.f32 0.0, %v774
        %776 = vmatmul.bf16.gmra.mxu0 %v715
        %v777 = vpop.f32.mrf.mxu0
        %v778 = vadd.f32 0.0, %v777
        %v779 = vpop.f32.mrf.mxu0
        %v780 = vadd.f32 0.0, %v779
        %781 = vmatmul.bf16.gmra.mxu0 %v718
        %v782 = vpop.f32.mrf.mxu0
        %v783 = vadd.f32 0.0, %v782
        %v784 = vpop.f32.mrf.mxu0
        %v785 = vadd.f32 0.0, %v784
        %786 = vmatmul.bf16.gmra.mxu0 %v721
        %v787 = vpop.f32.mrf.mxu0
        %v788 = vadd.f32 0.0, %v787
        %v789 = vpop.f32.mrf.mxu0
        %v790 = vadd.f32 0.0, %v789
        %791 = vmatmul.bf16.gmra.mxu0 %v724
        %v792 = vpop.f32.mrf.mxu0
        %v793 = vadd.f32 0.0, %v792
        %v794 = vpop.f32.mrf.mxu0
        %v795 = vadd.f32 0.0, %v794
        %796 = vmatmul.bf16.gmra.mxu0 %v727
        %v797 = vpop.f32.mrf.mxu0
        %v798 = vadd.f32 0.0, %v797
        %v799 = vpop.f32.mrf.mxu0
        %v800 = vadd.f32 0.0, %v799
        %801 = vmatmul.bf16.gmra.mxu0 %v730
        %v802 = vpop.f32.mrf.mxu0
        %v803 = vadd.f32 0.0, %v802
        %v804 = vpop.f32.mrf.mxu0
        %v805 = vadd.f32 0.0, %v804
        %806 = vmatmul.bf16.gmra.mxu0 %v733
        %v807 = vpop.f32.mrf.mxu0
        %v808 = vadd.f32 0.0, %v807
        %v809 = vpop.f32.mrf.mxu0
        %v810 = vadd.f32 0.0, %v809
        %811 = vmatmul.bf16.gmra.mxu0 %v736
        %v812 = vpop.f32.mrf.mxu0
        %v813 = vadd.f32 0.0, %v812
        %v814 = vpop.f32.mrf.mxu0
        %v815 = vadd.f32 0.0, %v814
        %816 = vmatmul.bf16.gmra.mxu0 %v739
        %v817 = vpop.f32.mrf.mxu0
        %v818 = vadd.f32 0.0, %v817
        %v819 = vpop.f32.mrf.mxu0
        %v820 = vadd.f32 0.0, %v819
        %821 = vmatmul.bf16.gmra.mxu0 %v742
        %v822 = vpop.f32.mrf.mxu0
        %v823 = vadd.f32 0.0, %v822
        %v824 = vpop.f32.mrf.mxu0
        %v825 = vadd.f32 0.0, %v824
        %826 = vmatmul.bf16.gmra.mxu0 %v745
        %v827 = vpop.f32.mrf.mxu0
        %v828 = vadd.f32 0.0, %v827
        %v829 = vpop.f32.mrf.mxu0
        %v830 = vadd.f32 0.0, %v829
        %831 = vmatmul.bf16.gmra.mxu0 %v748
        %v832 = vpop.f32.mrf.mxu0
        %v833 = vadd.f32 0.0, %v832
        %v834 = vpop.f32.mrf.mxu0
        %v835 = vadd.f32 0.0, %v834
        %836 = vmatmul.bf16.gmra.mxu0 %v751
        %v837 = vpop.f32.mrf.mxu0
        %v838 = vadd.f32 0.0, %v837
        %v839 = vpop.f32.mrf.mxu0
        %v840 = vadd.f32 0.0, %v839
        %841 = vmatmul.bf16.gmra.mxu0 %v754
        %v842 = vpop.f32.mrf.mxu0
        %v843 = vadd.f32 0.0, %v842
        %v844 = vpop.f32.mrf.mxu0
        %v845 = vadd.f32 0.0, %v844
        %846 = vmatmul.bf16.gmra.mxu0 %v757
        %v847 = vpop.f32.mrf.mxu0
        %v848 = vadd.f32 0.0, %v847
        %v849 = vpop.f32.mrf.mxu0
        %v850 = vadd.f32 0.0, %v849
        %851 = vdwg.mxu0
        %v884 = vunpack.c.l.b16 %v224
        %v885 = vunpack.c.l.b16 %v225
        %v886 = vunpack.c.l.b16 %v226
        %v887 = vunpack.c.l.b16 %v227
        %v888 = vunpack.c.l.b16 %v228
        %v889 = vunpack.c.l.b16 %v229
        %v890 = vunpack.c.l.b16 %v230
        %v891 = vunpack.c.l.b16 %v231
        %v892 = vunpack.c.l.b16 %v232
        %v893 = vunpack.c.l.b16 %v233
        %v894 = vunpack.c.l.b16 %v234
        %v895 = vunpack.c.l.b16 %v235
        %v896 = vunpack.c.l.b16 %v236
        %v897 = vunpack.c.l.b16 %v237
        %v898 = vunpack.c.l.b16 %v238
        %v899 = vunpack.c.l.b16 %v239
        %v900 = vunpack.c.l.b16 %v240
        %v901 = vunpack.c.l.b16 %v241
        %v902 = vunpack.c.l.b16 %v242
        %v903 = vunpack.c.l.b16 %v243
        %v904 = vunpack.c.l.b16 %v244
        %v905 = vunpack.c.l.b16 %v245
        %v906 = vunpack.c.l.b16 %v246
        %v907 = vunpack.c.l.b16 %v247
        %v908 = vunpack.c.l.b16 %v248
        %v909 = vunpack.c.l.b16 %v249
        %v910 = vunpack.c.l.b16 %v250
        %v911 = vunpack.c.l.b16 %v251
        %v912 = vunpack.c.l.b16 %v252
        %v913 = vunpack.c.l.b16 %v253
        %v914 = vunpack.c.l.b16 %v254
        %v915 = vunpack.c.l.b16 %v255
        %v916 = vpack.c.b16 %v885, %v884
        %v917 = vpack.c.b16 %v887, %v886
        %v918 = vpack.c.b16 %v889, %v888
        %v919 = vpack.c.b16 %v891, %v890
        %v920 = vpack.c.b16 %v893, %v892
        %v921 = vpack.c.b16 %v895, %v894
        %v922 = vpack.c.b16 %v897, %v896
        %v923 = vpack.c.b16 %v899, %v898
        %v924 = vpack.c.b16 %v901, %v900
        %v925 = vpack.c.b16 %v903, %v902
        %v926 = vpack.c.b16 %v905, %v904
        %v927 = vpack.c.b16 %v907, %v906
        %v928 = vpack.c.b16 %v909, %v908
        %v929 = vpack.c.b16 %v911, %v910
        %v930 = vpack.c.b16 %v913, %v912
        %v931 = vpack.c.b16 %v915, %v914
        %v933 = vsel %vm710, %v916, 0
        %v936 = vsel %vm710, %v917, 0
        %v939 = vsel %vm710, %v918, 0
        %v942 = vsel %vm710, %v919, 0
        %v945 = vsel %vm710, %v920, 0
        %v948 = vsel %vm710, %v921, 0
        %v951 = vsel %vm710, %v922, 0
        %v954 = vsel %vm710, %v923, 0
        %v957 = vsel %vm710, %v924, 0
        %v960 = vsel %vm710, %v925, 0
        %v963 = vsel %vm710, %v926, 0
        %v966 = vsel %vm710, %v927, 0
        %v969 = vsel %vm710, %v928, 0
        %v972 = vsel %vm710, %v929, 0
        %v975 = vsel %vm710, %v930, 0
        %v978 = vsel %vm710, %v931, 0
        %v981 = vsel %vm759, %v256, 0
        %983 = vmatpush.bf16.msra.mxu0 0
        %984 = vmatpush.bf16.msra.mxu0 0
        %985 = vmatpush.bf16.msra.mxu0 0
        %986 = vmatpush.bf16.msra.mxu0 0
        %987 = vmatpush.bf16.msra.mxu0 0
        %988 = vmatpush.bf16.msra.mxu0 0
        %989 = vmatpush.bf16.msra.mxu0 0
        %990 = vmatpush.bf16.msra.mxu0 %v981
        %991 = vmatmul.bf16.gmra.mxu0 %v933
        %v992 = vpop.f32.mrf.mxu0
        %v993 = vadd.f32 %v773, %v992
        %v994 = vpop.f32.mrf.mxu0
        %v995 = vadd.f32 %v775, %v994
        %996 = vmatmul.bf16.gmra.mxu0 %v936
        %v997 = vpop.f32.mrf.mxu0
        %v998 = vadd.f32 %v778, %v997
        %v999 = vpop.f32.mrf.mxu0
        %v1000 = vadd.f32 %v780, %v999
        %1001 = vmatmul.bf16.gmra.mxu0 %v939
        %v1002 = vpop.f32.mrf.mxu0
        %v1003 = vadd.f32 %v783, %v1002
        %v1004 = vpop.f32.mrf.mxu0
        %v1005 = vadd.f32 %v785, %v1004
        %1006 = vmatmul.bf16.gmra.mxu0 %v942
        %v1007 = vpop.f32.mrf.mxu0
        %v1008 = vadd.f32 %v788, %v1007
        %v1009 = vpop.f32.mrf.mxu0
        %v1010 = vadd.f32 %v790, %v1009
        %1011 = vmatmul.bf16.gmra.mxu0 %v945
        %v1012 = vpop.f32.mrf.mxu0
        %v1013 = vadd.f32 %v793, %v1012
        %v1014 = vpop.f32.mrf.mxu0
        %v1015 = vadd.f32 %v795, %v1014
        %1016 = vmatmul.bf16.gmra.mxu0 %v948
        %v1017 = vpop.f32.mrf.mxu0
        %v1018 = vadd.f32 %v798, %v1017
        %v1019 = vpop.f32.mrf.mxu0
        %v1020 = vadd.f32 %v800, %v1019
        %1021 = vmatmul.bf16.gmra.mxu0 %v951
        %v1022 = vpop.f32.mrf.mxu0
        %v1023 = vadd.f32 %v803, %v1022
        %v1024 = vpop.f32.mrf.mxu0
        %v1025 = vadd.f32 %v805, %v1024
        %1026 = vmatmul.bf16.gmra.mxu0 %v954
        %v1027 = vpop.f32.mrf.mxu0
        %v1028 = vadd.f32 %v808, %v1027
        %v1029 = vpop.f32.mrf.mxu0
        %v1030 = vadd.f32 %v810, %v1029
        %1031 = vmatmul.bf16.gmra.mxu0 %v957
        %v1032 = vpop.f32.mrf.mxu0
        %v1033 = vadd.f32 %v813, %v1032
        %v1034 = vpop.f32.mrf.mxu0
        %v1035 = vadd.f32 %v815, %v1034
        %1036 = vmatmul.bf16.gmra.mxu0 %v960
        %v1037 = vpop.f32.mrf.mxu0
        %v1038 = vadd.f32 %v818, %v1037
        %v1039 = vpop.f32.mrf.mxu0
        %v1040 = vadd.f32 %v820, %v1039
        %1041 = vmatmul.bf16.gmra.mxu0 %v963
        %v1042 = vpop.f32.mrf.mxu0
        %v1043 = vadd.f32 %v823, %v1042
        %v1044 = vpop.f32.mrf.mxu0
        %v1045 = vadd.f32 %v825, %v1044
        %1046 = vmatmul.bf16.gmra.mxu0 %v966
        %v1047 = vpop.f32.mrf.mxu0
        %v1048 = vadd.f32 %v828, %v1047
        %v1049 = vpop.f32.mrf.mxu0
        %v1050 = vadd.f32 %v830, %v1049
        %1051 = vmatmul.bf16.gmra.mxu0 %v969
        %v1052 = vpop.f32.mrf.mxu0
        %v1053 = vadd.f32 %v833, %v1052
        %v1054 = vpop.f32.mrf.mxu0
        %v1055 = vadd.f32 %v835, %v1054
        %1056 = vmatmul.bf16.gmra.mxu0 %v972
        %v1057 = vpop.f32.mrf.mxu0
        %v1058 = vadd.f32 %v838, %v1057
        %v1059 = vpop.f32.mrf.mxu0
        %v1060 = vadd.f32 %v840, %v1059
        %1061 = vmatmul.bf16.gmra.mxu0 %v975
        %v1062 = vpop.f32.mrf.mxu0
        %v1063 = vadd.f32 %v843, %v1062
        %v1064 = vpop.f32.mrf.mxu0
        %v1065 = vadd.f32 %v845, %v1064
        %1066 = vmatmul.bf16.gmra.mxu0 %v978
        %v1067 = vpop.f32.mrf.mxu0
        %v1068 = vadd.f32 %v848, %v1067
        %v1069 = vpop.f32.mrf.mxu0
        %v1070 = vadd.f32 %v850, %v1069
        %1071 = vdwg.mxu0
        %v1072 = vld [vmem:[%s223] sm:$0xe]
        %v1073 = vld [vmem:[%s223 + $0xc] sm:$0xe]
        %v1074 = vld [vmem:[%s223 + $0x18] sm:$0xe]
        %v1075 = vld [vmem:[%s223 + $0x24] sm:$0xe]
        %v1076 = vld [vmem:[%s223 + $0x30] sm:$0xe]
        %v1077 = vld [vmem:[%s223 + $0x3c] sm:$0xe]
        %v1078 = vld [vmem:[%s223 + $0x48] sm:$0xe]
        %v1079 = vld [vmem:[%s223 + $0x54] sm:$0xe]
        %v1080 = vld [vmem:[%s223 + $0xd8] sm:$0xe]
        %v1081 = vld [vmem:[%s223 + $0xe4] sm:$0xe]
        %v1082 = vld [vmem:[%s223 + $0xf0] sm:$0xe]
        %v1083 = vld [vmem:[%s223 + $0xfc] sm:$0xe]
        %v1084 = vld [vmem:[%s223 + $0x108] sm:$0xe]
        %v1085 = vld [vmem:[%s223 + $0x114] sm:$0xe]
        %v1086 = vld [vmem:[%s223 + $0x120] sm:$0xe]
        %v1087 = vld [vmem:[%s223 + $0x12c] sm:$0xe]
        %vm1120 = vcmask 1042432
        %vm1121 = vcmask 1046532
        %vm1122 = vmor %vm1120, %vm1121
        %v1123 = vrot.slane %v1072, 5
        %v1124 = vrot.slane %v1123, 4
        %v1125 = vrot.slane %v225, 5
        %v1126 = vsel %vm1122, %v1124, %v1125
        %v1127 = vrot.slane %v1125, 4
        %v1128 = vrot.slane %v257, 5
        %v1129 = vsel %vm1122, %v1127, %v1128
        %v1130 = vrot.slane %v1073, 5
        %v1131 = vrot.slane %v1130, 4
        %v1132 = vrot.slane %v227, 5
        %v1133 = vsel %vm1122, %v1131, %v1132
        %v1134 = vrot.slane %v1132, 4
        %v1135 = vrot.slane %v258, 5
        %v1136 = vsel %vm1122, %v1134, %v1135
        %v1137 = vrot.slane %v1074, 5
        %v1138 = vrot.slane %v1137, 4
        %v1139 = vrot.slane %v229, 5
        %v1140 = vsel %vm1122, %v1138, %v1139
        %v1141 = vrot.slane %v1139, 4
        %v1142 = vrot.slane %v259, 5
        %v1143 = vsel %vm1122, %v1141, %v1142
        %v1144 = vrot.slane %v1075, 5
        %v1145 = vrot.slane %v1144, 4
        %v1146 = vrot.slane %v231, 5
        %v1147 = vsel %vm1122, %v1145, %v1146
        %v1148 = vrot.slane %v1146, 4
        %v1149 = vrot.slane %v260, 5
        %v1150 = vsel %vm1122, %v1148, %v1149
        %v1151 = vrot.slane %v1076, 5
        %v1152 = vrot.slane %v1151, 4
        %v1153 = vrot.slane %v233, 5
        %v1154 = vsel %vm1122, %v1152, %v1153
        %v1155 = vrot.slane %v1153, 4
        %v1156 = vrot.slane %v261, 5
        %v1157 = vsel %vm1122, %v1155, %v1156
        %v1158 = vrot.slane %v1077, 5
        %v1159 = vrot.slane %v1158, 4
        %v1160 = vrot.slane %v235, 5
        %v1161 = vsel %vm1122, %v1159, %v1160
        %v1162 = vrot.slane %v1160, 4
        %v1163 = vrot.slane %v262, 5
        %v1164 = vsel %vm1122, %v1162, %v1163
        %v1165 = vrot.slane %v1078, 5
        %v1166 = vrot.slane %v1165, 4
        %v1167 = vrot.slane %v237, 5
        %v1168 = vsel %vm1122, %v1166, %v1167
        %v1169 = vrot.slane %v1167, 4
        %v1170 = vrot.slane %v263, 5
        %v1171 = vsel %vm1122, %v1169, %v1170
        %v1172 = vrot.slane %v1079, 5
        %v1173 = vrot.slane %v1172, 4
        %v1174 = vrot.slane %v239, 5
        %v1175 = vsel %vm1122, %v1173, %v1174
        %v1176 = vrot.slane %v1174, 4
        %v1177 = vrot.slane %v264, 5
        %v1178 = vsel %vm1122, %v1176, %v1177
        %v1179 = vrot.slane %v1080, 5
        %v1180 = vrot.slane %v1179, 4
        %v1181 = vrot.slane %v241, 5
        %v1182 = vsel %vm1122, %v1180, %v1181
        %v1183 = vrot.slane %v1181, 4
        %v1184 = vrot.slane %v265, 5
        %v1185 = vsel %vm1122, %v1183, %v1184
        %v1186 = vrot.slane %v1081, 5
        %v1187 = vrot.slane %v1186, 4
        %v1188 = vrot.slane %v243, 5
        %v1189 = vsel %vm1122, %v1187, %v1188
        %v1190 = vrot.slane %v1188, 4
        %v1191 = vrot.slane %v266, 5
        %v1192 = vsel %vm1122, %v1190, %v1191
        %v1193 = vrot.slane %v1082, 5
        %v1194 = vrot.slane %v1193, 4
        %v1195 = vrot.slane %v245, 5
        %v1196 = vsel %vm1122, %v1194, %v1195
        %v1197 = vrot.slane %v1195, 4
        %v1198 = vrot.slane %v267, 5
        %v1199 = vsel %vm1122, %v1197, %v1198
        %v1200 = vrot.slane %v1083, 5
        %v1201 = vrot.slane %v1200, 4
        %v1202 = vrot.slane %v247, 5
        %v1203 = vsel %vm1122, %v1201, %v1202
        %v1204 = vrot.slane %v1202, 4
        %v1205 = vrot.slane %v268, 5
        %v1206 = vsel %vm1122, %v1204, %v1205
        %v1207 = vrot.slane %v1084, 5
        %v1208 = vrot.slane %v1207, 4
        %v1209 = vrot.slane %v249, 5
        %v1210 = vsel %vm1122, %v1208, %v1209
        %v1211 = vrot.slane %v1209, 4
        %v1212 = vrot.slane %v269, 5
        %v1213 = vsel %vm1122, %v1211, %v1212
        %v1214 = vrot.slane %v1085, 5
        %v1215 = vrot.slane %v1214, 4
        %v1216 = vrot.slane %v251, 5
        %v1217 = vsel %vm1122, %v1215, %v1216
        %v1218 = vrot.slane %v1216, 4
        %v1219 = vrot.slane %v270, 5
        %v1220 = vsel %vm1122, %v1218, %v1219
        %v1221 = vrot.slane %v1086, 5
        %v1222 = vrot.slane %v1221, 4
        %v1223 = vrot.slane %v253, 5
        %v1224 = vsel %vm1122, %v1222, %v1223
        %v1225 = vrot.slane %v1223, 4
        %v1226 = vrot.slane %v271, 5
        %v1227 = vsel %vm1122, %v1225, %v1226
        %v1228 = vrot.slane %v1087, 5
        %v1229 = vrot.slane %v1228, 4
        %v1230 = vrot.slane %v255, 5
        %v1231 = vsel %vm1122, %v1229, %v1230
        %v1232 = vrot.slane %v1230, 4
        %v1233 = vrot.slane %v272, 5
        %v1234 = vsel %vm1122, %v1232, %v1233
        %s1235 = scalar_lea.vmem %s1, 4
        %v1236 = vld [vmem:[%s1235] sm:$0x3]
        %v1237 = vunpack.c.l.b16 %v1126
        %v1238 = vunpack.c.l.b16 %v1129
        %v1239 = vunpack.c.l.b16 %v1133
        %v1240 = vunpack.c.l.b16 %v1136
        %v1241 = vunpack.c.l.b16 %v1140
        %v1242 = vunpack.c.l.b16 %v1143
        %v1243 = vunpack.c.l.b16 %v1147
        %v1244 = vunpack.c.l.b16 %v1150
        %v1245 = vunpack.c.l.b16 %v1154
        %v1246 = vunpack.c.l.b16 %v1157
        %v1247 = vunpack.c.l.b16 %v1161
        %v1248 = vunpack.c.l.b16 %v1164
        %v1249 = vunpack.c.l.b16 %v1168
        %v1250 = vunpack.c.l.b16 %v1171
        %v1251 = vunpack.c.l.b16 %v1175
        %v1252 = vunpack.c.l.b16 %v1178
        %v1253 = vunpack.c.l.b16 %v1182
        %v1254 = vunpack.c.l.b16 %v1185
        %v1255 = vunpack.c.l.b16 %v1189
        %v1256 = vunpack.c.l.b16 %v1192
        %v1257 = vunpack.c.l.b16 %v1196
        %v1258 = vunpack.c.l.b16 %v1199
        %v1259 = vunpack.c.l.b16 %v1203
        %v1260 = vunpack.c.l.b16 %v1206
        %v1261 = vunpack.c.l.b16 %v1210
        %v1262 = vunpack.c.l.b16 %v1213
        %v1263 = vunpack.c.l.b16 %v1217
        %v1264 = vunpack.c.l.b16 %v1220
        %v1265 = vunpack.c.l.b16 %v1224
        %v1266 = vunpack.c.l.b16 %v1227
        %v1267 = vunpack.c.l.b16 %v1231
        %v1268 = vunpack.c.l.b16 %v1234
        %v1269 = vpack.c.b16 %v1238, %v1237
        %v1270 = vpack.c.b16 %v1240, %v1239
        %v1271 = vpack.c.b16 %v1242, %v1241
        %v1272 = vpack.c.b16 %v1244, %v1243
        %v1273 = vpack.c.b16 %v1246, %v1245
        %v1274 = vpack.c.b16 %v1248, %v1247
        %v1275 = vpack.c.b16 %v1250, %v1249
        %v1276 = vpack.c.b16 %v1252, %v1251
        %v1277 = vpack.c.b16 %v1254, %v1253
        %v1278 = vpack.c.b16 %v1256, %v1255
        %v1279 = vpack.c.b16 %v1258, %v1257
        %v1280 = vpack.c.b16 %v1260, %v1259
        %v1281 = vpack.c.b16 %v1262, %v1261
        %v1282 = vpack.c.b16 %v1264, %v1263
        %v1283 = vpack.c.b16 %v1266, %v1265
        %v1284 = vpack.c.b16 %v1268, %v1267
        %v1286 = vsel %vm710, %v1269, 0
        %v1289 = vsel %vm710, %v1270, 0
        %v1292 = vsel %vm710, %v1271, 0
        %v1295 = vsel %vm710, %v1272, 0
        %v1298 = vsel %vm710, %v1273, 0
        %v1301 = vsel %vm710, %v1274, 0
        %v1304 = vsel %vm710, %v1275, 0
        %v1307 = vsel %vm710, %v1276, 0
        %v1310 = vsel %vm710, %v1277, 0
        %v1313 = vsel %vm710, %v1278, 0
        %v1316 = vsel %vm710, %v1279, 0
        %v1319 = vsel %vm710, %v1280, 0
        %v1322 = vsel %vm710, %v1281, 0
        %v1325 = vsel %vm710, %v1282, 0
        %v1328 = vsel %vm710, %v1283, 0
        %v1331 = vsel %vm710, %v1284, 0
        %v1334 = vsel %vm759, %v1236, 0
        %1336 = vmatpush.bf16.msra.mxu0 0
        %1337 = vmatpush.bf16.msra.mxu0 0
        %1338 = vmatpush.bf16.msra.mxu0 0
        %1339 = vmatpush.bf16.msra.mxu0 0
        %1340 = vmatpush.bf16.msra.mxu0 0
        %1341 = vmatpush.bf16.msra.mxu0 0
        %1342 = vmatpush.bf16.msra.mxu0 0
        %1343 = vmatpush.bf16.msra.mxu0 %v1334
        %1344 = vmatmul.bf16.gmra.mxu0 %v1286
        %v1345 = vpop.f32.mrf.mxu0
        %v1346 = vadd.f32 0.0, %v1345
        %v1347 = vpop.f32.mrf.mxu0
        %v1348 = vadd.f32 0.0, %v1347
        %1349 = vmatmul.bf16.gmra.mxu0 %v1289
        %v1350 = vpop.f32.mrf.mxu0
        %v1351 = vadd.f32 0.0, %v1350
        %v1352 = vpop.f32.mrf.mxu0
        %v1353 = vadd.f32 0.0, %v1352
        %1354 = vmatmul.bf16.gmra.mxu0 %v1292
        %v1355 = vpop.f32.mrf.mxu0
        %v1356 = vadd.f32 0.0, %v1355
        %v1357 = vpop.f32.mrf.mxu0
        %v1358 = vadd.f32 0.0, %v1357
        %1359 = vmatmul.bf16.gmra.mxu0 %v1295
        %v1360 = vpop.f32.mrf.mxu0
        %v1361 = vadd.f32 0.0, %v1360
        %v1362 = vpop.f32.mrf.mxu0
        %v1363 = vadd.f32 0.0, %v1362
        %1364 = vmatmul.bf16.gmra.mxu0 %v1298
        %v1365 = vpop.f32.mrf.mxu0
        %v1366 = vadd.f32 0.0, %v1365
        %v1367 = vpop.f32.mrf.mxu0
        %v1368 = vadd.f32 0.0, %v1367
        %1369 = vmatmul.bf16.gmra.mxu0 %v1301
        %v1370 = vpop.f32.mrf.mxu0
        %v1371 = vadd.f32 0.0, %v1370
        %v1372 = vpop.f32.mrf.mxu0
        %v1373 = vadd.f32 0.0, %v1372
        %1374 = vmatmul.bf16.gmra.mxu0 %v1304
        %v1375 = vpop.f32.mrf.mxu0
        %v1376 = vadd.f32 0.0, %v1375
        %v1377 = vpop.f32.mrf.mxu0
        %v1378 = vadd.f32 0.0, %v1377
        %1379 = vmatmul.bf16.gmra.mxu0 %v1307
        %v1380 = vpop.f32.mrf.mxu0
        %v1381 = vadd.f32 0.0, %v1380
        %v1382 = vpop.f32.mrf.mxu0
        %v1383 = vadd.f32 0.0, %v1382
        %1384 = vmatmul.bf16.gmra.mxu0 %v1310
        %v1385 = vpop.f32.mrf.mxu0
        %v1386 = vadd.f32 0.0, %v1385
        %v1387 = vpop.f32.mrf.mxu0
        %v1388 = vadd.f32 0.0, %v1387
        %1389 = vmatmul.bf16.gmra.mxu0 %v1313
        %v1390 = vpop.f32.mrf.mxu0
        %v1391 = vadd.f32 0.0, %v1390
        %v1392 = vpop.f32.mrf.mxu0
        %v1393 = vadd.f32 0.0, %v1392
        %1394 = vmatmul.bf16.gmra.mxu0 %v1316
        %v1395 = vpop.f32.mrf.mxu0
        %v1396 = vadd.f32 0.0, %v1395
        %v1397 = vpop.f32.mrf.mxu0
        %v1398 = vadd.f32 0.0, %v1397
        %1399 = vmatmul.bf16.gmra.mxu0 %v1319
        %v1400 = vpop.f32.mrf.mxu0
        %v1401 = vadd.f32 0.0, %v1400
        %v1402 = vpop.f32.mrf.mxu0
        %v1403 = vadd.f32 0.0, %v1402
        %1404 = vmatmul.bf16.gmra.mxu0 %v1322
        %v1405 = vpop.f32.mrf.mxu0
        %v1406 = vadd.f32 0.0, %v1405
        %v1407 = vpop.f32.mrf.mxu0
        %v1408 = vadd.f32 0.0, %v1407
        %1409 = vmatmul.bf16.gmra.mxu0 %v1325
        %v1410 = vpop.f32.mrf.mxu0
        %v1411 = vadd.f32 0.0, %v1410
        %v1412 = vpop.f32.mrf.mxu0
        %v1413 = vadd.f32 0.0, %v1412
        %1414 = vmatmul.bf16.gmra.mxu0 %v1328
        %v1415 = vpop.f32.mrf.mxu0
        %v1416 = vadd.f32 0.0, %v1415
        %v1417 = vpop.f32.mrf.mxu0
        %v1418 = vadd.f32 0.0, %v1417
        %1419 = vmatmul.bf16.gmra.mxu0 %v1331
        %v1420 = vpop.f32.mrf.mxu0
        %v1421 = vadd.f32 0.0, %v1420
        %v1422 = vpop.f32.mrf.mxu0
        %v1423 = vadd.f32 0.0, %v1422
        %1424 = vdwg.mxu0
        %v1425 = vadd.f32 %v993, %v1346
        %v1426 = vadd.f32 %v995, %v1348
        %v1427 = vadd.f32 %v998, %v1351
        %v1428 = vadd.f32 %v1000, %v1353
        %v1429 = vadd.f32 %v1003, %v1356
        %v1430 = vadd.f32 %v1005, %v1358
        %v1431 = vadd.f32 %v1008, %v1361
        %v1432 = vadd.f32 %v1010, %v1363
        %v1433 = vadd.f32 %v1013, %v1366
        %v1434 = vadd.f32 %v1015, %v1368
        %v1435 = vadd.f32 %v1018, %v1371
        %v1436 = vadd.f32 %v1020, %v1373
        %v1437 = vadd.f32 %v1023, %v1376
        %v1438 = vadd.f32 %v1025, %v1378
        %v1439 = vadd.f32 %v1028, %v1381
        %v1440 = vadd.f32 %v1030, %v1383
        %v1441 = vadd.f32 %v1033, %v1386
        %v1442 = vadd.f32 %v1035, %v1388
        %v1443 = vadd.f32 %v1038, %v1391
        %v1444 = vadd.f32 %v1040, %v1393
        %v1445 = vadd.f32 %v1043, %v1396
        %v1446 = vadd.f32 %v1045, %v1398
        %v1447 = vadd.f32 %v1048, %v1401
        %v1448 = vadd.f32 %v1050, %v1403
        %v1449 = vadd.f32 %v1053, %v1406
        %v1450 = vadd.f32 %v1055, %v1408
        %v1451 = vadd.f32 %v1058, %v1411
        %v1452 = vadd.f32 %v1060, %v1413
        %v1453 = vadd.f32 %v1063, %v1416
        %v1454 = vadd.f32 %v1065, %v1418
        %v1455 = vadd.f32 %v1068, %v1421
        %v1456 = vadd.f32 %v1070, %v1423
        %s1457 = sadd.s32 %s220, 1
        %s1458 = smul.u32 %s1457, 3
        %s1459 = smul.addr %s1458, 4
        %s1460 = scalar_lea.vmem %s0, %s1459
        %v1461 = vld [vmem:[%s1460] sm:$0xf]
        %v1462 = vld [vmem:[%s1460 + $0x4] sm:$0xf]
        %v1463 = vld [vmem:[%s1460 + $0xc] sm:$0xf]
        %v1464 = vld [vmem:[%s1460 + $0x10] sm:$0xf]
        %v1465 = vld [vmem:[%s1460 + $0x18] sm:$0xf]
        %v1466 = vld [vmem:[%s1460 + $0x1c] sm:$0xf]
        %v1467 = vld [vmem:[%s1460 + $0x24] sm:$0xf]
        %v1468 = vld [vmem:[%s1460 + $0x28] sm:$0xf]
        %v1469 = vld [vmem:[%s1460 + $0x30] sm:$0xf]
        %v1470 = vld [vmem:[%s1460 + $0x34] sm:$0xf]
        %v1471 = vld [vmem:[%s1460 + $0x3c] sm:$0xf]
        %v1472 = vld [vmem:[%s1460 + $0x40] sm:$0xf]
        %v1473 = vld [vmem:[%s1460 + $0x48] sm:$0xf]
        %v1474 = vld [vmem:[%s1460 + $0x4c] sm:$0xf]
        %v1475 = vld [vmem:[%s1460 + $0x54] sm:$0xf]
        %v1476 = vld [vmem:[%s1460 + $0x58] sm:$0xf]
        %v1477 = vld [vmem:[%s1460 + $0xd8] sm:$0xf]
        %v1478 = vld [vmem:[%s1460 + $0xdc] sm:$0xf]
        %v1479 = vld [vmem:[%s1460 + $0xe4] sm:$0xf]
        %v1480 = vld [vmem:[%s1460 + $0xe8] sm:$0xf]
        %v1481 = vld [vmem:[%s1460 + $0xf0] sm:$0xf]
        %v1482 = vld [vmem:[%s1460 + $0xf4] sm:$0xf]
        %v1483 = vld [vmem:[%s1460 + $0xfc] sm:$0xf]
        %v1484 = vld [vmem:[%s1460 + $0x100] sm:$0xf]
        %v1485 = vld [vmem:[%s1460 + $0x108] sm:$0xf]
        %v1486 = vld [vmem:[%s1460 + $0x10c] sm:$0xf]
        %v1487 = vld [vmem:[%s1460 + $0x114] sm:$0xf]
        %v1488 = vld [vmem:[%s1460 + $0x118] sm:$0xf]
        %v1489 = vld [vmem:[%s1460 + $0x120] sm:$0xf]
        %v1490 = vld [vmem:[%s1460 + $0x124] sm:$0xf]
        %v1491 = vld [vmem:[%s1460 + $0x12c] sm:$0xf]
        %v1492 = vld [vmem:[%s1460 + $0x130] sm:$0xf]
        %s1493 = scalar_lea.vmem %s1, 6
        %v1494 = vld [vmem:[%s1493] sm:$0x3]
        %v1527 = vunpack.c.l.b16 %v1461
        %v1528 = vunpack.c.l.b16 %v1462
        %v1529 = vunpack.c.l.b16 %v1463
        %v1530 = vunpack.c.l.b16 %v1464
        %v1531 = vunpack.c.l.b16 %v1465
        %v1532 = vunpack.c.l.b16 %v1466
        %v1533 = vunpack.c.l.b16 %v1467
        %v1534 = vunpack.c.l.b16 %v1468
        %v1535 = vunpack.c.l.b16 %v1469
        %v1536 = vunpack.c.l.b16 %v1470
        %v1537 = vunpack.c.l.b16 %v1471
        %v1538 = vunpack.c.l.b16 %v1472
        %v1539 = vunpack.c.l.b16 %v1473
        %v1540 = vunpack.c.l.b16 %v1474
        %v1541 = vunpack.c.l.b16 %v1475
        %v1542 = vunpack.c.l.b16 %v1476
        %v1543 = vunpack.c.l.b16 %v1477
        %v1544 = vunpack.c.l.b16 %v1478
        %v1545 = vunpack.c.l.b16 %v1479
        %v1546 = vunpack.c.l.b16 %v1480
        %v1547 = vunpack.c.l.b16 %v1481
        %v1548 = vunpack.c.l.b16 %v1482
        %v1549 = vunpack.c.l.b16 %v1483
        %v1550 = vunpack.c.l.b16 %v1484
        %v1551 = vunpack.c.l.b16 %v1485
        %v1552 = vunpack.c.l.b16 %v1486
        %v1553 = vunpack.c.l.b16 %v1487
        %v1554 = vunpack.c.l.b16 %v1488
        %v1555 = vunpack.c.l.b16 %v1489
        %v1556 = vunpack.c.l.b16 %v1490
        %v1557 = vunpack.c.l.b16 %v1491
        %v1558 = vunpack.c.l.b16 %v1492
        %v1559 = vpack.c.b16 %v1528, %v1527
        %v1560 = vpack.c.b16 %v1530, %v1529
        %v1561 = vpack.c.b16 %v1532, %v1531
        %v1562 = vpack.c.b16 %v1534, %v1533
        %v1563 = vpack.c.b16 %v1536, %v1535
        %v1564 = vpack.c.b16 %v1538, %v1537
        %v1565 = vpack.c.b16 %v1540, %v1539
        %v1566 = vpack.c.b16 %v1542, %v1541
        %v1567 = vpack.c.b16 %v1544, %v1543
        %v1568 = vpack.c.b16 %v1546, %v1545
        %v1569 = vpack.c.b16 %v1548, %v1547
        %v1570 = vpack.c.b16 %v1550, %v1549
        %v1571 = vpack.c.b16 %v1552, %v1551
        %v1572 = vpack.c.b16 %v1554, %v1553
        %v1573 = vpack.c.b16 %v1556, %v1555
        %v1574 = vpack.c.b16 %v1558, %v1557
        %v1576 = vsel %vm710, %v1559, 0
        %v1579 = vsel %vm710, %v1560, 0
        %v1582 = vsel %vm710, %v1561, 0
        %v1585 = vsel %vm710, %v1562, 0
        %v1588 = vsel %vm710, %v1563, 0
        %v1591 = vsel %vm710, %v1564, 0
        %v1594 = vsel %vm710, %v1565, 0
        %v1597 = vsel %vm710, %v1566, 0
        %v1600 = vsel %vm710, %v1567, 0
        %v1603 = vsel %vm710, %v1568, 0
        %v1606 = vsel %vm710, %v1569, 0
        %v1609 = vsel %vm710, %v1570, 0
        %v1612 = vsel %vm710, %v1571, 0
        %v1615 = vsel %vm710, %v1572, 0
        %v1618 = vsel %vm710, %v1573, 0
        %v1621 = vsel %vm710, %v1574, 0
        %v1624 = vsel %vm759, %v1494, 0
        %1626 = vmatpush.bf16.msra.mxu0 0
        %1627 = vmatpush.bf16.msra.mxu0 0
        %1628 = vmatpush.bf16.msra.mxu0 0
        %1629 = vmatpush.bf16.msra.mxu0 0
        %1630 = vmatpush.bf16.msra.mxu0 0
        %1631 = vmatpush.bf16.msra.mxu0 0
        %1632 = vmatpush.bf16.msra.mxu0 0
        %1633 = vmatpush.bf16.msra.mxu0 %v1624
        %1634 = vmatmul.bf16.gmra.mxu0 %v1576
        %v1635 = vpop.f32.mrf.mxu0
        %v1636 = vadd.f32 0.0, %v1635
        %v1637 = vpop.f32.mrf.mxu0
        %v1638 = vadd.f32 0.0, %v1637
        %1639 = vmatmul.bf16.gmra.mxu0 %v1579
        %v1640 = vpop.f32.mrf.mxu0
        %v1641 = vadd.f32 0.0, %v1640
        %v1642 = vpop.f32.mrf.mxu0
        %v1643 = vadd.f32 0.0, %v1642
        %1644 = vmatmul.bf16.gmra.mxu0 %v1582
        %v1645 = vpop.f32.mrf.mxu0
        %v1646 = vadd.f32 0.0, %v1645
        %v1647 = vpop.f32.mrf.mxu0
        %v1648 = vadd.f32 0.0, %v1647
        %1649 = vmatmul.bf16.gmra.mxu0 %v1585
        %v1650 = vpop.f32.mrf.mxu0
        %v1651 = vadd.f32 0.0, %v1650
        %v1652 = vpop.f32.mrf.mxu0
        %v1653 = vadd.f32 0.0, %v1652
        %1654 = vmatmul.bf16.gmra.mxu0 %v1588
        %v1655 = vpop.f32.mrf.mxu0
        %v1656 = vadd.f32 0.0, %v1655
        %v1657 = vpop.f32.mrf.mxu0
        %v1658 = vadd.f32 0.0, %v1657
        %1659 = vmatmul.bf16.gmra.mxu0 %v1591
        %v1660 = vpop.f32.mrf.mxu0
        %v1661 = vadd.f32 0.0, %v1660
        %v1662 = vpop.f32.mrf.mxu0
        %v1663 = vadd.f32 0.0, %v1662
        %1664 = vmatmul.bf16.gmra.mxu0 %v1594
        %v1665 = vpop.f32.mrf.mxu0
        %v1666 = vadd.f32 0.0, %v1665
        %v1667 = vpop.f32.mrf.mxu0
        %v1668 = vadd.f32 0.0, %v1667
        %1669 = vmatmul.bf16.gmra.mxu0 %v1597
        %v1670 = vpop.f32.mrf.mxu0
        %v1671 = vadd.f32 0.0, %v1670
        %v1672 = vpop.f32.mrf.mxu0
        %v1673 = vadd.f32 0.0, %v1672
        %1674 = vmatmul.bf16.gmra.mxu0 %v1600
        %v1675 = vpop.f32.mrf.mxu0
        %v1676 = vadd.f32 0.0, %v1675
        %v1677 = vpop.f32.mrf.mxu0
        %v1678 = vadd.f32 0.0, %v1677
        %1679 = vmatmul.bf16.gmra.mxu0 %v1603
        %v1680 = vpop.f32.mrf.mxu0
        %v1681 = vadd.f32 0.0, %v1680
        %v1682 = vpop.f32.mrf.mxu0
        %v1683 = vadd.f32 0.0, %v1682
        %1684 = vmatmul.bf16.gmra.mxu0 %v1606
        %v1685 = vpop.f32.mrf.mxu0
        %v1686 = vadd.f32 0.0, %v1685
        %v1687 = vpop.f32.mrf.mxu0
        %v1688 = vadd.f32 0.0, %v1687
        %1689 = vmatmul.bf16.gmra.mxu0 %v1609
        %v1690 = vpop.f32.mrf.mxu0
        %v1691 = vadd.f32 0.0, %v1690
        %v1692 = vpop.f32.mrf.mxu0
        %v1693 = vadd.f32 0.0, %v1692
        %1694 = vmatmul.bf16.gmra.mxu0 %v1612
        %v1695 = vpop.f32.mrf.mxu0
        %v1696 = vadd.f32 0.0, %v1695
        %v1697 = vpop.f32.mrf.mxu0
        %v1698 = vadd.f32 0.0, %v1697
        %1699 = vmatmul.bf16.gmra.mxu0 %v1615
        %v1700 = vpop.f32.mrf.mxu0
        %v1701 = vadd.f32 0.0, %v1700
        %v1702 = vpop.f32.mrf.mxu0
        %v1703 = vadd.f32 0.0, %v1702
        %1704 = vmatmul.bf16.gmra.mxu0 %v1618
        %v1705 = vpop.f32.mrf.mxu0
        %v1706 = vadd.f32 0.0, %v1705
        %v1707 = vpop.f32.mrf.mxu0
        %v1708 = vadd.f32 0.0, %v1707
        %1709 = vmatmul.bf16.gmra.mxu0 %v1621
        %v1710 = vpop.f32.mrf.mxu0
        %v1711 = vadd.f32 0.0, %v1710
        %v1712 = vpop.f32.mrf.mxu0
        %v1713 = vadd.f32 0.0, %v1712
        %1714 = vdwg.mxu0
        %v1715 = vadd.f32 %v1425, %v1636
        %v1716 = vadd.f32 %v1426, %v1638
        %v1717 = vadd.f32 %v1427, %v1641
        %v1718 = vadd.f32 %v1428, %v1643
        %v1719 = vadd.f32 %v1429, %v1646
        %v1720 = vadd.f32 %v1430, %v1648
        %v1721 = vadd.f32 %v1431, %v1651
        %v1722 = vadd.f32 %v1432, %v1653
        %v1723 = vadd.f32 %v1433, %v1656
        %v1724 = vadd.f32 %v1434, %v1658
        %v1725 = vadd.f32 %v1435, %v1661
        %v1726 = vadd.f32 %v1436, %v1663
        %v1727 = vadd.f32 %v1437, %v1666
        %v1728 = vadd.f32 %v1438, %v1668
        %v1729 = vadd.f32 %v1439, %v1671
        %v1730 = vadd.f32 %v1440, %v1673
        %v1731 = vadd.f32 %v1441, %v1676
        %v1732 = vadd.f32 %v1442, %v1678
        %v1733 = vadd.f32 %v1443, %v1681
        %v1734 = vadd.f32 %v1444, %v1683
        %v1735 = vadd.f32 %v1445, %v1686
        %v1736 = vadd.f32 %v1446, %v1688
        %v1737 = vadd.f32 %v1447, %v1691
        %v1738 = vadd.f32 %v1448, %v1693
        %v1739 = vadd.f32 %v1449, %v1696
        %v1740 = vadd.f32 %v1450, %v1698
        %v1741 = vadd.f32 %v1451, %v1701
        %v1742 = vadd.f32 %v1452, %v1703
        %v1743 = vadd.f32 %v1453, %v1706
        %v1744 = vadd.f32 %v1454, %v1708
        %v1745 = vadd.f32 %v1455, %v1711
        %v1746 = vadd.f32 %v1456, %v1713
        %v1747 = vld [vmem:[%s1460] sm:$0xf]
        %v1748 = vld [vmem:[%s1460 + $0x4] sm:$0xf]
        %v1749 = vld [vmem:[%s1460 + $0x8] sm:$0x1]
        %v1750 = vld [vmem:[%s1460 + $0xc] sm:$0xf]
        %v1751 = vld [vmem:[%s1460 + $0x10] sm:$0xf]
        %v1752 = vld [vmem:[%s1460 + $0x14] sm:$0x1]
        %v1753 = vld [vmem:[%s1460 + $0x18] sm:$0xf]
        %v1754 = vld [vmem:[%s1460 + $0x1c] sm:$0xf]
        %v1755 = vld [vmem:[%s1460 + $0x20] sm:$0x1]
        %v1756 = vld [vmem:[%s1460 + $0x24] sm:$0xf]
        %v1757 = vld [vmem:[%s1460 + $0x28] sm:$0xf]
        %v1758 = vld [vmem:[%s1460 + $0x2c] sm:$0x1]
        %v1759 = vld [vmem:[%s1460 + $0x30] sm:$0xf]
        %v1760 = vld [vmem:[%s1460 + $0x34] sm:$0xf]
        %v1761 = vld [vmem:[%s1460 + $0x38] sm:$0x1]
        %v1762 = vld [vmem:[%s1460 + $0x3c] sm:$0xf]
        %v1763 = vld [vmem:[%s1460 + $0x40] sm:$0xf]
        %v1764 = vld [vmem:[%s1460 + $0x44] sm:$0x1]
        %v1765 = vld [vmem:[%s1460 + $0x48] sm:$0xf]
        %v1766 = vld [vmem:[%s1460 + $0x4c] sm:$0xf]
        %v1767 = vld [vmem:[%s1460 + $0x50] sm:$0x1]
        %v1768 = vld [vmem:[%s1460 + $0x54] sm:$0xf]
        %v1769 = vld [vmem:[%s1460 + $0x58] sm:$0xf]
        %v1770 = vld [vmem:[%s1460 + $0x5c] sm:$0x1]
        %v1771 = vld [vmem:[%s1460 + $0xd8] sm:$0xf]
        %v1772 = vld [vmem:[%s1460 + $0xdc] sm:$0xf]
        %v1773 = vld [vmem:[%s1460 + $0xe0] sm:$0x1]
        %v1774 = vld [vmem:[%s1460 + $0xe4] sm:$0xf]
        %v1775 = vld [vmem:[%s1460 + $0xe8] sm:$0xf]
        %v1776 = vld [vmem:[%s1460 + $0xec] sm:$0x1]
        %v1777 = vld [vmem:[%s1460 + $0xf0] sm:$0xf]
        %v1778 = vld [vmem:[%s1460 + $0xf4] sm:$0xf]
        %v1779 = vld [vmem:[%s1460 + $0xf8] sm:$0x1]
        %v1780 = vld [vmem:[%s1460 + $0xfc] sm:$0xf]
        %v1781 = vld [vmem:[%s1460 + $0x100] sm:$0xf]
        %v1782 = vld [vmem:[%s1460 + $0x104] sm:$0x1]
        %v1783 = vld [vmem:[%s1460 + $0x108] sm:$0xf]
        %v1784 = vld [vmem:[%s1460 + $0x10c] sm:$0xf]
        %v1785 = vld [vmem:[%s1460 + $0x110] sm:$0x1]
        %v1786 = vld [vmem:[%s1460 + $0x114] sm:$0xf]
        %v1787 = vld [vmem:[%s1460 + $0x118] sm:$0xf]
        %v1788 = vld [vmem:[%s1460 + $0x11c] sm:$0x1]
        %v1789 = vld [vmem:[%s1460 + $0x120] sm:$0xf]
        %v1790 = vld [vmem:[%s1460 + $0x124] sm:$0xf]
        %v1791 = vld [vmem:[%s1460 + $0x128] sm:$0x1]
        %v1792 = vld [vmem:[%s1460 + $0x12c] sm:$0xf]
        %v1793 = vld [vmem:[%s1460 + $0x130] sm:$0xf]
        %v1794 = vld [vmem:[%s1460 + $0x134] sm:$0x1]
        %v1796 = vshrl.u32 %v1747, 16
        %v1798 = vrot.slane %v1796, 4
        %v1799 = vshll.u32 %v1747, 16
        %v1801 = vrot.slane %v1799, 5
        %v1802 = vor.u32 %v1798, %v1801
        %v1803 = vrot.slane %v1802, 4
        %v1805 = vshll.u32 %v1748, 16
        %v1807 = vrot.slane %v1805, 5
        %v1808 = vsel %vm275, %v1803, %v1807
        %v1809 = vshrl.u32 %v1748, 16
        %v1811 = vrot.slane %v1809, 4
        %v1812 = vor.u32 %v1811, %v1807
        %v1813 = vrot.slane %v1812, 4
        %v1815 = vshll.u32 %v1749, 16
        %v1817 = vrot.slane %v1815, 5
        %v1818 = vsel %vm275, %v1813, %v1817
        %v1820 = vshrl.u32 %v1750, 16
        %v1822 = vrot.slane %v1820, 4
        %v1823 = vshll.u32 %v1750, 16
        %v1825 = vrot.slane %v1823, 5
        %v1826 = vor.u32 %v1822, %v1825
        %v1827 = vrot.slane %v1826, 4
        %v1829 = vshll.u32 %v1751, 16
        %v1831 = vrot.slane %v1829, 5
        %v1832 = vsel %vm275, %v1827, %v1831
        %v1833 = vshrl.u32 %v1751, 16
        %v1835 = vrot.slane %v1833, 4
        %v1836 = vor.u32 %v1835, %v1831
        %v1837 = vrot.slane %v1836, 4
        %v1839 = vshll.u32 %v1752, 16
        %v1841 = vrot.slane %v1839, 5
        %v1842 = vsel %vm275, %v1837, %v1841
        %v1844 = vshrl.u32 %v1753, 16
        %v1846 = vrot.slane %v1844, 4
        %v1847 = vshll.u32 %v1753, 16
        %v1849 = vrot.slane %v1847, 5
        %v1850 = vor.u32 %v1846, %v1849
        %v1851 = vrot.slane %v1850, 4
        %v1853 = vshll.u32 %v1754, 16
        %v1855 = vrot.slane %v1853, 5
        %v1856 = vsel %vm275, %v1851, %v1855
        %v1857 = vshrl.u32 %v1754, 16
        %v1859 = vrot.slane %v1857, 4
        %v1860 = vor.u32 %v1859, %v1855
        %v1861 = vrot.slane %v1860, 4
        %v1863 = vshll.u32 %v1755, 16
        %v1865 = vrot.slane %v1863, 5
        %v1866 = vsel %vm275, %v1861, %v1865
        %v1868 = vshrl.u32 %v1756, 16
        %v1870 = vrot.slane %v1868, 4
        %v1871 = vshll.u32 %v1756, 16
        %v1873 = vrot.slane %v1871, 5
        %v1874 = vor.u32 %v1870, %v1873
        %v1875 = vrot.slane %v1874, 4
        %v1877 = vshll.u32 %v1757, 16
        %v1879 = vrot.slane %v1877, 5
        %v1880 = vsel %vm275, %v1875, %v1879
        %v1881 = vshrl.u32 %v1757, 16
        %v1883 = vrot.slane %v1881, 4
        %v1884 = vor.u32 %v1883, %v1879
        %v1885 = vrot.slane %v1884, 4
        %v1887 = vshll.u32 %v1758, 16
        %v1889 = vrot.slane %v1887, 5
        %v1890 = vsel %vm275, %v1885, %v1889
        %v1892 = vshrl.u32 %v1759, 16
        %v1894 = vrot.slane %v1892, 4
        %v1895 = vshll.u32 %v1759, 16
        %v1897 = vrot.slane %v1895, 5
        %v1898 = vor.u32 %v1894, %v1897
        %v1899 = vrot.slane %v1898, 4
        %v1901 = vshll.u32 %v1760, 16
        %v1903 = vrot.slane %v1901, 5
        %v1904 = vsel %vm275, %v1899, %v1903
        %v1905 = vshrl.u32 %v1760, 16
        %v1907 = vrot.slane %v1905, 4
        %v1908 = vor.u32 %v1907, %v1903
        %v1909 = vrot.slane %v1908, 4
        %v1911 = vshll.u32 %v1761, 16
        %v1913 = vrot.slane %v1911, 5
        %v1914 = vsel %vm275, %v1909, %v1913
        %v1916 = vshrl.u32 %v1762, 16
        %v1918 = vrot.slane %v1916, 4
        %v1919 = vshll.u32 %v1762, 16
        %v1921 = vrot.slane %v1919, 5
        %v1922 = vor.u32 %v1918, %v1921
        %v1923 = vrot.slane %v1922, 4
        %v1925 = vshll.u32 %v1763, 16
        %v1927 = vrot.slane %v1925, 5
        %v1928 = vsel %vm275, %v1923, %v1927
        %v1929 = vshrl.u32 %v1763, 16
        %v1931 = vrot.slane %v1929, 4
        %v1932 = vor.u32 %v1931, %v1927
        %v1933 = vrot.slane %v1932, 4
        %v1935 = vshll.u32 %v1764, 16
        %v1937 = vrot.slane %v1935, 5
        %v1938 = vsel %vm275, %v1933, %v1937
        %v1940 = vshrl.u32 %v1765, 16
        %v1942 = vrot.slane %v1940, 4
        %v1943 = vshll.u32 %v1765, 16
        %v1945 = vrot.slane %v1943, 5
        %v1946 = vor.u32 %v1942, %v1945
        %v1947 = vrot.slane %v1946, 4
        %v1949 = vshll.u32 %v1766, 16
        %v1951 = vrot.slane %v1949, 5
        %v1952 = vsel %vm275, %v1947, %v1951
        %v1953 = vshrl.u32 %v1766, 16
        %v1955 = vrot.slane %v1953, 4
        %v1956 = vor.u32 %v1955, %v1951
        %v1957 = vrot.slane %v1956, 4
        %v1959 = vshll.u32 %v1767, 16
        %v1961 = vrot.slane %v1959, 5
        %v1962 = vsel %vm275, %v1957, %v1961
        %v1964 = vshrl.u32 %v1768, 16
        %v1966 = vrot.slane %v1964, 4
        %v1967 = vshll.u32 %v1768, 16
        %v1969 = vrot.slane %v1967, 5
        %v1970 = vor.u32 %v1966, %v1969
        %v1971 = vrot.slane %v1970, 4
        %v1973 = vshll.u32 %v1769, 16
        %v1975 = vrot.slane %v1973, 5
        %v1976 = vsel %vm275, %v1971, %v1975
        %v1977 = vshrl.u32 %v1769, 16
        %v1979 = vrot.slane %v1977, 4
        %v1980 = vor.u32 %v1979, %v1975
        %v1981 = vrot.slane %v1980, 4
        %v1983 = vshll.u32 %v1770, 16
        %v1985 = vrot.slane %v1983, 5
        %v1986 = vsel %vm275, %v1981, %v1985
        %v1988 = vshrl.u32 %v1771, 16
        %v1990 = vrot.slane %v1988, 4
        %v1991 = vshll.u32 %v1771, 16
        %v1993 = vrot.slane %v1991, 5
        %v1994 = vor.u32 %v1990, %v1993
        %v1995 = vrot.slane %v1994, 4
        %v1997 = vshll.u32 %v1772, 16
        %v1999 = vrot.slane %v1997, 5
        %v2000 = vsel %vm275, %v1995, %v1999
        %v2001 = vshrl.u32 %v1772, 16
        %v2003 = vrot.slane %v2001, 4
        %v2004 = vor.u32 %v2003, %v1999
        %v2005 = vrot.slane %v2004, 4
        %v2007 = vshll.u32 %v1773, 16
        %v2009 = vrot.slane %v2007, 5
        %v2010 = vsel %vm275, %v2005, %v2009
        %v2012 = vshrl.u32 %v1774, 16
        %v2014 = vrot.slane %v2012, 4
        %v2015 = vshll.u32 %v1774, 16
        %v2017 = vrot.slane %v2015, 5
        %v2018 = vor.u32 %v2014, %v2017
        %v2019 = vrot.slane %v2018, 4
        %v2021 = vshll.u32 %v1775, 16
        %v2023 = vrot.slane %v2021, 5
        %v2024 = vsel %vm275, %v2019, %v2023
        %v2025 = vshrl.u32 %v1775, 16
        %v2027 = vrot.slane %v2025, 4
        %v2028 = vor.u32 %v2027, %v2023
        %v2029 = vrot.slane %v2028, 4
        %v2031 = vshll.u32 %v1776, 16
        %v2033 = vrot.slane %v2031, 5
        %v2034 = vsel %vm275, %v2029, %v2033
        %v2036 = vshrl.u32 %v1777, 16
        %v2038 = vrot.slane %v2036, 4
        %v2039 = vshll.u32 %v1777, 16
        %v2041 = vrot.slane %v2039, 5
        %v2042 = vor.u32 %v2038, %v2041
        %v2043 = vrot.slane %v2042, 4
        %v2045 = vshll.u32 %v1778, 16
        %v2047 = vrot.slane %v2045, 5
        %v2048 = vsel %vm275, %v2043, %v2047
        %v2049 = vshrl.u32 %v1778, 16
        %v2051 = vrot.slane %v2049, 4
        %v2052 = vor.u32 %v2051, %v2047
        %v2053 = vrot.slane %v2052, 4
        %v2055 = vshll.u32 %v1779, 16
        %v2057 = vrot.slane %v2055, 5
        %v2058 = vsel %vm275, %v2053, %v2057
        %v2060 = vshrl.u32 %v1780, 16
        %v2062 = vrot.slane %v2060, 4
        %v2063 = vshll.u32 %v1780, 16
        %v2065 = vrot.slane %v2063, 5
        %v2066 = vor.u32 %v2062, %v2065
        %v2067 = vrot.slane %v2066, 4
        %v2069 = vshll.u32 %v1781, 16
        %v2071 = vrot.slane %v2069, 5
        %v2072 = vsel %vm275, %v2067, %v2071
        %v2073 = vshrl.u32 %v1781, 16
        %v2075 = vrot.slane %v2073, 4
        %v2076 = vor.u32 %v2075, %v2071
        %v2077 = vrot.slane %v2076, 4
        %v2079 = vshll.u32 %v1782, 16
        %v2081 = vrot.slane %v2079, 5
        %v2082 = vsel %vm275, %v2077, %v2081
        %v2084 = vshrl.u32 %v1783, 16
        %v2086 = vrot.slane %v2084, 4
        %v2087 = vshll.u32 %v1783, 16
        %v2089 = vrot.slane %v2087, 5
        %v2090 = vor.u32 %v2086, %v2089
        %v2091 = vrot.slane %v2090, 4
        %v2093 = vshll.u32 %v1784, 16
        %v2095 = vrot.slane %v2093, 5
        %v2096 = vsel %vm275, %v2091, %v2095
        %v2097 = vshrl.u32 %v1784, 16
        %v2099 = vrot.slane %v2097, 4
        %v2100 = vor.u32 %v2099, %v2095
        %v2101 = vrot.slane %v2100, 4
        %v2103 = vshll.u32 %v1785, 16
        %v2105 = vrot.slane %v2103, 5
        %v2106 = vsel %vm275, %v2101, %v2105
        %v2108 = vshrl.u32 %v1786, 16
        %v2110 = vrot.slane %v2108, 4
        %v2111 = vshll.u32 %v1786, 16
        %v2113 = vrot.slane %v2111, 5
        %v2114 = vor.u32 %v2110, %v2113
        %v2115 = vrot.slane %v2114, 4
        %v2117 = vshll.u32 %v1787, 16
        %v2119 = vrot.slane %v2117, 5
        %v2120 = vsel %vm275, %v2115, %v2119
        %v2121 = vshrl.u32 %v1787, 16
        %v2123 = vrot.slane %v2121, 4
        %v2124 = vor.u32 %v2123, %v2119
        %v2125 = vrot.slane %v2124, 4
        %v2127 = vshll.u32 %v1788, 16
        %v2129 = vrot.slane %v2127, 5
        %v2130 = vsel %vm275, %v2125, %v2129
        %v2132 = vshrl.u32 %v1789, 16
        %v2134 = vrot.slane %v2132, 4
        %v2135 = vshll.u32 %v1789, 16
        %v2137 = vrot.slane %v2135, 5
        %v2138 = vor.u32 %v2134, %v2137
        %v2139 = vrot.slane %v2138, 4
        %v2141 = vshll.u32 %v1790, 16
        %v2143 = vrot.slane %v2141, 5
        %v2144 = vsel %vm275, %v2139, %v2143
        %v2145 = vshrl.u32 %v1790, 16
        %v2147 = vrot.slane %v2145, 4
        %v2148 = vor.u32 %v2147, %v2143
        %v2149 = vrot.slane %v2148, 4
        %v2151 = vshll.u32 %v1791, 16
        %v2153 = vrot.slane %v2151, 5
        %v2154 = vsel %vm275, %v2149, %v2153
        %v2156 = vshrl.u32 %v1792, 16
        %v2158 = vrot.slane %v2156, 4
        %v2159 = vshll.u32 %v1792, 16
        %v2161 = vrot.slane %v2159, 5
        %v2162 = vor.u32 %v2158, %v2161
        %v2163 = vrot.slane %v2162, 4
        %v2165 = vshll.u32 %v1793, 16
        %v2167 = vrot.slane %v2165, 5
        %v2168 = vsel %vm275, %v2163, %v2167
        %v2169 = vshrl.u32 %v1793, 16
        %v2171 = vrot.slane %v2169, 4
        %v2172 = vor.u32 %v2171, %v2167
        %v2173 = vrot.slane %v2172, 4
        %v2175 = vshll.u32 %v1794, 16
        %v2177 = vrot.slane %v2175, 5
        %v2178 = vsel %vm275, %v2173, %v2177
        %s2179 = scalar_lea.vmem %s1, 8
        %v2180 = vld [vmem:[%s2179] sm:$0x3]
        %v2181 = vunpack.c.l.b16 %v1808
        %v2182 = vunpack.c.l.b16 %v1818
        %v2183 = vunpack.c.l.b16 %v1832
        %v2184 = vunpack.c.l.b16 %v1842
        %v2185 = vunpack.c.l.b16 %v1856
        %v2186 = vunpack.c.l.b16 %v1866
        %v2187 = vunpack.c.l.b16 %v1880
        %v2188 = vunpack.c.l.b16 %v1890
        %v2189 = vunpack.c.l.b16 %v1904
        %v2190 = vunpack.c.l.b16 %v1914
        %v2191 = vunpack.c.l.b16 %v1928
        %v2192 = vunpack.c.l.b16 %v1938
        %v2193 = vunpack.c.l.b16 %v1952
        %v2194 = vunpack.c.l.b16 %v1962
        %v2195 = vunpack.c.l.b16 %v1976
        %v2196 = vunpack.c.l.b16 %v1986
        %v2197 = vunpack.c.l.b16 %v2000
        %v2198 = vunpack.c.l.b16 %v2010
        %v2199 = vunpack.c.l.b16 %v2024
        %v2200 = vunpack.c.l.b16 %v2034
        %v2201 = vunpack.c.l.b16 %v2048
        %v2202 = vunpack.c.l.b16 %v2058
        %v2203 = vunpack.c.l.b16 %v2072
        %v2204 = vunpack.c.l.b16 %v2082
        %v2205 = vunpack.c.l.b16 %v2096
        %v2206 = vunpack.c.l.b16 %v2106
        %v2207 = vunpack.c.l.b16 %v2120
        %v2208 = vunpack.c.l.b16 %v2130
        %v2209 = vunpack.c.l.b16 %v2144
        %v2210 = vunpack.c.l.b16 %v2154
        %v2211 = vunpack.c.l.b16 %v2168
        %v2212 = vunpack.c.l.b16 %v2178
        %v2213 = vpack.c.b16 %v2182, %v2181
        %v2214 = vpack.c.b16 %v2184, %v2183
        %v2215 = vpack.c.b16 %v2186, %v2185
        %v2216 = vpack.c.b16 %v2188, %v2187
        %v2217 = vpack.c.b16 %v2190, %v2189
        %v2218 = vpack.c.b16 %v2192, %v2191
        %v2219 = vpack.c.b16 %v2194, %v2193
        %v2220 = vpack.c.b16 %v2196, %v2195
        %v2221 = vpack.c.b16 %v2198, %v2197
        %v2222 = vpack.c.b16 %v2200, %v2199
        %v2223 = vpack.c.b16 %v2202, %v2201
        %v2224 = vpack.c.b16 %v2204, %v2203
        %v2225 = vpack.c.b16 %v2206, %v2205
        %v2226 = vpack.c.b16 %v2208, %v2207
        %v2227 = vpack.c.b16 %v2210, %v2209
        %v2228 = vpack.c.b16 %v2212, %v2211
        %v2230 = vsel %vm710, %v2213, 0
        %v2233 = vsel %vm710, %v2214, 0
        %v2236 = vsel %vm710, %v2215, 0
        %v2239 = vsel %vm710, %v2216, 0
        %v2242 = vsel %vm710, %v2217, 0
        %v2245 = vsel %vm710, %v2218, 0
        %v2248 = vsel %vm710, %v2219, 0
        %v2251 = vsel %vm710, %v2220, 0
        %v2254 = vsel %vm710, %v2221, 0
        %v2257 = vsel %vm710, %v2222, 0
        %v2260 = vsel %vm710, %v2223, 0
        %v2263 = vsel %vm710, %v2224, 0
        %v2266 = vsel %vm710, %v2225, 0
        %v2269 = vsel %vm710, %v2226, 0
        %v2272 = vsel %vm710, %v2227, 0
        %v2275 = vsel %vm710, %v2228, 0
        %v2278 = vsel %vm759, %v2180, 0
        %2280 = vmatpush.bf16.msra.mxu0 0
        %2281 = vmatpush.bf16.msra.mxu0 0
        %2282 = vmatpush.bf16.msra.mxu0 0
        %2283 = vmatpush.bf16.msra.mxu0 0
        %2284 = vmatpush.bf16.msra.mxu0 0
        %2285 = vmatpush.bf16.msra.mxu0 0
        %2286 = vmatpush.bf16.msra.mxu0 0
        %2287 = vmatpush.bf16.msra.mxu0 %v2278
        %2288 = vmatmul.bf16.gmra.mxu0 %v2230
        %v2289 = vpop.f32.mrf.mxu0
        %v2290 = vadd.f32 0.0, %v2289
        %v2291 = vpop.f32.mrf.mxu0
        %v2292 = vadd.f32 0.0, %v2291
        %2293 = vmatmul.bf16.gmra.mxu0 %v2233
        %v2294 = vpop.f32.mrf.mxu0
        %v2295 = vadd.f32 0.0, %v2294
        %v2296 = vpop.f32.mrf.mxu0
        %v2297 = vadd.f32 0.0, %v2296
        %2298 = vmatmul.bf16.gmra.mxu0 %v2236
        %v2299 = vpop.f32.mrf.mxu0
        %v2300 = vadd.f32 0.0, %v2299
        %v2301 = vpop.f32.mrf.mxu0
        %v2302 = vadd.f32 0.0, %v2301
        %2303 = vmatmul.bf16.gmra.mxu0 %v2239
        %v2304 = vpop.f32.mrf.mxu0
        %v2305 = vadd.f32 0.0, %v2304
        %v2306 = vpop.f32.mrf.mxu0
        %v2307 = vadd.f32 0.0, %v2306
        %2308 = vmatmul.bf16.gmra.mxu0 %v2242
        %v2309 = vpop.f32.mrf.mxu0
        %v2310 = vadd.f32 0.0, %v2309
        %v2311 = vpop.f32.mrf.mxu0
        %v2312 = vadd.f32 0.0, %v2311
        %2313 = vmatmul.bf16.gmra.mxu0 %v2245
        %v2314 = vpop.f32.mrf.mxu0
        %v2315 = vadd.f32 0.0, %v2314
        %v2316 = vpop.f32.mrf.mxu0
        %v2317 = vadd.f32 0.0, %v2316
        %2318 = vmatmul.bf16.gmra.mxu0 %v2248
        %v2319 = vpop.f32.mrf.mxu0
        %v2320 = vadd.f32 0.0, %v2319
        %v2321 = vpop.f32.mrf.mxu0
        %v2322 = vadd.f32 0.0, %v2321
        %2323 = vmatmul.bf16.gmra.mxu0 %v2251
        %v2324 = vpop.f32.mrf.mxu0
        %v2325 = vadd.f32 0.0, %v2324
        %v2326 = vpop.f32.mrf.mxu0
        %v2327 = vadd.f32 0.0, %v2326
        %2328 = vmatmul.bf16.gmra.mxu0 %v2254
        %v2329 = vpop.f32.mrf.mxu0
        %v2330 = vadd.f32 0.0, %v2329
        %v2331 = vpop.f32.mrf.mxu0
        %v2332 = vadd.f32 0.0, %v2331
        %2333 = vmatmul.bf16.gmra.mxu0 %v2257
        %v2334 = vpop.f32.mrf.mxu0
        %v2335 = vadd.f32 0.0, %v2334
        %v2336 = vpop.f32.mrf.mxu0
        %v2337 = vadd.f32 0.0, %v2336
        %2338 = vmatmul.bf16.gmra.mxu0 %v2260
        %v2339 = vpop.f32.mrf.mxu0
        %v2340 = vadd.f32 0.0, %v2339
        %v2341 = vpop.f32.mrf.mxu0
        %v2342 = vadd.f32 0.0, %v2341
        %2343 = vmatmul.bf16.gmra.mxu0 %v2263
        %v2344 = vpop.f32.mrf.mxu0
        %v2345 = vadd.f32 0.0, %v2344
        %v2346 = vpop.f32.mrf.mxu0
        %v2347 = vadd.f32 0.0, %v2346
        %2348 = vmatmul.bf16.gmra.mxu0 %v2266
        %v2349 = vpop.f32.mrf.mxu0
        %v2350 = vadd.f32 0.0, %v2349
        %v2351 = vpop.f32.mrf.mxu0
        %v2352 = vadd.f32 0.0, %v2351
        %2353 = vmatmul.bf16.gmra.mxu0 %v2269
        %v2354 = vpop.f32.mrf.mxu0
        %v2355 = vadd.f32 0.0, %v2354
        %v2356 = vpop.f32.mrf.mxu0
        %v2357 = vadd.f32 0.0, %v2356
        %2358 = vmatmul.bf16.gmra.mxu0 %v2272
        %v2359 = vpop.f32.mrf.mxu0
        %v2360 = vadd.f32 0.0, %v2359
        %v2361 = vpop.f32.mrf.mxu0
        %v2362 = vadd.f32 0.0, %v2361
        %2363 = vmatmul.bf16.gmra.mxu0 %v2275
        %v2364 = vpop.f32.mrf.mxu0
        %v2365 = vadd.f32 0.0, %v2364
        %v2366 = vpop.f32.mrf.mxu0
        %v2367 = vadd.f32 0.0, %v2366
        %2368 = vdwg.mxu0
        %v2369 = vadd.f32 %v1715, %v2290
        %v2370 = vadd.f32 %v1716, %v2292
        %v2371 = vadd.f32 %v1717, %v2295
        %v2372 = vadd.f32 %v1718, %v2297
        %v2373 = vadd.f32 %v1719, %v2300
        %v2374 = vadd.f32 %v1720, %v2302
        %v2375 = vadd.f32 %v1721, %v2305
        %v2376 = vadd.f32 %v1722, %v2307
        %v2377 = vadd.f32 %v1723, %v2310
        %v2378 = vadd.f32 %v1724, %v2312
        %v2379 = vadd.f32 %v1725, %v2315
        %v2380 = vadd.f32 %v1726, %v2317
        %v2381 = vadd.f32 %v1727, %v2320
        %v2382 = vadd.f32 %v1728, %v2322
        %v2383 = vadd.f32 %v1729, %v2325
        %v2384 = vadd.f32 %v1730, %v2327
        %v2385 = vadd.f32 %v1731, %v2330
        %v2386 = vadd.f32 %v1732, %v2332
        %v2387 = vadd.f32 %v1733, %v2335
        %v2388 = vadd.f32 %v1734, %v2337
        %v2389 = vadd.f32 %v1735, %v2340
        %v2390 = vadd.f32 %v1736, %v2342
        %v2391 = vadd.f32 %v1737, %v2345
        %v2392 = vadd.f32 %v1738, %v2347
        %v2393 = vadd.f32 %v1739, %v2350
        %v2394 = vadd.f32 %v1740, %v2352
        %v2395 = vadd.f32 %v1741, %v2355
        %v2396 = vadd.f32 %v1742, %v2357
        %v2397 = vadd.f32 %v1743, %v2360
        %v2398 = vadd.f32 %v1744, %v2362
        %v2399 = vadd.f32 %v1745, %v2365
        %v2400 = vadd.f32 %v1746, %v2367
        %v2401 = vld [vmem:[%s1460] sm:$0xe]
        %v2402 = vld [vmem:[%s1460 + $0xc] sm:$0xe]
        %v2403 = vld [vmem:[%s1460 + $0x18] sm:$0xe]
        %v2404 = vld [vmem:[%s1460 + $0x24] sm:$0xe]
        %v2405 = vld [vmem:[%s1460 + $0x30] sm:$0xe]
        %v2406 = vld [vmem:[%s1460 + $0x3c] sm:$0xe]
        %v2407 = vld [vmem:[%s1460 + $0x48] sm:$0xe]
        %v2408 = vld [vmem:[%s1460 + $0x54] sm:$0xe]
        %v2409 = vld [vmem:[%s1460 + $0xd8] sm:$0xe]
        %v2410 = vld [vmem:[%s1460 + $0xe4] sm:$0xe]
        %v2411 = vld [vmem:[%s1460 + $0xf0] sm:$0xe]
        %v2412 = vld [vmem:[%s1460 + $0xfc] sm:$0xe]
        %v2413 = vld [vmem:[%s1460 + $0x108] sm:$0xe]
        %v2414 = vld [vmem:[%s1460 + $0x114] sm:$0xe]
        %v2415 = vld [vmem:[%s1460 + $0x120] sm:$0xe]
        %v2416 = vld [vmem:[%s1460 + $0x12c] sm:$0xe]
        %v2465 = vrot.slane %v2401, 5
        %v2466 = vrot.slane %v2465, 4
        %v2467 = vrot.slane %v1748, 5
        %v2468 = vsel %vm1122, %v2466, %v2467
        %v2469 = vrot.slane %v2467, 4
        %v2470 = vrot.slane %v1749, 5
        %v2471 = vsel %vm1122, %v2469, %v2470
        %v2472 = vrot.slane %v2402, 5
        %v2473 = vrot.slane %v2472, 4
        %v2474 = vrot.slane %v1751, 5
        %v2475 = vsel %vm1122, %v2473, %v2474
        %v2476 = vrot.slane %v2474, 4
        %v2477 = vrot.slane %v1752, 5
        %v2478 = vsel %vm1122, %v2476, %v2477
        %v2479 = vrot.slane %v2403, 5
        %v2480 = vrot.slane %v2479, 4
        %v2481 = vrot.slane %v1754, 5
        %v2482 = vsel %vm1122, %v2480, %v2481
        %v2483 = vrot.slane %v2481, 4
        %v2484 = vrot.slane %v1755, 5
        %v2485 = vsel %vm1122, %v2483, %v2484
        %v2486 = vrot.slane %v2404, 5
        %v2487 = vrot.slane %v2486, 4
        %v2488 = vrot.slane %v1757, 5
        %v2489 = vsel %vm1122, %v2487, %v2488
        %v2490 = vrot.slane %v2488, 4
        %v2491 = vrot.slane %v1758, 5
        %v2492 = vsel %vm1122, %v2490, %v2491
        %v2493 = vrot.slane %v2405, 5
        %v2494 = vrot.slane %v2493, 4
        %v2495 = vrot.slane %v1760, 5
        %v2496 = vsel %vm1122, %v2494, %v2495
        %v2497 = vrot.slane %v2495, 4
        %v2498 = vrot.slane %v1761, 5
        %v2499 = vsel %vm1122, %v2497, %v2498
        %v2500 = vrot.slane %v2406, 5
        %v2501 = vrot.slane %v2500, 4
        %v2502 = vrot.slane %v1763, 5
        %v2503 = vsel %vm1122, %v2501, %v2502
        %v2504 = vrot.slane %v2502, 4
        %v2505 = vrot.slane %v1764, 5
        %v2506 = vsel %vm1122, %v2504, %v2505
        %v2507 = vrot.slane %v2407, 5
        %v2508 = vrot.slane %v2507, 4
        %v2509 = vrot.slane %v1766, 5
        %v2510 = vsel %vm1122, %v2508, %v2509
        %v2511 = vrot.slane %v2509, 4
        %v2512 = vrot.slane %v1767, 5
        %v2513 = vsel %vm1122, %v2511, %v2512
        %v2514 = vrot.slane %v2408, 5
        %v2515 = vrot.slane %v2514, 4
        %v2516 = vrot.slane %v1769, 5
        %v2517 = vsel %vm1122, %v2515, %v2516
        %v2518 = vrot.slane %v2516, 4
        %v2519 = vrot.slane %v1770, 5
        %v2520 = vsel %vm1122, %v2518, %v2519
        %v2521 = vrot.slane %v2409, 5
        %v2522 = vrot.slane %v2521, 4
        %v2523 = vrot.slane %v1772, 5
        %v2524 = vsel %vm1122, %v2522, %v2523
        %v2525 = vrot.slane %v2523, 4
        %v2526 = vrot.slane %v1773, 5
        %v2527 = vsel %vm1122, %v2525, %v2526
        %v2528 = vrot.slane %v2410, 5
        %v2529 = vrot.slane %v2528, 4
        %v2530 = vrot.slane %v1775, 5
        %v2531 = vsel %vm1122, %v2529, %v2530
        %v2532 = vrot.slane %v2530, 4
        %v2533 = vrot.slane %v1776, 5
        %v2534 = vsel %vm1122, %v2532, %v2533
        %v2535 = vrot.slane %v2411, 5
        %v2536 = vrot.slane %v2535, 4
        %v2537 = vrot.slane %v1778, 5
        %v2538 = vsel %vm1122, %v2536, %v2537
        %v2539 = vrot.slane %v2537, 4
        %v2540 = vrot.slane %v1779, 5
        %v2541 = vsel %vm1122, %v2539, %v2540
        %v2542 = vrot.slane %v2412, 5
        %v2543 = vrot.slane %v2542, 4
        %v2544 = vrot.slane %v1781, 5
        %v2545 = vsel %vm1122, %v2543, %v2544
        %v2546 = vrot.slane %v2544, 4
        %v2547 = vrot.slane %v1782, 5
        %v2548 = vsel %vm1122, %v2546, %v2547
        %v2549 = vrot.slane %v2413, 5
        %v2550 = vrot.slane %v2549, 4
        %v2551 = vrot.slane %v1784, 5
        %v2552 = vsel %vm1122, %v2550, %v2551
        %v2553 = vrot.slane %v2551, 4
        %v2554 = vrot.slane %v1785, 5
        %v2555 = vsel %vm1122, %v2553, %v2554
        %v2556 = vrot.slane %v2414, 5
        %v2557 = vrot.slane %v2556, 4
        %v2558 = vrot.slane %v1787, 5
        %v2559 = vsel %vm1122, %v2557, %v2558
        %v2560 = vrot.slane %v2558, 4
        %v2561 = vrot.slane %v1788, 5
        %v2562 = vsel %vm1122, %v2560, %v2561
        %v2563 = vrot.slane %v2415, 5
        %v2564 = vrot.slane %v2563, 4
        %v2565 = vrot.slane %v1790, 5
        %v2566 = vsel %vm1122, %v2564, %v2565
        %v2567 = vrot.slane %v2565, 4
        %v2568 = vrot.slane %v1791, 5
        %v2569 = vsel %vm1122, %v2567, %v2568
        %v2570 = vrot.slane %v2416, 5
        %v2571 = vrot.slane %v2570, 4
        %v2572 = vrot.slane %v1793, 5
        %v2573 = vsel %vm1122, %v2571, %v2572
        %v2574 = vrot.slane %v2572, 4
        %v2575 = vrot.slane %v1794, 5
        %v2576 = vsel %vm1122, %v2574, %v2575
        %s2577 = scalar_lea.vmem %s1, 10
        %v2578 = vld [vmem:[%s2577] sm:$0x3]
        %v2579 = vunpack.c.l.b16 %v2468
        %v2580 = vunpack.c.l.b16 %v2471
        %v2581 = vunpack.c.l.b16 %v2475
        %v2582 = vunpack.c.l.b16 %v2478
        %v2583 = vunpack.c.l.b16 %v2482
        %v2584 = vunpack.c.l.b16 %v2485
        %v2585 = vunpack.c.l.b16 %v2489
        %v2586 = vunpack.c.l.b16 %v2492
        %v2587 = vunpack.c.l.b16 %v2496
        %v2588 = vunpack.c.l.b16 %v2499
        %v2589 = vunpack.c.l.b16 %v2503
        %v2590 = vunpack.c.l.b16 %v2506
        %v2591 = vunpack.c.l.b16 %v2510
        %v2592 = vunpack.c.l.b16 %v2513
        %v2593 = vunpack.c.l.b16 %v2517
        %v2594 = vunpack.c.l.b16 %v2520
        %v2595 = vunpack.c.l.b16 %v2524
        %v2596 = vunpack.c.l.b16 %v2527
        %v2597 = vunpack.c.l.b16 %v2531
        %v2598 = vunpack.c.l.b16 %v2534
        %v2599 = vunpack.c.l.b16 %v2538
        %v2600 = vunpack.c.l.b16 %v2541
        %v2601 = vunpack.c.l.b16 %v2545
        %v2602 = vunpack.c.l.b16 %v2548
        %v2603 = vunpack.c.l.b16 %v2552
        %v2604 = vunpack.c.l.b16 %v2555
        %v2605 = vunpack.c.l.b16 %v2559
        %v2606 = vunpack.c.l.b16 %v2562
        %v2607 = vunpack.c.l.b16 %v2566
        %v2608 = vunpack.c.l.b16 %v2569
        %v2609 = vunpack.c.l.b16 %v2573
        %v2610 = vunpack.c.l.b16 %v2576
        %v2611 = vpack.c.b16 %v2580, %v2579
        %v2612 = vpack.c.b16 %v2582, %v2581
        %v2613 = vpack.c.b16 %v2584, %v2583
        %v2614 = vpack.c.b16 %v2586, %v2585
        %v2615 = vpack.c.b16 %v2588, %v2587
        %v2616 = vpack.c.b16 %v2590, %v2589
        %v2617 = vpack.c.b16 %v2592, %v2591
        %v2618 = vpack.c.b16 %v2594, %v2593
        %v2619 = vpack.c.b16 %v2596, %v2595
        %v2620 = vpack.c.b16 %v2598, %v2597
        %v2621 = vpack.c.b16 %v2600, %v2599
        %v2622 = vpack.c.b16 %v2602, %v2601
        %v2623 = vpack.c.b16 %v2604, %v2603
        %v2624 = vpack.c.b16 %v2606, %v2605
        %v2625 = vpack.c.b16 %v2608, %v2607
        %v2626 = vpack.c.b16 %v2610, %v2609
        %v2628 = vsel %vm710, %v2611, 0
        %v2631 = vsel %vm710, %v2612, 0
        %v2634 = vsel %vm710, %v2613, 0
        %v2637 = vsel %vm710, %v2614, 0
        %v2640 = vsel %vm710, %v2615, 0
        %v2643 = vsel %vm710, %v2616, 0
        %v2646 = vsel %vm710, %v2617, 0
        %v2649 = vsel %vm710, %v2618, 0
        %v2652 = vsel %vm710, %v2619, 0
        %v2655 = vsel %vm710, %v2620, 0
        %v2658 = vsel %vm710, %v2621, 0
        %v2661 = vsel %vm710, %v2622, 0
        %v2664 = vsel %vm710, %v2623, 0
        %v2667 = vsel %vm710, %v2624, 0
        %v2670 = vsel %vm710, %v2625, 0
        %v2673 = vsel %vm710, %v2626, 0
        %v2676 = vsel %vm759, %v2578, 0
        %2678 = vmatpush.bf16.msra.mxu0 0
        %2679 = vmatpush.bf16.msra.mxu0 0
        %2680 = vmatpush.bf16.msra.mxu0 0
        %2681 = vmatpush.bf16.msra.mxu0 0
        %2682 = vmatpush.bf16.msra.mxu0 0
        %2683 = vmatpush.bf16.msra.mxu0 0
        %2684 = vmatpush.bf16.msra.mxu0 0
        %2685 = vmatpush.bf16.msra.mxu0 %v2676
        %2686 = vmatmul.bf16.gmra.mxu0 %v2628
        %v2687 = vpop.f32.mrf.mxu0
        %v2688 = vadd.f32 0.0, %v2687
        %v2689 = vpop.f32.mrf.mxu0
        %v2690 = vadd.f32 0.0, %v2689
        %2691 = vmatmul.bf16.gmra.mxu0 %v2631
        %v2692 = vpop.f32.mrf.mxu0
        %v2693 = vadd.f32 0.0, %v2692
        %v2694 = vpop.f32.mrf.mxu0
        %v2695 = vadd.f32 0.0, %v2694
        %2696 = vmatmul.bf16.gmra.mxu0 %v2634
        %v2697 = vpop.f32.mrf.mxu0
        %v2698 = vadd.f32 0.0, %v2697
        %v2699 = vpop.f32.mrf.mxu0
        %v2700 = vadd.f32 0.0, %v2699
        %2701 = vmatmul.bf16.gmra.mxu0 %v2637
        %v2702 = vpop.f32.mrf.mxu0
        %v2703 = vadd.f32 0.0, %v2702
        %v2704 = vpop.f32.mrf.mxu0
        %v2705 = vadd.f32 0.0, %v2704
        %2706 = vmatmul.bf16.gmra.mxu0 %v2640
        %v2707 = vpop.f32.mrf.mxu0
        %v2708 = vadd.f32 0.0, %v2707
        %v2709 = vpop.f32.mrf.mxu0
        %v2710 = vadd.f32 0.0, %v2709
        %2711 = vmatmul.bf16.gmra.mxu0 %v2643
        %v2712 = vpop.f32.mrf.mxu0
        %v2713 = vadd.f32 0.0, %v2712
        %v2714 = vpop.f32.mrf.mxu0
        %v2715 = vadd.f32 0.0, %v2714
        %2716 = vmatmul.bf16.gmra.mxu0 %v2646
        %v2717 = vpop.f32.mrf.mxu0
        %v2718 = vadd.f32 0.0, %v2717
        %v2719 = vpop.f32.mrf.mxu0
        %v2720 = vadd.f32 0.0, %v2719
        %2721 = vmatmul.bf16.gmra.mxu0 %v2649
        %v2722 = vpop.f32.mrf.mxu0
        %v2723 = vadd.f32 0.0, %v2722
        %v2724 = vpop.f32.mrf.mxu0
        %v2725 = vadd.f32 0.0, %v2724
        %2726 = vmatmul.bf16.gmra.mxu0 %v2652
        %v2727 = vpop.f32.mrf.mxu0
        %v2728 = vadd.f32 0.0, %v2727
        %v2729 = vpop.f32.mrf.mxu0
        %v2730 = vadd.f32 0.0, %v2729
        %2731 = vmatmul.bf16.gmra.mxu0 %v2655
        %v2732 = vpop.f32.mrf.mxu0
        %v2733 = vadd.f32 0.0, %v2732
        %v2734 = vpop.f32.mrf.mxu0
        %v2735 = vadd.f32 0.0, %v2734
        %2736 = vmatmul.bf16.gmra.mxu0 %v2658
        %v2737 = vpop.f32.mrf.mxu0
        %v2738 = vadd.f32 0.0, %v2737
        %v2739 = vpop.f32.mrf.mxu0
        %v2740 = vadd.f32 0.0, %v2739
        %2741 = vmatmul.bf16.gmra.mxu0 %v2661
        %v2742 = vpop.f32.mrf.mxu0
        %v2743 = vadd.f32 0.0, %v2742
        %v2744 = vpop.f32.mrf.mxu0
        %v2745 = vadd.f32 0.0, %v2744
        %2746 = vmatmul.bf16.gmra.mxu0 %v2664
        %v2747 = vpop.f32.mrf.mxu0
        %v2748 = vadd.f32 0.0, %v2747
        %v2749 = vpop.f32.mrf.mxu0
        %v2750 = vadd.f32 0.0, %v2749
        %2751 = vmatmul.bf16.gmra.mxu0 %v2667
        %v2752 = vpop.f32.mrf.mxu0
        %v2753 = vadd.f32 0.0, %v2752
        %v2754 = vpop.f32.mrf.mxu0
        %v2755 = vadd.f32 0.0, %v2754
        %2756 = vmatmul.bf16.gmra.mxu0 %v2670
        %v2757 = vpop.f32.mrf.mxu0
        %v2758 = vadd.f32 0.0, %v2757
        %v2759 = vpop.f32.mrf.mxu0
        %v2760 = vadd.f32 0.0, %v2759
        %2761 = vmatmul.bf16.gmra.mxu0 %v2673
        %v2762 = vpop.f32.mrf.mxu0
        %v2763 = vadd.f32 0.0, %v2762
        %v2764 = vpop.f32.mrf.mxu0
        %v2765 = vadd.f32 0.0, %v2764
        %2766 = vdwg.mxu0
        %v2767 = vadd.f32 %v2369, %v2688
        %v2768 = vadd.f32 %v2370, %v2690
        %v2769 = vadd.f32 %v2371, %v2693
        %v2770 = vadd.f32 %v2372, %v2695
        %v2771 = vadd.f32 %v2373, %v2698
        %v2772 = vadd.f32 %v2374, %v2700
        %v2773 = vadd.f32 %v2375, %v2703
        %v2774 = vadd.f32 %v2376, %v2705
        %v2775 = vadd.f32 %v2377, %v2708
        %v2776 = vadd.f32 %v2378, %v2710
        %v2777 = vadd.f32 %v2379, %v2713
        %v2778 = vadd.f32 %v2380, %v2715
        %v2779 = vadd.f32 %v2381, %v2718
        %v2780 = vadd.f32 %v2382, %v2720
        %v2781 = vadd.f32 %v2383, %v2723
        %v2782 = vadd.f32 %v2384, %v2725
        %v2783 = vadd.f32 %v2385, %v2728
        %v2784 = vadd.f32 %v2386, %v2730
        %v2785 = vadd.f32 %v2387, %v2733
        %v2786 = vadd.f32 %v2388, %v2735
        %v2787 = vadd.f32 %v2389, %v2738
        %v2788 = vadd.f32 %v2390, %v2740
        %v2789 = vadd.f32 %v2391, %v2743
        %v2790 = vadd.f32 %v2392, %v2745
        %v2791 = vadd.f32 %v2393, %v2748
        %v2792 = vadd.f32 %v2394, %v2750
        %v2793 = vadd.f32 %v2395, %v2753
        %v2794 = vadd.f32 %v2396, %v2755
        %v2795 = vadd.f32 %v2397, %v2758
        %v2796 = vadd.f32 %v2398, %v2760
        %v2797 = vadd.f32 %v2399, %v2763
        %v2798 = vadd.f32 %v2400, %v2765
        %s2799 = sadd.s32 %s220, 2
        %s2800 = smul.u32 %s2799, 3
        %s2801 = smul.addr %s2800, 4
        %s2802 = scalar_lea.vmem %s0, %s2801
        %v2803 = vld [vmem:[%s2802] sm:$0xf]
        %v2804 = vld [vmem:[%s2802 + $0x4] sm:$0xf]
        %v2805 = vld [vmem:[%s2802 + $0xc] sm:$0xf]
        %v2806 = vld [vmem:[%s2802 + $0x10] sm:$0xf]
        %v2807 = vld [vmem:[%s2802 + $0x18] sm:$0xf]
        %v2808 = vld [vmem:[%s2802 + $0x1c] sm:$0xf]
        %v2809 = vld [vmem:[%s2802 + $0x24] sm:$0xf]
        %v2810 = vld [vmem:[%s2802 + $0x28] sm:$0xf]
        %v2811 = vld [vmem:[%s2802 + $0x30] sm:$0xf]
        %v2812 = vld [vmem:[%s2802 + $0x34] sm:$0xf]
        %v2813 = vld [vmem:[%s2802 + $0x3c] sm:$0xf]
        %v2814 = vld [vmem:[%s2802 + $0x40] sm:$0xf]
        %v2815 = vld [vmem:[%s2802 + $0x48] sm:$0xf]
        %v2816 = vld [vmem:[%s2802 + $0x4c] sm:$0xf]
        %v2817 = vld [vmem:[%s2802 + $0x54] sm:$0xf]
        %v2818 = vld [vmem:[%s2802 + $0x58] sm:$0xf]
        %v2819 = vld [vmem:[%s2802 + $0xd8] sm:$0xf]
        %v2820 = vld [vmem:[%s2802 + $0xdc] sm:$0xf]
        %v2821 = vld [vmem:[%s2802 + $0xe4] sm:$0xf]
        %v2822 = vld [vmem:[%s2802 + $0xe8] sm:$0xf]
        %v2823 = vld [vmem:[%s2802 + $0xf0] sm:$0xf]
        %v2824 = vld [vmem:[%s2802 + $0xf4] sm:$0xf]
        %v2825 = vld [vmem:[%s2802 + $0xfc] sm:$0xf]
        %v2826 = vld [vmem:[%s2802 + $0x100] sm:$0xf]
        %v2827 = vld [vmem:[%s2802 + $0x108] sm:$0xf]
        %v2828 = vld [vmem:[%s2802 + $0x10c] sm:$0xf]
        %v2829 = vld [vmem:[%s2802 + $0x114] sm:$0xf]
        %v2830 = vld [vmem:[%s2802 + $0x118] sm:$0xf]
        %v2831 = vld [vmem:[%s2802 + $0x120] sm:$0xf]
        %v2832 = vld [vmem:[%s2802 + $0x124] sm:$0xf]
        %v2833 = vld [vmem:[%s2802 + $0x12c] sm:$0xf]
        %v2834 = vld [vmem:[%s2802 + $0x130] sm:$0xf]
        %s2835 = scalar_lea.vmem %s1, 12
        %v2836 = vld [vmem:[%s2835] sm:$0x3]
        %v2869 = vunpack.c.l.b16 %v2803
        %v2870 = vunpack.c.l.b16 %v2804
        %v2871 = vunpack.c.l.b16 %v2805
        %v2872 = vunpack.c.l.b16 %v2806
        %v2873 = vunpack.c.l.b16 %v2807
        %v2874 = vunpack.c.l.b16 %v2808
        %v2875 = vunpack.c.l.b16 %v2809
        %v2876 = vunpack.c.l.b16 %v2810
        %v2877 = vunpack.c.l.b16 %v2811
        %v2878 = vunpack.c.l.b16 %v2812
        %v2879 = vunpack.c.l.b16 %v2813
        %v2880 = vunpack.c.l.b16 %v2814
        %v2881 = vunpack.c.l.b16 %v2815
        %v2882 = vunpack.c.l.b16 %v2816
        %v2883 = vunpack.c.l.b16 %v2817
        %v2884 = vunpack.c.l.b16 %v2818
        %v2885 = vunpack.c.l.b16 %v2819
        %v2886 = vunpack.c.l.b16 %v2820
        %v2887 = vunpack.c.l.b16 %v2821
        %v2888 = vunpack.c.l.b16 %v2822
        %v2889 = vunpack.c.l.b16 %v2823
        %v2890 = vunpack.c.l.b16 %v2824
        %v2891 = vunpack.c.l.b16 %v2825
        %v2892 = vunpack.c.l.b16 %v2826
        %v2893 = vunpack.c.l.b16 %v2827
        %v2894 = vunpack.c.l.b16 %v2828
        %v2895 = vunpack.c.l.b16 %v2829
        %v2896 = vunpack.c.l.b16 %v2830
        %v2897 = vunpack.c.l.b16 %v2831
        %v2898 = vunpack.c.l.b16 %v2832
        %v2899 = vunpack.c.l.b16 %v2833
        %v2900 = vunpack.c.l.b16 %v2834
        %v2901 = vpack.c.b16 %v2870, %v2869
        %v2902 = vpack.c.b16 %v2872, %v2871
        %v2903 = vpack.c.b16 %v2874, %v2873
        %v2904 = vpack.c.b16 %v2876, %v2875
        %v2905 = vpack.c.b16 %v2878, %v2877
        %v2906 = vpack.c.b16 %v2880, %v2879
        %v2907 = vpack.c.b16 %v2882, %v2881
        %v2908 = vpack.c.b16 %v2884, %v2883
        %v2909 = vpack.c.b16 %v2886, %v2885
        %v2910 = vpack.c.b16 %v2888, %v2887
        %v2911 = vpack.c.b16 %v2890, %v2889
        %v2912 = vpack.c.b16 %v2892, %v2891
        %v2913 = vpack.c.b16 %v2894, %v2893
        %v2914 = vpack.c.b16 %v2896, %v2895
        %v2915 = vpack.c.b16 %v2898, %v2897
        %v2916 = vpack.c.b16 %v2900, %v2899
        %v2918 = vsel %vm710, %v2901, 0
        %v2921 = vsel %vm710, %v2902, 0
        %v2924 = vsel %vm710, %v2903, 0
        %v2927 = vsel %vm710, %v2904, 0
        %v2930 = vsel %vm710, %v2905, 0
        %v2933 = vsel %vm710, %v2906, 0
        %v2936 = vsel %vm710, %v2907, 0
        %v2939 = vsel %vm710, %v2908, 0
        %v2942 = vsel %vm710, %v2909, 0
        %v2945 = vsel %vm710, %v2910, 0
        %v2948 = vsel %vm710, %v2911, 0
        %v2951 = vsel %vm710, %v2912, 0
        %v2954 = vsel %vm710, %v2913, 0
        %v2957 = vsel %vm710, %v2914, 0
        %v2960 = vsel %vm710, %v2915, 0
        %v2963 = vsel %vm710, %v2916, 0
        %v2966 = vsel %vm759, %v2836, 0
        %2968 = vmatpush.bf16.msra.mxu0 0
        %2969 = vmatpush.bf16.msra.mxu0 0
        %2970 = vmatpush.bf16.msra.mxu0 0
        %2971 = vmatpush.bf16.msra.mxu0 0
        %2972 = vmatpush.bf16.msra.mxu0 0
        %2973 = vmatpush.bf16.msra.mxu0 0
        %2974 = vmatpush.bf16.msra.mxu0 0
        %2975 = vmatpush.bf16.msra.mxu0 %v2966
        %2976 = vmatmul.bf16.gmra.mxu0 %v2918
        %v2977 = vpop.f32.mrf.mxu0
        %v2978 = vadd.f32 0.0, %v2977
        %v2979 = vpop.f32.mrf.mxu0
        %v2980 = vadd.f32 0.0, %v2979
        %2981 = vmatmul.bf16.gmra.mxu0 %v2921
        %v2982 = vpop.f32.mrf.mxu0
        %v2983 = vadd.f32 0.0, %v2982
        %v2984 = vpop.f32.mrf.mxu0
        %v2985 = vadd.f32 0.0, %v2984
        %2986 = vmatmul.bf16.gmra.mxu0 %v2924
        %v2987 = vpop.f32.mrf.mxu0
        %v2988 = vadd.f32 0.0, %v2987
        %v2989 = vpop.f32.mrf.mxu0
        %v2990 = vadd.f32 0.0, %v2989
        %2991 = vmatmul.bf16.gmra.mxu0 %v2927
        %v2992 = vpop.f32.mrf.mxu0
        %v2993 = vadd.f32 0.0, %v2992
        %v2994 = vpop.f32.mrf.mxu0
        %v2995 = vadd.f32 0.0, %v2994
        %2996 = vmatmul.bf16.gmra.mxu0 %v2930
        %v2997 = vpop.f32.mrf.mxu0
        %v2998 = vadd.f32 0.0, %v2997
        %v2999 = vpop.f32.mrf.mxu0
        %v3000 = vadd.f32 0.0, %v2999
        %3001 = vmatmul.bf16.gmra.mxu0 %v2933
        %v3002 = vpop.f32.mrf.mxu0
        %v3003 = vadd.f32 0.0, %v3002
        %v3004 = vpop.f32.mrf.mxu0
        %v3005 = vadd.f32 0.0, %v3004
        %3006 = vmatmul.bf16.gmra.mxu0 %v2936
        %v3007 = vpop.f32.mrf.mxu0
        %v3008 = vadd.f32 0.0, %v3007
        %v3009 = vpop.f32.mrf.mxu0
        %v3010 = vadd.f32 0.0, %v3009
        %3011 = vmatmul.bf16.gmra.mxu0 %v2939
        %v3012 = vpop.f32.mrf.mxu0
        %v3013 = vadd.f32 0.0, %v3012
        %v3014 = vpop.f32.mrf.mxu0
        %v3015 = vadd.f32 0.0, %v3014
        %3016 = vmatmul.bf16.gmra.mxu0 %v2942
        %v3017 = vpop.f32.mrf.mxu0
        %v3018 = vadd.f32 0.0, %v3017
        %v3019 = vpop.f32.mrf.mxu0
        %v3020 = vadd.f32 0.0, %v3019
        %3021 = vmatmul.bf16.gmra.mxu0 %v2945
        %v3022 = vpop.f32.mrf.mxu0
        %v3023 = vadd.f32 0.0, %v3022
        %v3024 = vpop.f32.mrf.mxu0
        %v3025 = vadd.f32 0.0, %v3024
        %3026 = vmatmul.bf16.gmra.mxu0 %v2948
        %v3027 = vpop.f32.mrf.mxu0
        %v3028 = vadd.f32 0.0, %v3027
        %v3029 = vpop.f32.mrf.mxu0
        %v3030 = vadd.f32 0.0, %v3029
        %3031 = vmatmul.bf16.gmra.mxu0 %v2951
        %v3032 = vpop.f32.mrf.mxu0
        %v3033 = vadd.f32 0.0, %v3032
        %v3034 = vpop.f32.mrf.mxu0
        %v3035 = vadd.f32 0.0, %v3034
        %3036 = vmatmul.bf16.gmra.mxu0 %v2954
        %v3037 = vpop.f32.mrf.mxu0
        %v3038 = vadd.f32 0.0, %v3037
        %v3039 = vpop.f32.mrf.mxu0
        %v3040 = vadd.f32 0.0, %v3039
        %3041 = vmatmul.bf16.gmra.mxu0 %v2957
        %v3042 = vpop.f32.mrf.mxu0
        %v3043 = vadd.f32 0.0, %v3042
        %v3044 = vpop.f32.mrf.mxu0
        %v3045 = vadd.f32 0.0, %v3044
        %3046 = vmatmul.bf16.gmra.mxu0 %v2960
        %v3047 = vpop.f32.mrf.mxu0
        %v3048 = vadd.f32 0.0, %v3047
        %v3049 = vpop.f32.mrf.mxu0
        %v3050 = vadd.f32 0.0, %v3049
        %3051 = vmatmul.bf16.gmra.mxu0 %v2963
        %v3052 = vpop.f32.mrf.mxu0
        %v3053 = vadd.f32 0.0, %v3052
        %v3054 = vpop.f32.mrf.mxu0
        %v3055 = vadd.f32 0.0, %v3054
        %3056 = vdwg.mxu0
        %v3057 = vadd.f32 %v2767, %v2978
        %v3058 = vadd.f32 %v2768, %v2980
        %v3059 = vadd.f32 %v2769, %v2983
        %v3060 = vadd.f32 %v2770, %v2985
        %v3061 = vadd.f32 %v2771, %v2988
        %v3062 = vadd.f32 %v2772, %v2990
        %v3063 = vadd.f32 %v2773, %v2993
        %v3064 = vadd.f32 %v2774, %v2995
        %v3065 = vadd.f32 %v2775, %v2998
        %v3066 = vadd.f32 %v2776, %v3000
        %v3067 = vadd.f32 %v2777, %v3003
        %v3068 = vadd.f32 %v2778, %v3005
        %v3069 = vadd.f32 %v2779, %v3008
        %v3070 = vadd.f32 %v2780, %v3010
        %v3071 = vadd.f32 %v2781, %v3013
        %v3072 = vadd.f32 %v2782, %v3015
        %v3073 = vadd.f32 %v2783, %v3018
        %v3074 = vadd.f32 %v2784, %v3020
        %v3075 = vadd.f32 %v2785, %v3023
        %v3076 = vadd.f32 %v2786, %v3025
        %v3077 = vadd.f32 %v2787, %v3028
        %v3078 = vadd.f32 %v2788, %v3030
        %v3079 = vadd.f32 %v2789, %v3033
        %v3080 = vadd.f32 %v2790, %v3035
        %v3081 = vadd.f32 %v2791, %v3038
        %v3082 = vadd.f32 %v2792, %v3040
        %v3083 = vadd.f32 %v2793, %v3043
        %v3084 = vadd.f32 %v2794, %v3045
        %v3085 = vadd.f32 %v2795, %v3048
        %v3086 = vadd.f32 %v2796, %v3050
        %v3087 = vadd.f32 %v2797, %v3053
        %v3088 = vadd.f32 %v2798, %v3055
        %v3089 = vld [vmem:[%s2802] sm:$0xf]
        %v3090 = vld [vmem:[%s2802 + $0x4] sm:$0xf]
        %v3091 = vld [vmem:[%s2802 + $0x8] sm:$0x1]
        %v3092 = vld [vmem:[%s2802 + $0xc] sm:$0xf]
        %v3093 = vld [vmem:[%s2802 + $0x10] sm:$0xf]
        %v3094 = vld [vmem:[%s2802 + $0x14] sm:$0x1]
        %v3095 = vld [vmem:[%s2802 + $0x18] sm:$0xf]
        %v3096 = vld [vmem:[%s2802 + $0x1c] sm:$0xf]
        %v3097 = vld [vmem:[%s2802 + $0x20] sm:$0x1]
        %v3098 = vld [vmem:[%s2802 + $0x24] sm:$0xf]
        %v3099 = vld [vmem:[%s2802 + $0x28] sm:$0xf]
        %v3100 = vld [vmem:[%s2802 + $0x2c] sm:$0x1]
        %v3101 = vld [vmem:[%s2802 + $0x30] sm:$0xf]
        %v3102 = vld [vmem:[%s2802 + $0x34] sm:$0xf]
        %v3103 = vld [vmem:[%s2802 + $0x38] sm:$0x1]
        %v3104 = vld [vmem:[%s2802 + $0x3c] sm:$0xf]
        %v3105 = vld [vmem:[%s2802 + $0x40] sm:$0xf]
        %v3106 = vld [vmem:[%s2802 + $0x44] sm:$0x1]
        %v3107 = vld [vmem:[%s2802 + $0x48] sm:$0xf]
        %v3108 = vld [vmem:[%s2802 + $0x4c] sm:$0xf]
        %v3109 = vld [vmem:[%s2802 + $0x50] sm:$0x1]
        %v3110 = vld [vmem:[%s2802 + $0x54] sm:$0xf]
        %v3111 = vld [vmem:[%s2802 + $0x58] sm:$0xf]
        %v3112 = vld [vmem:[%s2802 + $0x5c] sm:$0x1]
        %v3113 = vld [vmem:[%s2802 + $0xd8] sm:$0xf]
        %v3114 = vld [vmem:[%s2802 + $0xdc] sm:$0xf]
        %v3115 = vld [vmem:[%s2802 + $0xe0] sm:$0x1]
        %v3116 = vld [vmem:[%s2802 + $0xe4] sm:$0xf]
        %v3117 = vld [vmem:[%s2802 + $0xe8] sm:$0xf]
        %v3118 = vld [vmem:[%s2802 + $0xec] sm:$0x1]
        %v3119 = vld [vmem:[%s2802 + $0xf0] sm:$0xf]
        %v3120 = vld [vmem:[%s2802 + $0xf4] sm:$0xf]
        %v3121 = vld [vmem:[%s2802 + $0xf8] sm:$0x1]
        %v3122 = vld [vmem:[%s2802 + $0xfc] sm:$0xf]
        %v3123 = vld [vmem:[%s2802 + $0x100] sm:$0xf]
        %v3124 = vld [vmem:[%s2802 + $0x104] sm:$0x1]
        %v3125 = vld [vmem:[%s2802 + $0x108] sm:$0xf]
        %v3126 = vld [vmem:[%s2802 + $0x10c] sm:$0xf]
        %v3127 = vld [vmem:[%s2802 + $0x110] sm:$0x1]
        %v3128 = vld [vmem:[%s2802 + $0x114] sm:$0xf]
        %v3129 = vld [vmem:[%s2802 + $0x118] sm:$0xf]
        %v3130 = vld [vmem:[%s2802 + $0x11c] sm:$0x1]
        %v3131 = vld [vmem:[%s2802 + $0x120] sm:$0xf]
        %v3132 = vld [vmem:[%s2802 + $0x124] sm:$0xf]
        %v3133 = vld [vmem:[%s2802 + $0x128] sm:$0x1]
        %v3134 = vld [vmem:[%s2802 + $0x12c] sm:$0xf]
        %v3135 = vld [vmem:[%s2802 + $0x130] sm:$0xf]
        %v3136 = vld [vmem:[%s2802 + $0x134] sm:$0x1]
        %v3138 = vshrl.u32 %v3089, 16
        %v3140 = vrot.slane %v3138, 4
        %v3141 = vshll.u32 %v3089, 16
        %v3143 = vrot.slane %v3141, 5
        %v3144 = vor.u32 %v3140, %v3143
        %v3145 = vrot.slane %v3144, 4
        %v3147 = vshll.u32 %v3090, 16
        %v3149 = vrot.slane %v3147, 5
        %v3150 = vsel %vm275, %v3145, %v3149
        %v3151 = vshrl.u32 %v3090, 16
        %v3153 = vrot.slane %v3151, 4
        %v3154 = vor.u32 %v3153, %v3149
        %v3155 = vrot.slane %v3154, 4
        %v3157 = vshll.u32 %v3091, 16
        %v3159 = vrot.slane %v3157, 5
        %v3160 = vsel %vm275, %v3155, %v3159
        %v3162 = vshrl.u32 %v3092, 16
        %v3164 = vrot.slane %v3162, 4
        %v3165 = vshll.u32 %v3092, 16
        %v3167 = vrot.slane %v3165, 5
        %v3168 = vor.u32 %v3164, %v3167
        %v3169 = vrot.slane %v3168, 4
        %v3171 = vshll.u32 %v3093, 16
        %v3173 = vrot.slane %v3171, 5
        %v3174 = vsel %vm275, %v3169, %v3173
        %v3175 = vshrl.u32 %v3093, 16
        %v3177 = vrot.slane %v3175, 4
        %v3178 = vor.u32 %v3177, %v3173
        %v3179 = vrot.slane %v3178, 4
        %v3181 = vshll.u32 %v3094, 16
        %v3183 = vrot.slane %v3181, 5
        %v3184 = vsel %vm275, %v3179, %v3183
        %v3186 = vshrl.u32 %v3095, 16
        %v3188 = vrot.slane %v3186, 4
        %v3189 = vshll.u32 %v3095, 16
        %v3191 = vrot.slane %v3189, 5
        %v3192 = vor.u32 %v3188, %v3191
        %v3193 = vrot.slane %v3192, 4
        %v3195 = vshll.u32 %v3096, 16
        %v3197 = vrot.slane %v3195, 5
        %v3198 = vsel %vm275, %v3193, %v3197
        %v3199 = vshrl.u32 %v3096, 16
        %v3201 = vrot.slane %v3199, 4
        %v3202 = vor.u32 %v3201, %v3197
        %v3203 = vrot.slane %v3202, 4
        %v3205 = vshll.u32 %v3097, 16
        %v3207 = vrot.slane %v3205, 5
        %v3208 = vsel %vm275, %v3203, %v3207
        %v3210 = vshrl.u32 %v3098, 16
        %v3212 = vrot.slane %v3210, 4
        %v3213 = vshll.u32 %v3098, 16
        %v3215 = vrot.slane %v3213, 5
        %v3216 = vor.u32 %v3212, %v3215
        %v3217 = vrot.slane %v3216, 4
        %v3219 = vshll.u32 %v3099, 16
        %v3221 = vrot.slane %v3219, 5
        %v3222 = vsel %vm275, %v3217, %v3221
        %v3223 = vshrl.u32 %v3099, 16
        %v3225 = vrot.slane %v3223, 4
        %v3226 = vor.u32 %v3225, %v3221
        %v3227 = vrot.slane %v3226, 4
        %v3229 = vshll.u32 %v3100, 16
        %v3231 = vrot.slane %v3229, 5
        %v3232 = vsel %vm275, %v3227, %v3231
        %v3234 = vshrl.u32 %v3101, 16
        %v3236 = vrot.slane %v3234, 4
        %v3237 = vshll.u32 %v3101, 16
        %v3239 = vrot.slane %v3237, 5
        %v3240 = vor.u32 %v3236, %v3239
        %v3241 = vrot.slane %v3240, 4
        %v3243 = vshll.u32 %v3102, 16
        %v3245 = vrot.slane %v3243, 5
        %v3246 = vsel %vm275, %v3241, %v3245
        %v3247 = vshrl.u32 %v3102, 16
        %v3249 = vrot.slane %v3247, 4
        %v3250 = vor.u32 %v3249, %v3245
        %v3251 = vrot.slane %v3250, 4
        %v3253 = vshll.u32 %v3103, 16
        %v3255 = vrot.slane %v3253, 5
        %v3256 = vsel %vm275, %v3251, %v3255
        %v3258 = vshrl.u32 %v3104, 16
        %v3260 = vrot.slane %v3258, 4
        %v3261 = vshll.u32 %v3104, 16
        %v3263 = vrot.slane %v3261, 5
        %v3264 = vor.u32 %v3260, %v3263
        %v3265 = vrot.slane %v3264, 4
        %v3267 = vshll.u32 %v3105, 16
        %v3269 = vrot.slane %v3267, 5
        %v3270 = vsel %vm275, %v3265, %v3269
        %v3271 = vshrl.u32 %v3105, 16
        %v3273 = vrot.slane %v3271, 4
        %v3274 = vor.u32 %v3273, %v3269
        %v3275 = vrot.slane %v3274, 4
        %v3277 = vshll.u32 %v3106, 16
        %v3279 = vrot.slane %v3277, 5
        %v3280 = vsel %vm275, %v3275, %v3279
        %v3282 = vshrl.u32 %v3107, 16
        %v3284 = vrot.slane %v3282, 4
        %v3285 = vshll.u32 %v3107, 16
        %v3287 = vrot.slane %v3285, 5
        %v3288 = vor.u32 %v3284, %v3287
        %v3289 = vrot.slane %v3288, 4
        %v3291 = vshll.u32 %v3108, 16
        %v3293 = vrot.slane %v3291, 5
        %v3294 = vsel %vm275, %v3289, %v3293
        %v3295 = vshrl.u32 %v3108, 16
        %v3297 = vrot.slane %v3295, 4
        %v3298 = vor.u32 %v3297, %v3293
        %v3299 = vrot.slane %v3298, 4
        %v3301 = vshll.u32 %v3109, 16
        %v3303 = vrot.slane %v3301, 5
        %v3304 = vsel %vm275, %v3299, %v3303
        %v3306 = vshrl.u32 %v3110, 16
        %v3308 = vrot.slane %v3306, 4
        %v3309 = vshll.u32 %v3110, 16
        %v3311 = vrot.slane %v3309, 5
        %v3312 = vor.u32 %v3308, %v3311
        %v3313 = vrot.slane %v3312, 4
        %v3315 = vshll.u32 %v3111, 16
        %v3317 = vrot.slane %v3315, 5
        %v3318 = vsel %vm275, %v3313, %v3317
        %v3319 = vshrl.u32 %v3111, 16
        %v3321 = vrot.slane %v3319, 4
        %v3322 = vor.u32 %v3321, %v3317
        %v3323 = vrot.slane %v3322, 4
        %v3325 = vshll.u32 %v3112, 16
        %v3327 = vrot.slane %v3325, 5
        %v3328 = vsel %vm275, %v3323, %v3327
        %v3330 = vshrl.u32 %v3113, 16
        %v3332 = vrot.slane %v3330, 4
        %v3333 = vshll.u32 %v3113, 16
        %v3335 = vrot.slane %v3333, 5
        %v3336 = vor.u32 %v3332, %v3335
        %v3337 = vrot.slane %v3336, 4
        %v3339 = vshll.u32 %v3114, 16
        %v3341 = vrot.slane %v3339, 5
        %v3342 = vsel %vm275, %v3337, %v3341
        %v3343 = vshrl.u32 %v3114, 16
        %v3345 = vrot.slane %v3343, 4
        %v3346 = vor.u32 %v3345, %v3341
        %v3347 = vrot.slane %v3346, 4
        %v3349 = vshll.u32 %v3115, 16
        %v3351 = vrot.slane %v3349, 5
        %v3352 = vsel %vm275, %v3347, %v3351
        %v3354 = vshrl.u32 %v3116, 16
        %v3356 = vrot.slane %v3354, 4
        %v3357 = vshll.u32 %v3116, 16
        %v3359 = vrot.slane %v3357, 5
        %v3360 = vor.u32 %v3356, %v3359
        %v3361 = vrot.slane %v3360, 4
        %v3363 = vshll.u32 %v3117, 16
        %v3365 = vrot.slane %v3363, 5
        %v3366 = vsel %vm275, %v3361, %v3365
        %v3367 = vshrl.u32 %v3117, 16
        %v3369 = vrot.slane %v3367, 4
        %v3370 = vor.u32 %v3369, %v3365
        %v3371 = vrot.slane %v3370, 4
        %v3373 = vshll.u32 %v3118, 16
        %v3375 = vrot.slane %v3373, 5
        %v3376 = vsel %vm275, %v3371, %v3375
        %v3378 = vshrl.u32 %v3119, 16
        %v3380 = vrot.slane %v3378, 4
        %v3381 = vshll.u32 %v3119, 16
        %v3383 = vrot.slane %v3381, 5
        %v3384 = vor.u32 %v3380, %v3383
        %v3385 = vrot.slane %v3384, 4
        %v3387 = vshll.u32 %v3120, 16
        %v3389 = vrot.slane %v3387, 5
        %v3390 = vsel %vm275, %v3385, %v3389
        %v3391 = vshrl.u32 %v3120, 16
        %v3393 = vrot.slane %v3391, 4
        %v3394 = vor.u32 %v3393, %v3389
        %v3395 = vrot.slane %v3394, 4
        %v3397 = vshll.u32 %v3121, 16
        %v3399 = vrot.slane %v3397, 5
        %v3400 = vsel %vm275, %v3395, %v3399
        %v3402 = vshrl.u32 %v3122, 16
        %v3404 = vrot.slane %v3402, 4
        %v3405 = vshll.u32 %v3122, 16
        %v3407 = vrot.slane %v3405, 5
        %v3408 = vor.u32 %v3404, %v3407
        %v3409 = vrot.slane %v3408, 4
        %v3411 = vshll.u32 %v3123, 16
        %v3413 = vrot.slane %v3411, 5
        %v3414 = vsel %vm275, %v3409, %v3413
        %v3415 = vshrl.u32 %v3123, 16
        %v3417 = vrot.slane %v3415, 4
        %v3418 = vor.u32 %v3417, %v3413
        %v3419 = vrot.slane %v3418, 4
        %v3421 = vshll.u32 %v3124, 16
        %v3423 = vrot.slane %v3421, 5
        %v3424 = vsel %vm275, %v3419, %v3423
        %v3426 = vshrl.u32 %v3125, 16
        %v3428 = vrot.slane %v3426, 4
        %v3429 = vshll.u32 %v3125, 16
        %v3431 = vrot.slane %v3429, 5
        %v3432 = vor.u32 %v3428, %v3431
        %v3433 = vrot.slane %v3432, 4
        %v3435 = vshll.u32 %v3126, 16
        %v3437 = vrot.slane %v3435, 5
        %v3438 = vsel %vm275, %v3433, %v3437
        %v3439 = vshrl.u32 %v3126, 16
        %v3441 = vrot.slane %v3439, 4
        %v3442 = vor.u32 %v3441, %v3437
        %v3443 = vrot.slane %v3442, 4
        %v3445 = vshll.u32 %v3127, 16
        %v3447 = vrot.slane %v3445, 5
        %v3448 = vsel %vm275, %v3443, %v3447
        %v3450 = vshrl.u32 %v3128, 16
        %v3452 = vrot.slane %v3450, 4
        %v3453 = vshll.u32 %v3128, 16
        %v3455 = vrot.slane %v3453, 5
        %v3456 = vor.u32 %v3452, %v3455
        %v3457 = vrot.slane %v3456, 4
        %v3459 = vshll.u32 %v3129, 16
        %v3461 = vrot.slane %v3459, 5
        %v3462 = vsel %vm275, %v3457, %v3461
        %v3463 = vshrl.u32 %v3129, 16
        %v3465 = vrot.slane %v3463, 4
        %v3466 = vor.u32 %v3465, %v3461
        %v3467 = vrot.slane %v3466, 4
        %v3469 = vshll.u32 %v3130, 16
        %v3471 = vrot.slane %v3469, 5
        %v3472 = vsel %vm275, %v3467, %v3471
        %v3474 = vshrl.u32 %v3131, 16
        %v3476 = vrot.slane %v3474, 4
        %v3477 = vshll.u32 %v3131, 16
        %v3479 = vrot.slane %v3477, 5
        %v3480 = vor.u32 %v3476, %v3479
        %v3481 = vrot.slane %v3480, 4
        %v3483 = vshll.u32 %v3132, 16
        %v3485 = vrot.slane %v3483, 5
        %v3486 = vsel %vm275, %v3481, %v3485
        %v3487 = vshrl.u32 %v3132, 16
        %v3489 = vrot.slane %v3487, 4
        %v3490 = vor.u32 %v3489, %v3485
        %v3491 = vrot.slane %v3490, 4
        %v3493 = vshll.u32 %v3133, 16
        %v3495 = vrot.slane %v3493, 5
        %v3496 = vsel %vm275, %v3491, %v3495
        %v3498 = vshrl.u32 %v3134, 16
        %v3500 = vrot.slane %v3498, 4
        %v3501 = vshll.u32 %v3134, 16
        %v3503 = vrot.slane %v3501, 5
        %v3504 = vor.u32 %v3500, %v3503
        %v3505 = vrot.slane %v3504, 4
        %v3507 = vshll.u32 %v3135, 16
        %v3509 = vrot.slane %v3507, 5
        %v3510 = vsel %vm275, %v3505, %v3509
        %v3511 = vshrl.u32 %v3135, 16
        %v3513 = vrot.slane %v3511, 4
        %v3514 = vor.u32 %v3513, %v3509
        %v3515 = vrot.slane %v3514, 4
        %v3517 = vshll.u32 %v3136, 16
        %v3519 = vrot.slane %v3517, 5
        %v3520 = vsel %vm275, %v3515, %v3519
        %s3521 = scalar_lea.vmem %s1, 14
        %v3522 = vld [vmem:[%s3521] sm:$0x3]
        %v3523 = vunpack.c.l.b16 %v3150
        %v3524 = vunpack.c.l.b16 %v3160
        %v3525 = vunpack.c.l.b16 %v3174
        %v3526 = vunpack.c.l.b16 %v3184
        %v3527 = vunpack.c.l.b16 %v3198
        %v3528 = vunpack.c.l.b16 %v3208
        %v3529 = vunpack.c.l.b16 %v3222
        %v3530 = vunpack.c.l.b16 %v3232
        %v3531 = vunpack.c.l.b16 %v3246
        %v3532 = vunpack.c.l.b16 %v3256
        %v3533 = vunpack.c.l.b16 %v3270
        %v3534 = vunpack.c.l.b16 %v3280
        %v3535 = vunpack.c.l.b16 %v3294
        %v3536 = vunpack.c.l.b16 %v3304
        %v3537 = vunpack.c.l.b16 %v3318
        %v3538 = vunpack.c.l.b16 %v3328
        %v3539 = vunpack.c.l.b16 %v3342
        %v3540 = vunpack.c.l.b16 %v3352
        %v3541 = vunpack.c.l.b16 %v3366
        %v3542 = vunpack.c.l.b16 %v3376
        %v3543 = vunpack.c.l.b16 %v3390
        %v3544 = vunpack.c.l.b16 %v3400
        %v3545 = vunpack.c.l.b16 %v3414
        %v3546 = vunpack.c.l.b16 %v3424
        %v3547 = vunpack.c.l.b16 %v3438
        %v3548 = vunpack.c.l.b16 %v3448
        %v3549 = vunpack.c.l.b16 %v3462
        %v3550 = vunpack.c.l.b16 %v3472
        %v3551 = vunpack.c.l.b16 %v3486
        %v3552 = vunpack.c.l.b16 %v3496
        %v3553 = vunpack.c.l.b16 %v3510
        %v3554 = vunpack.c.l.b16 %v3520
        %v3555 = vpack.c.b16 %v3524, %v3523
        %v3556 = vpack.c.b16 %v3526, %v3525
        %v3557 = vpack.c.b16 %v3528, %v3527
        %v3558 = vpack.c.b16 %v3530, %v3529
        %v3559 = vpack.c.b16 %v3532, %v3531
        %v3560 = vpack.c.b16 %v3534, %v3533
        %v3561 = vpack.c.b16 %v3536, %v3535
        %v3562 = vpack.c.b16 %v3538, %v3537
        %v3563 = vpack.c.b16 %v3540, %v3539
        %v3564 = vpack.c.b16 %v3542, %v3541
        %v3565 = vpack.c.b16 %v3544, %v3543
        %v3566 = vpack.c.b16 %v3546, %v3545
        %v3567 = vpack.c.b16 %v3548, %v3547
        %v3568 = vpack.c.b16 %v3550, %v3549
        %v3569 = vpack.c.b16 %v3552, %v3551
        %v3570 = vpack.c.b16 %v3554, %v3553
        %v3572 = vsel %vm710, %v3555, 0
        %v3575 = vsel %vm710, %v3556, 0
        %v3578 = vsel %vm710, %v3557, 0
        %v3581 = vsel %vm710, %v3558, 0
        %v3584 = vsel %vm710, %v3559, 0
        %v3587 = vsel %vm710, %v3560, 0
        %v3590 = vsel %vm710, %v3561, 0
        %v3593 = vsel %vm710, %v3562, 0
        %v3596 = vsel %vm710, %v3563, 0
        %v3599 = vsel %vm710, %v3564, 0
        %v3602 = vsel %vm710, %v3565, 0
        %v3605 = vsel %vm710, %v3566, 0
        %v3608 = vsel %vm710, %v3567, 0
        %v3611 = vsel %vm710, %v3568, 0
        %v3614 = vsel %vm710, %v3569, 0
        %v3617 = vsel %vm710, %v3570, 0
        %v3620 = vsel %vm759, %v3522, 0
        %3622 = vmatpush.bf16.msra.mxu0 0
        %3623 = vmatpush.bf16.msra.mxu0 0
        %3624 = vmatpush.bf16.msra.mxu0 0
        %3625 = vmatpush.bf16.msra.mxu0 0
        %3626 = vmatpush.bf16.msra.mxu0 0
        %3627 = vmatpush.bf16.msra.mxu0 0
        %3628 = vmatpush.bf16.msra.mxu0 0
        %3629 = vmatpush.bf16.msra.mxu0 %v3620
        %3630 = vmatmul.bf16.gmra.mxu0 %v3572
        %v3631 = vpop.f32.mrf.mxu0
        %v3632 = vadd.f32 0.0, %v3631
        %v3633 = vpop.f32.mrf.mxu0
        %v3634 = vadd.f32 0.0, %v3633
        %3635 = vmatmul.bf16.gmra.mxu0 %v3575
        %v3636 = vpop.f32.mrf.mxu0
        %v3637 = vadd.f32 0.0, %v3636
        %v3638 = vpop.f32.mrf.mxu0
        %v3639 = vadd.f32 0.0, %v3638
        %3640 = vmatmul.bf16.gmra.mxu0 %v3578
        %v3641 = vpop.f32.mrf.mxu0
        %v3642 = vadd.f32 0.0, %v3641
        %v3643 = vpop.f32.mrf.mxu0
        %v3644 = vadd.f32 0.0, %v3643
        %3645 = vmatmul.bf16.gmra.mxu0 %v3581
        %v3646 = vpop.f32.mrf.mxu0
        %v3647 = vadd.f32 0.0, %v3646
        %v3648 = vpop.f32.mrf.mxu0
        %v3649 = vadd.f32 0.0, %v3648
        %3650 = vmatmul.bf16.gmra.mxu0 %v3584
        %v3651 = vpop.f32.mrf.mxu0
        %v3652 = vadd.f32 0.0, %v3651
        %v3653 = vpop.f32.mrf.mxu0
        %v3654 = vadd.f32 0.0, %v3653
        %3655 = vmatmul.bf16.gmra.mxu0 %v3587
        %v3656 = vpop.f32.mrf.mxu0
        %v3657 = vadd.f32 0.0, %v3656
        %v3658 = vpop.f32.mrf.mxu0
        %v3659 = vadd.f32 0.0, %v3658
        %3660 = vmatmul.bf16.gmra.mxu0 %v3590
        %v3661 = vpop.f32.mrf.mxu0
        %v3662 = vadd.f32 0.0, %v3661
        %v3663 = vpop.f32.mrf.mxu0
        %v3664 = vadd.f32 0.0, %v3663
        %3665 = vmatmul.bf16.gmra.mxu0 %v3593
        %v3666 = vpop.f32.mrf.mxu0
        %v3667 = vadd.f32 0.0, %v3666
        %v3668 = vpop.f32.mrf.mxu0
        %v3669 = vadd.f32 0.0, %v3668
        %3670 = vmatmul.bf16.gmra.mxu0 %v3596
        %v3671 = vpop.f32.mrf.mxu0
        %v3672 = vadd.f32 0.0, %v3671
        %v3673 = vpop.f32.mrf.mxu0
        %v3674 = vadd.f32 0.0, %v3673
        %3675 = vmatmul.bf16.gmra.mxu0 %v3599
        %v3676 = vpop.f32.mrf.mxu0
        %v3677 = vadd.f32 0.0, %v3676
        %v3678 = vpop.f32.mrf.mxu0
        %v3679 = vadd.f32 0.0, %v3678
        %3680 = vmatmul.bf16.gmra.mxu0 %v3602
        %v3681 = vpop.f32.mrf.mxu0
        %v3682 = vadd.f32 0.0, %v3681
        %v3683 = vpop.f32.mrf.mxu0
        %v3684 = vadd.f32 0.0, %v3683
        %3685 = vmatmul.bf16.gmra.mxu0 %v3605
        %v3686 = vpop.f32.mrf.mxu0
        %v3687 = vadd.f32 0.0, %v3686
        %v3688 = vpop.f32.mrf.mxu0
        %v3689 = vadd.f32 0.0, %v3688
        %3690 = vmatmul.bf16.gmra.mxu0 %v3608
        %v3691 = vpop.f32.mrf.mxu0
        %v3692 = vadd.f32 0.0, %v3691
        %v3693 = vpop.f32.mrf.mxu0
        %v3694 = vadd.f32 0.0, %v3693
        %3695 = vmatmul.bf16.gmra.mxu0 %v3611
        %v3696 = vpop.f32.mrf.mxu0
        %v3697 = vadd.f32 0.0, %v3696
        %v3698 = vpop.f32.mrf.mxu0
        %v3699 = vadd.f32 0.0, %v3698
        %3700 = vmatmul.bf16.gmra.mxu0 %v3614
        %v3701 = vpop.f32.mrf.mxu0
        %v3702 = vadd.f32 0.0, %v3701
        %v3703 = vpop.f32.mrf.mxu0
        %v3704 = vadd.f32 0.0, %v3703
        %3705 = vmatmul.bf16.gmra.mxu0 %v3617
        %v3706 = vpop.f32.mrf.mxu0
        %v3707 = vadd.f32 0.0, %v3706
        %v3708 = vpop.f32.mrf.mxu0
        %v3709 = vadd.f32 0.0, %v3708
        %3710 = vdwg.mxu0
        %v3711 = vadd.f32 %v3057, %v3632
        %v3712 = vadd.f32 %v3058, %v3634
        %v3713 = vadd.f32 %v3059, %v3637
        %v3714 = vadd.f32 %v3060, %v3639
        %v3715 = vadd.f32 %v3061, %v3642
        %v3716 = vadd.f32 %v3062, %v3644
        %v3717 = vadd.f32 %v3063, %v3647
        %v3718 = vadd.f32 %v3064, %v3649
        %v3719 = vadd.f32 %v3065, %v3652
        %v3720 = vadd.f32 %v3066, %v3654
        %v3721 = vadd.f32 %v3067, %v3657
        %v3722 = vadd.f32 %v3068, %v3659
        %v3723 = vadd.f32 %v3069, %v3662
        %v3724 = vadd.f32 %v3070, %v3664
        %v3725 = vadd.f32 %v3071, %v3667
        %v3726 = vadd.f32 %v3072, %v3669
        %v3727 = vadd.f32 %v3073, %v3672
        %v3728 = vadd.f32 %v3074, %v3674
        %v3729 = vadd.f32 %v3075, %v3677
        %v3730 = vadd.f32 %v3076, %v3679
        %v3731 = vadd.f32 %v3077, %v3682
        %v3732 = vadd.f32 %v3078, %v3684
        %v3733 = vadd.f32 %v3079, %v3687
        %v3734 = vadd.f32 %v3080, %v3689
        %v3735 = vadd.f32 %v3081, %v3692
        %v3736 = vadd.f32 %v3082, %v3694
        %v3737 = vadd.f32 %v3083, %v3697
        %v3738 = vadd.f32 %v3084, %v3699
        %v3739 = vadd.f32 %v3085, %v3702
        %v3740 = vadd.f32 %v3086, %v3704
        %v3741 = vadd.f32 %v3087, %v3707
        %v3742 = vadd.f32 %v3088, %v3709
        %v3743 = vld [vmem:[%s2802] sm:$0xe]
        %v3744 = vld [vmem:[%s2802 + $0xc] sm:$0xe]
        %v3745 = vld [vmem:[%s2802 + $0x18] sm:$0xe]
        %v3746 = vld [vmem:[%s2802 + $0x24] sm:$0xe]
        %v3747 = vld [vmem:[%s2802 + $0x30] sm:$0xe]
        %v3748 = vld [vmem:[%s2802 + $0x3c] sm:$0xe]
        %v3749 = vld [vmem:[%s2802 + $0x48] sm:$0xe]
        %v3750 = vld [vmem:[%s2802 + $0x54] sm:$0xe]
        %v3751 = vld [vmem:[%s2802 + $0xd8] sm:$0xe]
        %v3752 = vld [vmem:[%s2802 + $0xe4] sm:$0xe]
        %v3753 = vld [vmem:[%s2802 + $0xf0] sm:$0xe]
        %v3754 = vld [vmem:[%s2802 + $0xfc] sm:$0xe]
        %v3755 = vld [vmem:[%s2802 + $0x108] sm:$0xe]
        %v3756 = vld [vmem:[%s2802 + $0x114] sm:$0xe]
        %v3757 = vld [vmem:[%s2802 + $0x120] sm:$0xe]
        %v3758 = vld [vmem:[%s2802 + $0x12c] sm:$0xe]
        %v3807 = vrot.slane %v3743, 5
        %v3808 = vrot.slane %v3807, 4
        %v3809 = vrot.slane %v3090, 5
        %v3810 = vsel %vm1122, %v3808, %v3809
        %v3811 = vrot.slane %v3809, 4
        %v3812 = vrot.slane %v3091, 5
        %v3813 = vsel %vm1122, %v3811, %v3812
        %v3814 = vrot.slane %v3744, 5
        %v3815 = vrot.slane %v3814, 4
        %v3816 = vrot.slane %v3093, 5
        %v3817 = vsel %vm1122, %v3815, %v3816
        %v3818 = vrot.slane %v3816, 4
        %v3819 = vrot.slane %v3094, 5
        %v3820 = vsel %vm1122, %v3818, %v3819
        %v3821 = vrot.slane %v3745, 5
        %v3822 = vrot.slane %v3821, 4
        %v3823 = vrot.slane %v3096, 5
        %v3824 = vsel %vm1122, %v3822, %v3823
        %v3825 = vrot.slane %v3823, 4
        %v3826 = vrot.slane %v3097, 5
        %v3827 = vsel %vm1122, %v3825, %v3826
        %v3828 = vrot.slane %v3746, 5
        %v3829 = vrot.slane %v3828, 4
        %v3830 = vrot.slane %v3099, 5
        %v3831 = vsel %vm1122, %v3829, %v3830
        %v3832 = vrot.slane %v3830, 4
        %v3833 = vrot.slane %v3100, 5
        %v3834 = vsel %vm1122, %v3832, %v3833
        %v3835 = vrot.slane %v3747, 5
        %v3836 = vrot.slane %v3835, 4
        %v3837 = vrot.slane %v3102, 5
        %v3838 = vsel %vm1122, %v3836, %v3837
        %v3839 = vrot.slane %v3837, 4
        %v3840 = vrot.slane %v3103, 5
        %v3841 = vsel %vm1122, %v3839, %v3840
        %v3842 = vrot.slane %v3748, 5
        %v3843 = vrot.slane %v3842, 4
        %v3844 = vrot.slane %v3105, 5
        %v3845 = vsel %vm1122, %v3843, %v3844
        %v3846 = vrot.slane %v3844, 4
        %v3847 = vrot.slane %v3106, 5
        %v3848 = vsel %vm1122, %v3846, %v3847
        %v3849 = vrot.slane %v3749, 5
        %v3850 = vrot.slane %v3849, 4
        %v3851 = vrot.slane %v3108, 5
        %v3852 = vsel %vm1122, %v3850, %v3851
        %v3853 = vrot.slane %v3851, 4
        %v3854 = vrot.slane %v3109, 5
        %v3855 = vsel %vm1122, %v3853, %v3854
        %v3856 = vrot.slane %v3750, 5
        %v3857 = vrot.slane %v3856, 4
        %v3858 = vrot.slane %v3111, 5
        %v3859 = vsel %vm1122, %v3857, %v3858
        %v3860 = vrot.slane %v3858, 4
        %v3861 = vrot.slane %v3112, 5
        %v3862 = vsel %vm1122, %v3860, %v3861
        %v3863 = vrot.slane %v3751, 5
        %v3864 = vrot.slane %v3863, 4
        %v3865 = vrot.slane %v3114, 5
        %v3866 = vsel %vm1122, %v3864, %v3865
        %v3867 = vrot.slane %v3865, 4
        %v3868 = vrot.slane %v3115, 5
        %v3869 = vsel %vm1122, %v3867, %v3868
        %v3870 = vrot.slane %v3752, 5
        %v3871 = vrot.slane %v3870, 4
        %v3872 = vrot.slane %v3117, 5
        %v3873 = vsel %vm1122, %v3871, %v3872
        %v3874 = vrot.slane %v3872, 4
        %v3875 = vrot.slane %v3118, 5
        %v3876 = vsel %vm1122, %v3874, %v3875
        %v3877 = vrot.slane %v3753, 5
        %v3878 = vrot.slane %v3877, 4
        %v3879 = vrot.slane %v3120, 5
        %v3880 = vsel %vm1122, %v3878, %v3879
        %v3881 = vrot.slane %v3879, 4
        %v3882 = vrot.slane %v3121, 5
        %v3883 = vsel %vm1122, %v3881, %v3882
        %v3884 = vrot.slane %v3754, 5
        %v3885 = vrot.slane %v3884, 4
        %v3886 = vrot.slane %v3123, 5
        %v3887 = vsel %vm1122, %v3885, %v3886
        %v3888 = vrot.slane %v3886, 4
        %v3889 = vrot.slane %v3124, 5
        %v3890 = vsel %vm1122, %v3888, %v3889
        %v3891 = vrot.slane %v3755, 5
        %v3892 = vrot.slane %v3891, 4
        %v3893 = vrot.slane %v3126, 5
        %v3894 = vsel %vm1122, %v3892, %v3893
        %v3895 = vrot.slane %v3893, 4
        %v3896 = vrot.slane %v3127, 5
        %v3897 = vsel %vm1122, %v3895, %v3896
        %v3898 = vrot.slane %v3756, 5
        %v3899 = vrot.slane %v3898, 4
        %v3900 = vrot.slane %v3129, 5
        %v3901 = vsel %vm1122, %v3899, %v3900
        %v3902 = vrot.slane %v3900, 4
        %v3903 = vrot.slane %v3130, 5
        %v3904 = vsel %vm1122, %v3902, %v3903
        %v3905 = vrot.slane %v3757, 5
        %v3906 = vrot.slane %v3905, 4
        %v3907 = vrot.slane %v3132, 5
        %v3908 = vsel %vm1122, %v3906, %v3907
        %v3909 = vrot.slane %v3907, 4
        %v3910 = vrot.slane %v3133, 5
        %v3911 = vsel %vm1122, %v3909, %v3910
        %v3912 = vrot.slane %v3758, 5
        %v3913 = vrot.slane %v3912, 4
        %v3914 = vrot.slane %v3135, 5
        %v3915 = vsel %vm1122, %v3913, %v3914
        %v3916 = vrot.slane %v3914, 4
        %v3917 = vrot.slane %v3136, 5
        %v3918 = vsel %vm1122, %v3916, %v3917
        %s3919 = scalar_lea.vmem %s1, 16
        %v3920 = vld [vmem:[%s3919] sm:$0x3]
        %v3921 = vunpack.c.l.b16 %v3810
        %v3922 = vunpack.c.l.b16 %v3813
        %v3923 = vunpack.c.l.b16 %v3817
        %v3924 = vunpack.c.l.b16 %v3820
        %v3925 = vunpack.c.l.b16 %v3824
        %v3926 = vunpack.c.l.b16 %v3827
        %v3927 = vunpack.c.l.b16 %v3831
        %v3928 = vunpack.c.l.b16 %v3834
        %v3929 = vunpack.c.l.b16 %v3838
        %v3930 = vunpack.c.l.b16 %v3841
        %v3931 = vunpack.c.l.b16 %v3845
        %v3932 = vunpack.c.l.b16 %v3848
        %v3933 = vunpack.c.l.b16 %v3852
        %v3934 = vunpack.c.l.b16 %v3855
        %v3935 = vunpack.c.l.b16 %v3859
        %v3936 = vunpack.c.l.b16 %v3862
        %v3937 = vunpack.c.l.b16 %v3866
        %v3938 = vunpack.c.l.b16 %v3869
        %v3939 = vunpack.c.l.b16 %v3873
        %v3940 = vunpack.c.l.b16 %v3876
        %v3941 = vunpack.c.l.b16 %v3880
        %v3942 = vunpack.c.l.b16 %v3883
        %v3943 = vunpack.c.l.b16 %v3887
        %v3944 = vunpack.c.l.b16 %v3890
        %v3945 = vunpack.c.l.b16 %v3894
        %v3946 = vunpack.c.l.b16 %v3897
        %v3947 = vunpack.c.l.b16 %v3901
        %v3948 = vunpack.c.l.b16 %v3904
        %v3949 = vunpack.c.l.b16 %v3908
        %v3950 = vunpack.c.l.b16 %v3911
        %v3951 = vunpack.c.l.b16 %v3915
        %v3952 = vunpack.c.l.b16 %v3918
        %v3953 = vpack.c.b16 %v3922, %v3921
        %v3954 = vpack.c.b16 %v3924, %v3923
        %v3955 = vpack.c.b16 %v3926, %v3925
        %v3956 = vpack.c.b16 %v3928, %v3927
        %v3957 = vpack.c.b16 %v3930, %v3929
        %v3958 = vpack.c.b16 %v3932, %v3931
        %v3959 = vpack.c.b16 %v3934, %v3933
        %v3960 = vpack.c.b16 %v3936, %v3935
        %v3961 = vpack.c.b16 %v3938, %v3937
        %v3962 = vpack.c.b16 %v3940, %v3939
        %v3963 = vpack.c.b16 %v3942, %v3941
        %v3964 = vpack.c.b16 %v3944, %v3943
        %v3965 = vpack.c.b16 %v3946, %v3945
        %v3966 = vpack.c.b16 %v3948, %v3947
        %v3967 = vpack.c.b16 %v3950, %v3949
        %v3968 = vpack.c.b16 %v3952, %v3951
        %v3970 = vsel %vm710, %v3953, 0
        %v3973 = vsel %vm710, %v3954, 0
        %v3976 = vsel %vm710, %v3955, 0
        %v3979 = vsel %vm710, %v3956, 0
        %v3982 = vsel %vm710, %v3957, 0
        %v3985 = vsel %vm710, %v3958, 0
        %v3988 = vsel %vm710, %v3959, 0
        %v3991 = vsel %vm710, %v3960, 0
        %v3994 = vsel %vm710, %v3961, 0
        %v3997 = vsel %vm710, %v3962, 0
        %v4000 = vsel %vm710, %v3963, 0
        %v4003 = vsel %vm710, %v3964, 0
        %v4006 = vsel %vm710, %v3965, 0
        %v4009 = vsel %vm710, %v3966, 0
        %v4012 = vsel %vm710, %v3967, 0
        %v4015 = vsel %vm710, %v3968, 0
        %v4018 = vsel %vm759, %v3920, 0
        %4020 = vmatpush.bf16.msra.mxu0 0
        %4021 = vmatpush.bf16.msra.mxu0 0
        %4022 = vmatpush.bf16.msra.mxu0 0
        %4023 = vmatpush.bf16.msra.mxu0 0
        %4024 = vmatpush.bf16.msra.mxu0 0
        %4025 = vmatpush.bf16.msra.mxu0 0
        %4026 = vmatpush.bf16.msra.mxu0 0
        %4027 = vmatpush.bf16.msra.mxu0 %v4018
        %4028 = vmatmul.bf16.gmra.mxu0 %v3970
        %v4029 = vpop.f32.mrf.mxu0
        %v4030 = vadd.f32 0.0, %v4029
        %v4031 = vpop.f32.mrf.mxu0
        %v4032 = vadd.f32 0.0, %v4031
        %4033 = vmatmul.bf16.gmra.mxu0 %v3973
        %v4034 = vpop.f32.mrf.mxu0
        %v4035 = vadd.f32 0.0, %v4034
        %v4036 = vpop.f32.mrf.mxu0
        %v4037 = vadd.f32 0.0, %v4036
        %4038 = vmatmul.bf16.gmra.mxu0 %v3976
        %v4039 = vpop.f32.mrf.mxu0
        %v4040 = vadd.f32 0.0, %v4039
        %v4041 = vpop.f32.mrf.mxu0
        %v4042 = vadd.f32 0.0, %v4041
        %4043 = vmatmul.bf16.gmra.mxu0 %v3979
        %v4044 = vpop.f32.mrf.mxu0
        %v4045 = vadd.f32 0.0, %v4044
        %v4046 = vpop.f32.mrf.mxu0
        %v4047 = vadd.f32 0.0, %v4046
        %4048 = vmatmul.bf16.gmra.mxu0 %v3982
        %v4049 = vpop.f32.mrf.mxu0
        %v4050 = vadd.f32 0.0, %v4049
        %v4051 = vpop.f32.mrf.mxu0
        %v4052 = vadd.f32 0.0, %v4051
        %4053 = vmatmul.bf16.gmra.mxu0 %v3985
        %v4054 = vpop.f32.mrf.mxu0
        %v4055 = vadd.f32 0.0, %v4054
        %v4056 = vpop.f32.mrf.mxu0
        %v4057 = vadd.f32 0.0, %v4056
        %4058 = vmatmul.bf16.gmra.mxu0 %v3988
        %v4059 = vpop.f32.mrf.mxu0
        %v4060 = vadd.f32 0.0, %v4059
        %v4061 = vpop.f32.mrf.mxu0
        %v4062 = vadd.f32 0.0, %v4061
        %4063 = vmatmul.bf16.gmra.mxu0 %v3991
        %v4064 = vpop.f32.mrf.mxu0
        %v4065 = vadd.f32 0.0, %v4064
        %v4066 = vpop.f32.mrf.mxu0
        %v4067 = vadd.f32 0.0, %v4066
        %4068 = vmatmul.bf16.gmra.mxu0 %v3994
        %v4069 = vpop.f32.mrf.mxu0
        %v4070 = vadd.f32 0.0, %v4069
        %v4071 = vpop.f32.mrf.mxu0
        %v4072 = vadd.f32 0.0, %v4071
        %4073 = vmatmul.bf16.gmra.mxu0 %v3997
        %v4074 = vpop.f32.mrf.mxu0
        %v4075 = vadd.f32 0.0, %v4074
        %v4076 = vpop.f32.mrf.mxu0
        %v4077 = vadd.f32 0.0, %v4076
        %4078 = vmatmul.bf16.gmra.mxu0 %v4000
        %v4079 = vpop.f32.mrf.mxu0
        %v4080 = vadd.f32 0.0, %v4079
        %v4081 = vpop.f32.mrf.mxu0
        %v4082 = vadd.f32 0.0, %v4081
        %4083 = vmatmul.bf16.gmra.mxu0 %v4003
        %v4084 = vpop.f32.mrf.mxu0
        %v4085 = vadd.f32 0.0, %v4084
        %v4086 = vpop.f32.mrf.mxu0
        %v4087 = vadd.f32 0.0, %v4086
        %4088 = vmatmul.bf16.gmra.mxu0 %v4006
        %v4089 = vpop.f32.mrf.mxu0
        %v4090 = vadd.f32 0.0, %v4089
        %v4091 = vpop.f32.mrf.mxu0
        %v4092 = vadd.f32 0.0, %v4091
        %4093 = vmatmul.bf16.gmra.mxu0 %v4009
        %v4094 = vpop.f32.mrf.mxu0
        %v4095 = vadd.f32 0.0, %v4094
        %v4096 = vpop.f32.mrf.mxu0
        %v4097 = vadd.f32 0.0, %v4096
        %4098 = vmatmul.bf16.gmra.mxu0 %v4012
        %v4099 = vpop.f32.mrf.mxu0
        %v4100 = vadd.f32 0.0, %v4099
        %v4101 = vpop.f32.mrf.mxu0
        %v4102 = vadd.f32 0.0, %v4101
        %4103 = vmatmul.bf16.gmra.mxu0 %v4015
        %v4104 = vpop.f32.mrf.mxu0
        %v4105 = vadd.f32 0.0, %v4104
        %v4106 = vpop.f32.mrf.mxu0
        %v4107 = vadd.f32 0.0, %v4106
        %4108 = vdwg.mxu0
        %v4109 = vadd.f32 %v3711, %v4030
        %v4110 = vadd.f32 %v3712, %v4032
        %v4111 = vadd.f32 %v3713, %v4035
        %v4112 = vadd.f32 %v3714, %v4037
        %v4113 = vadd.f32 %v3715, %v4040
        %v4114 = vadd.f32 %v3716, %v4042
        %v4115 = vadd.f32 %v3717, %v4045
        %v4116 = vadd.f32 %v3718, %v4047
        %v4117 = vadd.f32 %v3719, %v4050
        %v4118 = vadd.f32 %v3720, %v4052
        %v4119 = vadd.f32 %v3721, %v4055
        %v4120 = vadd.f32 %v3722, %v4057
        %v4121 = vadd.f32 %v3723, %v4060
        %v4122 = vadd.f32 %v3724, %v4062
        %v4123 = vadd.f32 %v3725, %v4065
        %v4124 = vadd.f32 %v3726, %v4067
        %v4125 = vadd.f32 %v3727, %v4070
        %v4126 = vadd.f32 %v3728, %v4072
        %v4127 = vadd.f32 %v3729, %v4075
        %v4128 = vadd.f32 %v3730, %v4077
        %v4129 = vadd.f32 %v3731, %v4080
        %v4130 = vadd.f32 %v3732, %v4082
        %v4131 = vadd.f32 %v3733, %v4085
        %v4132 = vadd.f32 %v3734, %v4087
        %v4133 = vadd.f32 %v3735, %v4090
        %v4134 = vadd.f32 %v3736, %v4092
        %v4135 = vadd.f32 %v3737, %v4095
        %v4136 = vadd.f32 %v3738, %v4097
        %v4137 = vadd.f32 %v3739, %v4100
        %v4138 = vadd.f32 %v3740, %v4102
        %v4139 = vadd.f32 %v3741, %v4105
        %v4140 = vadd.f32 %v3742, %v4107
        %v4141 = vld [vmem:[%s2] sm:$0x1]
        %v4143 = vperm.slane %v4141, 0
        %v4145 = vadd.f32 %v4109, %v4143
        %v4146 = vadd.f32 %v4110, %v4143
        %v4147 = vadd.f32 %v4111, %v4143
        %v4148 = vadd.f32 %v4112, %v4143
        %v4149 = vadd.f32 %v4113, %v4143
        %v4150 = vadd.f32 %v4114, %v4143
        %v4151 = vadd.f32 %v4115, %v4143
        %v4152 = vadd.f32 %v4116, %v4143
        %v4153 = vadd.f32 %v4117, %v4143
        %v4154 = vadd.f32 %v4118, %v4143
        %v4155 = vadd.f32 %v4119, %v4143
        %v4156 = vadd.f32 %v4120, %v4143
        %v4157 = vadd.f32 %v4121, %v4143
        %v4158 = vadd.f32 %v4122, %v4143
        %v4159 = vadd.f32 %v4123, %v4143
        %v4160 = vadd.f32 %v4124, %v4143
        %v4161 = vadd.f32 %v4125, %v4143
        %v4162 = vadd.f32 %v4126, %v4143
        %v4163 = vadd.f32 %v4127, %v4143
        %v4164 = vadd.f32 %v4128, %v4143
        %v4165 = vadd.f32 %v4129, %v4143
        %v4166 = vadd.f32 %v4130, %v4143
        %v4167 = vadd.f32 %v4131, %v4143
        %v4168 = vadd.f32 %v4132, %v4143
        %v4169 = vadd.f32 %v4133, %v4143
        %v4170 = vadd.f32 %v4134, %v4143
        %v4171 = vadd.f32 %v4135, %v4143
        %v4172 = vadd.f32 %v4136, %v4143
        %v4173 = vadd.f32 %v4137, %v4143
        %v4174 = vadd.f32 %v4138, %v4143
        %v4175 = vadd.f32 %v4139, %v4143
        %v4176 = vadd.f32 %v4140, %v4143
        %p4177 = scmp.eq.s32.totalorder %s23, 0
        %p4178 = scmp.eq.s32.totalorder %s24, 0
        %p4179 = pnand %p4177, %p4178
        %p4180 = pneg %p4179
        // Predicated region
        $region41: #{tpu_custom_call.1} parent=39 // pred_check
          _
        $region42: #{tpu_custom_call.1} parent=39 // pred_check_branch
          %4182 = sbr.rel (%p4179) target = $region44
        $region43: #{tpu_custom_call.1} parent=39 // pred_region
          %4183 = vst [vmem:[#allocation2] sm:$0x1] 0.0
          %4184 = vst [vmem:[#allocation3] sm:$0x1] 0.0
        $region44: #{tpu_custom_call.1} parent=39 // pred_fallthru
          _
        // Predicated region
        $region45: #{tpu_custom_call.1} parent=39 // pred_check
          %p4185 = pneg %p4177
        $region46: #{tpu_custom_call.1} parent=39 // pred_check_branch
          %4187 = sbr.rel (%p4185) target = $region48
        $region47: #{tpu_custom_call.1} parent=39 // pred_region
          %v4188 = vld [vmem:[#allocation2] sm:$0x1]
          %v4189 = vadd.f32 %v4145, %v4146
          %v4190 = vadd.f32 %v4189, %v4147
          %v4191 = vadd.f32 %v4190, %v4148
          %v4192 = vadd.f32 %v4191, %v4149
          %v4193 = vadd.f32 %v4192, %v4150
          %v4194 = vadd.f32 %v4193, %v4151
          %v4195 = vadd.f32 %v4194, %v4152
          %v4196 = vadd.f32 %v4195, %v4153
          %v4197 = vadd.f32 %v4196, %v4154
          %v4198 = vadd.f32 %v4197, %v4155
          %v4199 = vadd.f32 %v4198, %v4156
          %v4200 = vadd.f32 %v4199, %v4157
          %v4201 = vadd.f32 %v4200, %v4158
          %v4202 = vadd.f32 %v4201, %v4159
          %v4203 = vadd.f32 %v4202, %v4160
          %v4204 = vadd.f32 %v4203, %v4161
          %v4205 = vadd.f32 %v4204, %v4162
          %v4206 = vadd.f32 %v4205, %v4163
          %v4207 = vadd.f32 %v4206, %v4164
          %v4208 = vadd.f32 %v4207, %v4165
          %v4209 = vadd.f32 %v4208, %v4166
          %v4210 = vadd.f32 %v4209, %v4167
          %v4211 = vadd.f32 %v4210, %v4168
          %v4212 = vadd.f32 %v4211, %v4169
          %v4213 = vadd.f32 %v4212, %v4170
          %v4214 = vadd.f32 %v4213, %v4171
          %v4215 = vadd.f32 %v4214, %v4172
          %v4216 = vadd.f32 %v4215, %v4173
          %v4217 = vadd.f32 %v4216, %v4174
          %v4218 = vadd.f32 %v4217, %v4175
          %v4219 = vadd.f32 %v4218, %v4176
          %v4220 = vrot.slane %v4219, 4
          %v4221 = vadd.f32 %v4219, %v4220
          %v4222 = vrot.slane %v4221, 2
          %v4223 = vadd.f32 %v4221, %v4222
          %v4224 = vrot.slane %v4223, 1
          %v4225 = vadd.f32 %v4223, %v4224
          %v4226 = vadd.f32 %v4188, %v4225
          %4227 = vst [vmem:[#allocation2] sm:$0x1] %v4226
          %v4228 = vld [vmem:[#allocation3] sm:$0x1]
          %v4229 = vmul.f32 %v4145, %v4145
          %v4230 = vmul.f32 %v4146, %v4146
          %v4231 = vmul.f32 %v4147, %v4147
          %v4232 = vmul.f32 %v4148, %v4148
          %v4233 = vmul.f32 %v4149, %v4149
          %v4234 = vmul.f32 %v4150, %v4150
          %v4235 = vmul.f32 %v4151, %v4151
          %v4236 = vmul.f32 %v4152, %v4152
          %v4237 = vmul.f32 %v4153, %v4153
          %v4238 = vmul.f32 %v4154, %v4154
          %v4239 = vmul.f32 %v4155, %v4155
          %v4240 = vmul.f32 %v4156, %v4156
          %v4241 = vmul.f32 %v4157, %v4157
          %v4242 = vmul.f32 %v4158, %v4158
          %v4243 = vmul.f32 %v4159, %v4159
          %v4244 = vmul.f32 %v4160, %v4160
          %v4245 = vmul.f32 %v4161, %v4161
          %v4246 = vmul.f32 %v4162, %v4162
          %v4247 = vmul.f32 %v4163, %v4163
          %v4248 = vmul.f32 %v4164, %v4164
          %v4249 = vmul.f32 %v4165, %v4165
          %v4250 = vmul.f32 %v4166, %v4166
          %v4251 = vmul.f32 %v4167, %v4167
          %v4252 = vmul.f32 %v4168, %v4168
          %v4253 = vmul.f32 %v4169, %v4169
          %v4254 = vmul.f32 %v4170, %v4170
          %v4255 = vmul.f32 %v4171, %v4171
          %v4256 = vmul.f32 %v4172, %v4172
          %v4257 = vmul.f32 %v4173, %v4173
          %v4258 = vmul.f32 %v4174, %v4174
          %v4259 = vmul.f32 %v4175, %v4175
          %v4260 = vmul.f32 %v4176, %v4176
          %v4261 = vadd.f32 %v4229, %v4230
          %v4262 = vadd.f32 %v4261, %v4231
          %v4263 = vadd.f32 %v4262, %v4232
          %v4264 = vadd.f32 %v4263, %v4233
          %v4265 = vadd.f32 %v4264, %v4234
          %v4266 = vadd.f32 %v4265, %v4235
          %v4267 = vadd.f32 %v4266, %v4236
          %v4268 = vadd.f32 %v4267, %v4237
          %v4269 = vadd.f32 %v4268, %v4238
          %v4270 = vadd.f32 %v4269, %v4239
          %v4271 = vadd.f32 %v4270, %v4240
          %v4272 = vadd.f32 %v4271, %v4241
          %v4273 = vadd.f32 %v4272, %v4242
          %v4274 = vadd.f32 %v4273, %v4243
          %v4275 = vadd.f32 %v4274, %v4244
          %v4276 = vadd.f32 %v4275, %v4245
          %v4277 = vadd.f32 %v4276, %v4246
          %v4278 = vadd.f32 %v4277, %v4247
          %v4279 = vadd.f32 %v4278, %v4248
          %v4280 = vadd.f32 %v4279, %v4249
          %v4281 = vadd.f32 %v4280, %v4250
          %v4282 = vadd.f32 %v4281, %v4251
          %v4283 = vadd.f32 %v4282, %v4252
          %v4284 = vadd.f32 %v4283, %v4253
          %v4285 = vadd.f32 %v4284, %v4254
          %v4286 = vadd.f32 %v4285, %v4255
          %v4287 = vadd.f32 %v4286, %v4256
          %v4288 = vadd.f32 %v4287, %v4257
          %v4289 = vadd.f32 %v4288, %v4258
          %v4290 = vadd.f32 %v4289, %v4259
          %v4291 = vadd.f32 %v4290, %v4260
          %v4292 = vrot.slane %v4291, 4
          %v4293 = vadd.f32 %v4291, %v4292
          %v4294 = vrot.slane %v4293, 2
          %v4295 = vadd.f32 %v4293, %v4294
          %v4296 = vrot.slane %v4295, 1
          %v4297 = vadd.f32 %v4295, %v4296
          %v4298 = vadd.f32 %v4228, %v4297
          %4299 = vst [vmem:[#allocation3] sm:$0x1] %v4298
        $region48: #{tpu_custom_call.1} parent=39 // pred_fallthru
          _
        %p4300 = scmp.eq.s32.totalorder %s23, 1
        // Predicated region
        $region49: #{tpu_custom_call.1} parent=39 // pred_check
          %p4301 = pneg %p4300
        $region50: #{tpu_custom_call.1} parent=39 // pred_check_branch
          %4303 = sbr.rel (%p4301) target = $region52
        $region51: #{tpu_custom_call.1} parent=39 // pred_region
          %v4304 = vld [vmem:[#allocation2] sm:$0x1]
          %v4305 = vmul.f32 %v4304, 0.001953125
          %v4306 = vld [vmem:[#allocation3] sm:$0x1]
          %v4307 = vmul.f32 %v4306, 0.001953125
          %v4308 = vmul.f32 %v4305, %v4305
          %v4309 = vsub.f32 %v4307, %v4308
          %v4310 = vld [vmem:[%s3] sm:$0x1]
          %v4311 = vadd.f32 %v4309, 1e-05
          %v4312 = vrsqrt.pop %v4311
          %v4313 = vmul.f32 %v4312, %v4311
          %v4314 = vmul.f32 %v4313, %v4312
          %v4315 = vmul.f32 0.5, %v4314
          %v4316 = vsub.f32 1.5, %v4315
          %v4317 = vmul.f32 %v4312, %v4316
          %vm4318 = vweird.f32 %v4311
          %vm4319 = vweird.f32 %v4312
          %vm4320 = vmor %vm4318, %vm4319
          %v4321 = vsel %vm4320, %v4312, %v4317
          %v4322 = vmul.f32 %v4310, %v4321
          %v4323 = vld [vmem:[%s4] sm:$0x1]
          %v4324 = vmul.f32 %v4305, %v4322
          %v4325 = vsub.f32 %v4323, %v4324
          %v4327 = vperm.slane %v4322, 0
          %v4329 = vmul.f32 %v4145, %v4327
          %v4330 = vmul.f32 %v4146, %v4327
          %v4331 = vmul.f32 %v4147, %v4327
          %v4332 = vmul.f32 %v4148, %v4327
          %v4333 = vmul.f32 %v4149, %v4327
          %v4334 = vmul.f32 %v4150, %v4327
          %v4335 = vmul.f32 %v4151, %v4327
          %v4336 = vmul.f32 %v4152, %v4327
          %v4337 = vmul.f32 %v4153, %v4327
          %v4338 = vmul.f32 %v4154, %v4327
          %v4339 = vmul.f32 %v4155, %v4327
          %v4340 = vmul.f32 %v4156, %v4327
          %v4341 = vmul.f32 %v4157, %v4327
          %v4342 = vmul.f32 %v4158, %v4327
          %v4343 = vmul.f32 %v4159, %v4327
          %v4344 = vmul.f32 %v4160, %v4327
          %v4345 = vmul.f32 %v4161, %v4327
          %v4346 = vmul.f32 %v4162, %v4327
          %v4347 = vmul.f32 %v4163, %v4327
          %v4348 = vmul.f32 %v4164, %v4327
          %v4349 = vmul.f32 %v4165, %v4327
          %v4350 = vmul.f32 %v4166, %v4327
          %v4351 = vmul.f32 %v4167, %v4327
          %v4352 = vmul.f32 %v4168, %v4327
          %v4353 = vmul.f32 %v4169, %v4327
          %v4354 = vmul.f32 %v4170, %v4327
          %v4355 = vmul.f32 %v4171, %v4327
          %v4356 = vmul.f32 %v4172, %v4327
          %v4357 = vmul.f32 %v4173, %v4327
          %v4358 = vmul.f32 %v4174, %v4327
          %v4359 = vmul.f32 %v4175, %v4327
          %v4360 = vmul.f32 %v4176, %v4327
          %v4362 = vperm.slane %v4325, 0
          %v4364 = vadd.f32 %v4329, %v4362
          %v4365 = vadd.f32 %v4330, %v4362
          %v4366 = vadd.f32 %v4331, %v4362
          %v4367 = vadd.f32 %v4332, %v4362
          %v4368 = vadd.f32 %v4333, %v4362
          %v4369 = vadd.f32 %v4334, %v4362
          %v4370 = vadd.f32 %v4335, %v4362
          %v4371 = vadd.f32 %v4336, %v4362
          %v4372 = vadd.f32 %v4337, %v4362
          %v4373 = vadd.f32 %v4338, %v4362
          %v4374 = vadd.f32 %v4339, %v4362
          %v4375 = vadd.f32 %v4340, %v4362
          %v4376 = vadd.f32 %v4341, %v4362
          %v4377 = vadd.f32 %v4342, %v4362
          %v4378 = vadd.f32 %v4343, %v4362
          %v4379 = vadd.f32 %v4344, %v4362
          %v4380 = vadd.f32 %v4345, %v4362
          %v4381 = vadd.f32 %v4346, %v4362
          %v4382 = vadd.f32 %v4347, %v4362
          %v4383 = vadd.f32 %v4348, %v4362
          %v4384 = vadd.f32 %v4349, %v4362
          %v4385 = vadd.f32 %v4350, %v4362
          %v4386 = vadd.f32 %v4351, %v4362
          %v4387 = vadd.f32 %v4352, %v4362
          %v4388 = vadd.f32 %v4353, %v4362
          %v4389 = vadd.f32 %v4354, %v4362
          %v4390 = vadd.f32 %v4355, %v4362
          %v4391 = vadd.f32 %v4356, %v4362
          %v4392 = vadd.f32 %v4357, %v4362
          %v4393 = vadd.f32 %v4358, %v4362
          %v4394 = vadd.f32 %v4359, %v4362
          %v4395 = vadd.f32 %v4360, %v4362
          %v4396 = vmax.f32 %v4364, 0.0
          %v4397 = vmax.f32 %v4365, 0.0
          %v4398 = vmax.f32 %v4366, 0.0
          %v4399 = vmax.f32 %v4367, 0.0
          %v4400 = vmax.f32 %v4368, 0.0
          %v4401 = vmax.f32 %v4369, 0.0
          %v4402 = vmax.f32 %v4370, 0.0
          %v4403 = vmax.f32 %v4371, 0.0
          %v4404 = vmax.f32 %v4372, 0.0
          %v4405 = vmax.f32 %v4373, 0.0
          %v4406 = vmax.f32 %v4374, 0.0
          %v4407 = vmax.f32 %v4375, 0.0
          %v4408 = vmax.f32 %v4376, 0.0
          %v4409 = vmax.f32 %v4377, 0.0
          %v4410 = vmax.f32 %v4378, 0.0
          %v4411 = vmax.f32 %v4379, 0.0
          %v4412 = vmax.f32 %v4380, 0.0
          %v4413 = vmax.f32 %v4381, 0.0
          %v4414 = vmax.f32 %v4382, 0.0
          %v4415 = vmax.f32 %v4383, 0.0
          %v4416 = vmax.f32 %v4384, 0.0
          %v4417 = vmax.f32 %v4385, 0.0
          %v4418 = vmax.f32 %v4386, 0.0
          %v4419 = vmax.f32 %v4387, 0.0
          %v4420 = vmax.f32 %v4388, 0.0
          %v4421 = vmax.f32 %v4389, 0.0
          %v4422 = vmax.f32 %v4390, 0.0
          %v4423 = vmax.f32 %v4391, 0.0
          %v4424 = vmax.f32 %v4392, 0.0
          %v4425 = vmax.f32 %v4393, 0.0
          %v4426 = vmax.f32 %v4394, 0.0
          %v4427 = vmax.f32 %v4395, 0.0
          %4428 = vst [vmem:[%s216] sm:$0xff] %v4396
          %4429 = vst [vmem:[%s216 + $0x8] sm:$0xff] %v4397
          %4430 = vst [vmem:[%s216 + $0x10] sm:$0xff] %v4398
          %4431 = vst [vmem:[%s216 + $0x18] sm:$0xff] %v4399
          %4432 = vst [vmem:[%s216 + $0x20] sm:$0xff] %v4400
          %4433 = vst [vmem:[%s216 + $0x28] sm:$0xff] %v4401
          %4434 = vst [vmem:[%s216 + $0x30] sm:$0xff] %v4402
          %4435 = vst [vmem:[%s216 + $0x38] sm:$0xff] %v4403
          %4436 = vst [vmem:[%s216 + $0x40] sm:$0xff] %v4404
          %4437 = vst [vmem:[%s216 + $0x48] sm:$0xff] %v4405
          %4438 = vst [vmem:[%s216 + $0x50] sm:$0xff] %v4406
          %4439 = vst [vmem:[%s216 + $0x58] sm:$0xff] %v4407
          %4440 = vst [vmem:[%s216 + $0x60] sm:$0xff] %v4408
          %4441 = vst [vmem:[%s216 + $0x68] sm:$0xff] %v4409
          %4442 = vst [vmem:[%s216 + $0x70] sm:$0xff] %v4410
          %4443 = vst [vmem:[%s216 + $0x78] sm:$0xff] %v4411
          %4444 = vst [vmem:[%s216 + $0x80] sm:$0xff] %v4412
          %4445 = vst [vmem:[%s216 + $0x88] sm:$0xff] %v4413
          %4446 = vst [vmem:[%s216 + $0x90] sm:$0xff] %v4414
          %4447 = vst [vmem:[%s216 + $0x98] sm:$0xff] %v4415
          %4448 = vst [vmem:[%s216 + $0xa0] sm:$0xff] %v4416
          %4449 = vst [vmem:[%s216 + $0xa8] sm:$0xff] %v4417
          %4450 = vst [vmem:[%s216 + $0xb0] sm:$0xff] %v4418
          %4451 = vst [vmem:[%s216 + $0xb8] sm:$0xff] %v4419
          %4452 = vst [vmem:[%s216 + $0xc0] sm:$0xff] %v4420
          %4453 = vst [vmem:[%s216 + $0xc8] sm:$0xff] %v4421
          %4454 = vst [vmem:[%s216 + $0xd0] sm:$0xff] %v4422
          %4455 = vst [vmem:[%s216 + $0xd8] sm:$0xff] %v4423
          %4456 = vst [vmem:[%s216 + $0xe0] sm:$0xff] %v4424
          %4457 = vst [vmem:[%s216 + $0xe8] sm:$0xff] %v4425
          %4458 = vst [vmem:[%s216 + $0xf0] sm:$0xff] %v4426
          %4459 = vst [vmem:[%s216 + $0xf8] sm:$0xff] %v4427
        $region52: #{tpu_custom_call.1} parent=39 // pred_fallthru
          _
        %s4460 = sand.u32 %s146, 1
        %s4461 = scalar_lea.sflag [#allocation5], %s4460
        %s4462 = sand.u32 %s146, 1
        %s4463 = smul.addr %s4462, 256
        %s4464 = scalar_lea.vmem [#allocation4], %s4463
        // Predicated region
        $region53: #{tpu_custom_call.1} parent=39 // pred_check
          %p4465 = pneg %p156
        $region54: #{tpu_custom_call.1} parent=39 // pred_check_branch
          %4467 = sbr.rel (%p4465) target = $region56
        $region55: #{tpu_custom_call.1} parent=39 // pred_region
          #allocation7 [shape = 'u32[6]{0}', space=smem, size = 0x18, scoped, tag = 'DMA stride descriptor']
          %s4468 = smul.u32 %s23, %s24
          %s4469 = smul.u32 8, %s4468
          %4471 = vsyncadd %s4461, 0
          %s4472 = smul.addr %s4469, 2
          %s4473 = smul.addr %s4472, 8
          %s4474 = scalar_lea.hbm %s5, %s4473
          %s4476 = sshll.u32 1, 14
          %s4477 = sxor.u32 4294967295, %s4476
          %s4480 = sshll.u32 7, 18
          %s4481 = sxor.u32 4294967295, %s4480
          %s4482 = sand.u32 0, %s4481
          %s4484 = sor.u32 %s4482, 0
          %s4485 = sshll.u32 %s4464, 4
          %s4486 = int_to_ptr.vmem [resolvable:$true] %s4485
          %s4487 = sshll.u32 %s4474, 4
          %s4488 = int_to_ptr.hbm [resolvable:$true] %s4487
          %4494 = sst [smem:[#allocation7]] 2048
          %s4495 = scalar_lea.smem [#allocation7], 1
          %4496 = sst [smem:[%s4495]] 4096
          %s4497 = scalar_lea.smem [#allocation7], 2
          %4498 = sst [smem:[%s4497]] 16
          %s4499 = scalar_lea.smem [#allocation7], 3
          %4500 = sst [smem:[%s4499]] 128
          %s4501 = scalar_lea.smem [#allocation7], 4
          %4502 = sst [smem:[%s4501]] 128
          %s4503 = scalar_lea.smem [#allocation7], 5
          %4504 = sst [smem:[%s4503]] 8
          %4506 = dma.general %s4486, 4096, %s4488, %s4461, [#allocation6], [#allocation7], %s4484, 0
        $region56: #{tpu_custom_call.1} parent=39 // pred_fallthru
          _
      $region40: #{tpu_custom_call.1} parent=5 // pred_fallthru
        _
      %p4507 = scmp.le.s32.totalorder 2, %s14
      // Predicated region
      $region57: #{tpu_custom_call.1} parent=5 // pred_check
        %p4508 = pneg %p4507
      $region58: #{tpu_custom_call.1} parent=5 // pred_check_branch
        %4510 = sbr.rel (%p4508) target = $region60
      $region59: #{tpu_custom_call.1} parent=5 // pred_region
        %s4511 = ssub.s32 %s14, 2
        // Predicated region
        $region61: #{tpu_custom_call.1} parent=59 // pred_check
          %p4512 = pneg %p162
        $region62: #{tpu_custom_call.1} parent=59 // pred_check_branch
          %4514 = sbr.rel (%p4512) target = $region64
        $region63: #{tpu_custom_call.1} parent=59 // pred_region
          %s4515 = sand.u32 %s147, 1
          %s4516 = scalar_lea.sflag [#allocation5], %s4515
          %s4517 = sand.u32 %s147, 1
          %s4518 = smul.addr %s4517, 256
          %s4519 = scalar_lea.vmem [#allocation4], %s4518
          %4521 = dma.done %s4516, 4096
        $region64: #{tpu_custom_call.1} parent=59 // pred_fallthru
          _
      $region60: #{tpu_custom_call.1} parent=5 // pred_fallthru
        _
    $region6: #{tpu_custom_call.1} parent=1 // loop_footer
      %s18 = sadd.s32 1, %s14
    $region7: #{tpu_custom_call.1} parent=1 // loop_footer_branch
      %13 = sbr.rel target = $region3
    $region8: #{tpu_custom_call.1} parent=1 // loop_exit
      _
    %4522 = vsyncpa [#allocation5], 1
    %s4523 = scalar_lea.sflag [#allocation5], 1
    %4524 = vsyncpa %s4523, 1

</llo_original>
